<compile_context>
chip_gen: v7x
topology: tpu7x:2x2x1
jax: 0.10.0
libtpu: 0.0.40
codegen_flags: <defaults>
</compile_context>

<pallas_src>
import functools
import math

import jax
import jax.numpy as jnp
from jax.experimental import pallas as pl
from jax.experimental.pallas import tpu as pltpu


def _pick_tile(n, candidates):
    """Largest candidate tile that evenly divides n; falls back to full n."""
    for c in candidates:
        if c <= n and n % c == 0:
            return c
    return n


# ---------------------------------------------------------------------------
# Kernel 1: row-wise L2 normalization of the three flattened feature maps.
# ---------------------------------------------------------------------------
def _normalize_kernel(x_ref, p_ref, n_ref, nx_ref, np_ref, nn_ref):
    def l2norm(v):
        nrm = jnp.sqrt(jnp.sum(v * v, axis=-1, keepdims=True))
        return v / jnp.maximum(nrm, 1e-12)   # matches F.normalize(eps=1e-12)

    nx_ref[...] = l2norm(x_ref[...])
    np_ref[...] = l2norm(p_ref[...])
    nn_ref[...] = l2norm(n_ref[...])


# ---------------------------------------------------------------------------
# Kernel 2: (N, N) different-class * confidence mask, tiled (tm, tn).
#   mask[i, j] = (seg_input[j] != seg_negative[i]) * negative_prob[i]
# ---------------------------------------------------------------------------
def _mask_kernel(seg_in_ref, seg_neg_ref, prob_neg_ref, masked_ref):
    seg_in = seg_in_ref[...]       # (1, tn)  anchor class ids (f32)
    seg_neg = seg_neg_ref[...]     # (tm, 1)  negative class ids (f32)
    prob_neg = prob_neg_ref[...]   # (tm, 1)  negative max-softmax confidence
    diff = (seg_in != seg_neg).astype(jnp.float32)   # (tm, tn)
    masked_ref[...] = diff * prob_neg


# ---------------------------------------------------------------------------
# Kernel 3: fused gathered-similarity + InfoNCE reduction.
# Inputs per grid step (column tile of tl pixels):
#   nx   : (tl, C)       normalized anchors
#   npos : (tl, C)       normalized positives
#   sneg : (k, tl, C)    top-k gathered normalized negatives per pixel
# Accumulates sum(loss + alter_loss) into the resident (1, 1) output and
# divides by N on the last step (== mean(loss) + mean(alter_loss)).
# ---------------------------------------------------------------------------
def _loss_kernel(nx_ref, np_ref, sneg_ref, out_ref, *, tau, n_total):
    j = pl.program_id(0)

    @pl.when(j == 0)
    def _():
        out_ref[...] = jnp.zeros_like(out_ref)

    inv_tau = 1.0 / tau
    nx = nx_ref[...]            # (tl, C)
    npos = np_ref[...]          # (tl, C)
    sneg = sneg_ref[...]        # (k, tl, C)

    # cosine similarity of unit vectors == row-wise dot product
    pos = jnp.sum(nx * npos, axis=-1, keepdims=True)                    # (tl, 1)
    nom = jnp.exp(pos * inv_tau)                                        # (tl, 1)

    neg_sim = jnp.sum(sneg * nx[None, :, :], axis=-1, keepdims=True)    # (k, tl, 1)
    alt_sim = jnp.sum(sneg * npos[None, :, :], axis=-1, keepdims=True)  # (k, tl, 1)

    den = jnp.sum(jnp.exp(neg_sim * inv_tau), axis=0) + nom             # (tl, 1)
    alt_den = jnp.sum(jnp.exp(alt_sim * inv_tau), axis=0) + nom         # (tl, 1)

    loss = -jnp.log(nom / (den + 1e-8))
    alt_loss = -jnp.log(nom / (alt_den + 1e-8))

    out_ref[...] += jnp.reshape(jnp.sum(loss + alt_loss), (1, 1))

    @pl.when(j == pl.num_programs(0) - 1)
    def _():
        out_ref[...] = out_ref[...] * (1.0 / n_total)


# ---------------------------------------------------------------------------
# Wrapper
# ---------------------------------------------------------------------------
def rnsf_contrastive_loss(inp, positive, negative, input_logits, negative_logits,
                          *, temperature=0.07, sample_num=8):
    B, C = inp.shape[0], inp.shape[1]
    spatial = inp.shape[2:]
    N = B * math.prod(spatial)

    def flat_feat(t):
        perm = (0,) + tuple(range(2, 2 + len(spatial))) + (1,)
        return jnp.transpose(t, perm).reshape(-1, C).astype(jnp.float32)

    x = flat_feat(inp)
    p = flat_feat(positive)
    n = flat_feat(negative)

    # check_input (multi-class logits path): per-pixel softmax-max / argmax.
    # TODO(synk): sigmoid (num_classes == 1) and explicit-segmentation paths of
    # check_input are not implemented in this demo.
    def seg_and_prob(logits):
        probs = jax.nn.softmax(logits.astype(jnp.float32), axis=1)
        seg = jnp.argmax(probs, axis=1).astype(jnp.float32).reshape(-1)   # (N,)
        maxp = jnp.max(probs, axis=1).reshape(-1)                          # (N,)
        return seg, maxp

    seg_in, _ = seg_and_prob(input_logits)
    seg_neg, prob_neg = seg_and_prob(negative_logits)

    # ---- Kernel 1: L2 normalization, tiled over rows ------------------------
    tm_n = _pick_tile(N, [512, 256, 128, 64, 32, 16, 8])
    feat_spec = pl.BlockSpec((tm_n, C), lambda i: (i, 0))
    nx, npos, nneg = pl.pallas_call(
        _normalize_kernel,
        grid=(N // tm_n,),
        out_shape=tuple(jax.ShapeDtypeStruct((N, C), jnp.float32)
                        for _ in range(3)),
        in_specs=[feat_spec, feat_spec, feat_spec],
        out_specs=(feat_spec, feat_spec, feat_spec),
        compiler_params=pltpu.CompilerParams(dimension_semantics=("parallel",)),
    )(x, p, n)

    # ---- Kernel 2: (N, N) mask, 2-D tiled, both axes parallel ---------------
    tm = _pick_tile(N, [256, 128, 64, 32, 16, 8])
    tn = _pick_tile(N, [256, 128])        # lane tile: multiple of 128 or full N
    masked = pl.pallas_call(
        _mask_kernel,
        grid=(N // tm, N // tn),
        out_shape=jax.ShapeDtypeStruct((N, N), jnp.float32),
        in_specs=[
            pl.BlockSpec((1, tn), lambda i, j: (0, j)),
            pl.BlockSpec((tm, 1), lambda i, j: (i, 0)),
            pl.BlockSpec((tm, 1), lambda i, j: (i, 0)),
        ],
        out_specs=pl.BlockSpec((tm, tn), lambda i, j: (i, j)),
        compiler_params=pltpu.CompilerParams(
            dimension_semantics=("parallel", "parallel")),
    )(seg_in[None, :], seg_neg[:, None], prob_neg[:, None])

    # ---- XLA: top-k + data-dependent row gather ------------------------------
    # TODO(synk): GumbelTopK (gumble=False -> plain top-k along dim 0) and the
    # fancy-index gather norm_negative[indices] stay in XLA; only the k gathered
    # rows per pixel (not dense N x N sims) flow into the fused loss kernel.
    _, idx_t = jax.lax.top_k(masked.T, sample_num)        # (N, k) row indices
    idx = idx_t.T                                         # (k, N)
    sampled = jnp.take(nneg, idx, axis=0)                 # (k, N, C)

    # ---- Kernel 3: fused gathered-sim + loss reduction -----------------------
    tl = _pick_tile(N, [512, 256, 128, 64, 32, 16, 8])
    loss = pl.pallas_call(
        functools.partial(_loss_kernel, tau=temperature, n_total=float(N)),
        grid=(N // tl,),
        out_shape=jax.ShapeDtypeStruct((1, 1), jnp.float32),
        in_specs=[
            pl.BlockSpec((tl, C), lambda j: (j, 0)),
            pl.BlockSpec((tl, C), lambda j: (j, 0)),
            pl.BlockSpec((sample_num, tl, C), lambda j: (0, j, 0)),
        ],
        out_specs=pl.BlockSpec((1, 1), lambda j: (0, 0)),
        compiler_params=pltpu.CompilerParams(dimension_semantics=("arbitrary",)),
    )(nx, npos, sampled)

    return loss[0, 0]


if __name__ == "__main__":
    # Small shapes consistent with the module: NCHW features + class logits.
    B, C, H, W, NUM_CLS = 2, 32, 8, 8, 4          # N = B*H*W = 128
    SAMPLE_NUM = 8                                # small top-k for the demo
    key = jax.random.PRNGKey(0)
    k1, k2, k3, k4, k5 = jax.random.split(key, 5)
    inp = jax.random.normal(k1, (B, C, H, W), jnp.float32)
    pos = jax.random.normal(k2, (B, C, H, W), jnp.float32)
    neg = jax.random.normal(k3, (B, C, H, W), jnp.float32)
    input_logits = jax.random.normal(k4, (B, NUM_CLS, H, W), jnp.float32)
    negative_logits = jax.random.normal(k5, (B, NUM_CLS, H, W), jnp.float32)

    fn = jax.jit(functools.partial(
        rnsf_contrastive_loss, temperature=0.07, sample_num=SAMPLE_NUM))
    loss = fn(inp, pos, neg, input_logits, negative_logits)
    loss = jax.block_until_ready(loss)
    assert jnp.isfinite(loss), f"loss is not finite: {loss}"
    print("KERNEL_OK")
</pallas_src>

<mosaic_0001>
module attributes {stable_mosaic.version = 11 : i64} {
  func.func @_mask_kernel(%arg0: i32, %arg1: i32, %arg2: memref<1x128xf32, #tpu.memory_space<vmem>>, %arg3: memref<128x1xf32, #tpu.memory_space<vmem>>, %arg4: memref<128x1xf32, #tpu.memory_space<vmem>>, %arg5: memref<128x128xf32, #tpu.memory_space<vmem>>) attributes {dimension_semantics = [#tpu.dimension_semantics<parallel>, #tpu.dimension_semantics<parallel>], iteration_bounds = array<i64: 1, 1>, scalar_prefetch = 0 : i64, scratch_operands = 0 : i64, tpu.core_type = #tpu.core_type<tc>, window_params = [{transform_indices = @transform_0, window_bounds = array<i64: 1, 128>}, {transform_indices = @transform_1, window_bounds = array<i64: 128, 1>}, {transform_indices = @transform_2, window_bounds = array<i64: 128, 1>}, {transform_indices = @transform_3, window_bounds = array<i64: 128, 128>}]} {
    %c0 = arith.constant 0 : index
    %c0_0 = arith.constant 0 : index
    %0 = vector.load %arg2[%c0, %c0_0] : memref<1x128xf32, #tpu.memory_space<vmem>>, vector<1x128xf32>
    %c0_1 = arith.constant 0 : index
    %c0_2 = arith.constant 0 : index
    %1 = vector.load %arg3[%c0_1, %c0_2] : memref<128x1xf32, #tpu.memory_space<vmem>>, vector<128x1xf32>
    %c0_3 = arith.constant 0 : index
    %c0_4 = arith.constant 0 : index
    %2 = vector.load %arg4[%c0_3, %c0_4] : memref<128x1xf32, #tpu.memory_space<vmem>>, vector<128x1xf32>
    %3 = vector.broadcast %0 : vector<1x128xf32> to vector<128x128xf32>
    %4 = vector.broadcast %1 : vector<128x1xf32> to vector<128x128xf32>
    %5 = arith.cmpf one, %3, %4 : vector<128x128xf32>
    %6 = arith.extui %5 : vector<128x128xi1> to vector<128x128xi32>
    %7 = arith.sitofp %6 : vector<128x128xi32> to vector<128x128xf32>
    %8 = vector.broadcast %2 : vector<128x1xf32> to vector<128x128xf32>
    %9 = arith.mulf %7, %8 : vector<128x128xf32>
    %c0_5 = arith.constant 0 : index
    %c0_6 = arith.constant 0 : index
    %10 = vector.load %arg5[%c0_5, %c0_6] : memref<128x128xf32, #tpu.memory_space<vmem>>, vector<128x128xf32>
    tpu.vector_store %arg5[%c0_5, %c0_6], %9 {strides = array<i32>} : memref<128x128xf32, #tpu.memory_space<vmem>>, vector<128x128xf32>,
    return
  }
  func.func @transform_0(%arg0: i32, %arg1: i32) -> (i32, i32) {
    %c0_i32 = arith.constant 0 : i32
    %c0_i32_0 = arith.constant 0 : i32
    return %c0_i32, %arg1 : i32, i32
  }
  func.func @transform_1(%arg0: i32, %arg1: i32) -> (i32, i32) {
    %c0_i32 = arith.constant 0 : i32
    %c0_i32_0 = arith.constant 0 : i32
    return %arg0, %c0_i32 : i32, i32
  }
  func.func @transform_2(%arg0: i32, %arg1: i32) -> (i32, i32) {
    %c0_i32 = arith.constant 0 : i32
    %c0_i32_0 = arith.constant 0 : i32
    return %arg0, %c0_i32 : i32, i32
  }
  func.func @transform_3(%arg0: i32, %arg1: i32) -> (i32, i32) {
    %c0_i32 = arith.constant 0 : i32
    return %arg0, %arg1 : i32, i32
  }
}

module attributes {stable_mosaic.version = 11 : i64} {
  func.func @_normalize_kernel(%arg0: i32, %arg1: memref<128x32xf32, #tpu.memory_space<vmem>>, %arg2: memref<128x32xf32, #tpu.memory_space<vmem>>, %arg3: memref<128x32xf32, #tpu.memory_space<vmem>>, %arg4: memref<128x32xf32, #tpu.memory_space<vmem>>, %arg5: memref<128x32xf32, #tpu.memory_space<vmem>>, %arg6: memref<128x32xf32, #tpu.memory_space<vmem>>) attributes {dimension_semantics = [#tpu.dimension_semantics<parallel>], iteration_bounds = array<i64: 1>, scalar_prefetch = 0 : i64, scratch_operands = 0 : i64, tpu.core_type = #tpu.core_type<tc>, window_params = [{transform_indices = @transform_0, window_bounds = array<i64: 128, 32>}, {transform_indices = @transform_1, window_bounds = array<i64: 128, 32>}, {transform_indices = @transform_2, window_bounds = array<i64: 128, 32>}, {transform_indices = @transform_3, window_bounds = array<i64: 128, 32>}, {transform_indices = @transform_4, window_bounds = array<i64: 128, 32>}, {transform_indices = @transform_5, window_bounds = array<i64: 128, 32>}]} {
    %c0 = arith.constant 0 : index
    %c0_0 = arith.constant 0 : index
    %0 = vector.load %arg1[%c0, %c0_0] : memref<128x32xf32, #tpu.memory_space<vmem>>, vector<128x32xf32>
    %1 = arith.mulf %0, %0 : vector<128x32xf32>
    %cst = arith.constant dense<0.000000e+00> : vector<128xf32>
    %2 = vector.multi_reduction <add>, %1, %cst [1] : vector<128x32xf32> to vector<128xf32>
    %3 = vector.shape_cast %2 : vector<128xf32> to vector<128x1xf32>
    %4 = math.sqrt %3 : vector<128x1xf32>
    %cst_1 = arith.constant 9.99999996E-13 : f32
    %5 = vector.broadcast %cst_1 : f32 to vector<128x1xf32>
    %6 = arith.maximumf %4, %5 : vector<128x1xf32>
    %7 = vector.broadcast %6 : vector<128x1xf32> to vector<128x32xf32>
    %8 = arith.divf %0, %7 : vector<128x32xf32>
    %c0_2 = arith.constant 0 : index
    %c0_3 = arith.constant 0 : index
    %9 = vector.load %arg4[%c0_2, %c0_3] : memref<128x32xf32, #tpu.memory_space<vmem>>, vector<128x32xf32>
    tpu.vector_store %arg4[%c0_2, %c0_3], %8 {strides = array<i32>} : memref<128x32xf32, #tpu.memory_space<vmem>>, vector<128x32xf32>,
    %c0_4 = arith.constant 0 : index
    %c0_5 = arith.constant 0 : index
    %10 = vector.load %arg2[%c0_4, %c0_5] : memref<128x32xf32, #tpu.memory_space<vmem>>, vector<128x32xf32>
    %11 = arith.mulf %10, %10 : vector<128x32xf32>
    %cst_6 = arith.constant dense<0.000000e+00> : vector<128xf32>
    %12 = vector.multi_reduction <add>, %11, %cst_6 [1] : vector<128x32xf32> to vector<128xf32>
    %13 = vector.shape_cast %12 : vector<128xf32> to vector<128x1xf32>
    %14 = math.sqrt %13 : vector<128x1xf32>
    %cst_7 = arith.constant 9.99999996E-13 : f32
    %15 = vector.broadcast %cst_7 : f32 to vector<128x1xf32>
    %16 = arith.maximumf %14, %15 : vector<128x1xf32>
    %17 = vector.broadcast %16 : vector<128x1xf32> to vector<128x32xf32>
    %18 = arith.divf %10, %17 : vector<128x32xf32>
    %c0_8 = arith.constant 0 : index
    %c0_9 = arith.constant 0 : index
    %19 = vector.load %arg5[%c0_8, %c0_9] : memref<128x32xf32, #tpu.memory_space<vmem>>, vector<128x32xf32>
    tpu.vector_store %arg5[%c0_8, %c0_9], %18 {strides = array<i32>} : memref<128x32xf32, #tpu.memory_space<vmem>>, vector<128x32xf32>,
    %c0_10 = arith.constant 0 : index
    %c0_11 = arith.constant 0 : index
    %20 = vector.load %arg3[%c0_10, %c0_11] : memref<128x32xf32, #tpu.memory_space<vmem>>, vector<128x32xf32>
    %21 = arith.mulf %20, %20 : vector<128x32xf32>
    %cst_12 = arith.constant dense<0.000000e+00> : vector<128xf32>
    %22 = vector.multi_reduction <add>, %21, %cst_12 [1] : vector<128x32xf32> to vector<128xf32>
    %23 = vector.shape_cast %22 : vector<128xf32> to vector<128x1xf32>
    %24 = math.sqrt %23 : vector<128x1xf32>
    %cst_13 = arith.constant 9.99999996E-13 : f32
    %25 = vector.broadcast %cst_13 : f32 to vector<128x1xf32>
    %26 = arith.maximumf %24, %25 : vector<128x1xf32>
    %27 = vector.broadcast %26 : vector<128x1xf32> to vector<128x32xf32>
    %28 = arith.divf %20, %27 : vector<128x32xf32>
    %c0_14 = arith.constant 0 : index
    %c0_15 = arith.constant 0 : index
    %29 = vector.load %arg6[%c0_14, %c0_15] : memref<128x32xf32, #tpu.memory_space<vmem>>, vector<128x32xf32>
    tpu.vector_store %arg6[%c0_14, %c0_15], %28 {strides = array<i32>} : memref<128x32xf32, #tpu.memory_space<vmem>>, vector<128x32xf32>,
    return
  }
  func.func @transform_0(%arg0: i32) -> (i32, i32) {
    %c0_i32 = arith.constant 0 : i32
    %c0_i32_0 = arith.constant 0 : i32
    return %arg0, %c0_i32 : i32, i32
  }
  func.func @transform_1(%arg0: i32) -> (i32, i32) {
    %c0_i32 = arith.constant 0 : i32
    %c0_i32_0 = arith.constant 0 : i32
    return %arg0, %c0_i32 : i32, i32
  }
  func.func @transform_2(%arg0: i32) -> (i32, i32) {
    %c0_i32 = arith.constant 0 : i32
    %c0_i32_0 = arith.constant 0 : i32
    return %arg0, %c0_i32 : i32, i32
  }
  func.func @transform_3(%arg0: i32) -> (i32, i32) {
    %c0_i32 = arith.constant 0 : i32
    %c0_i32_0 = arith.constant 0 : i32
    return %arg0, %c0_i32 : i32, i32
  }
  func.func @transform_4(%arg0: i32) -> (i32, i32) {
    %c0_i32 = arith.constant 0 : i32
    %c0_i32_0 = arith.constant 0 : i32
    return %arg0, %c0_i32 : i32, i32
  }
  func.func @transform_5(%arg0: i32) -> (i32, i32) {
    %c0_i32 = arith.constant 0 : i32
    %c0_i32_0 = arith.constant 0 : i32
    return %arg0, %c0_i32 : i32, i32
  }
}

module attributes {stable_mosaic.version = 11 : i64} {
  func.func @_loss_kernel(%arg0: i32, %arg1: memref<128x32xf32, #tpu.memory_space<vmem>>, %arg2: memref<128x32xf32, #tpu.memory_space<vmem>>, %arg3: memref<8x128x32xf32, #tpu.memory_space<vmem>>, %arg4: memref<1x1xf32, #tpu.memory_space<vmem>>) attributes {dimension_semantics = [#tpu.dimension_semantics<arbitrary>], iteration_bounds = array<i64: 1>, scalar_prefetch = 0 : i64, scratch_operands = 0 : i64, tpu.core_type = #tpu.core_type<tc>, window_params = [{transform_indices = @transform_0, window_bounds = array<i64: 128, 32>}, {transform_indices = @transform_1, window_bounds = array<i64: 128, 32>}, {transform_indices = @transform_2, window_bounds = array<i64: 8, 128, 32>}, {pipeline_mode = #tpu.pipeline_mode<synchronous>, transform_indices = @transform_3, window_bounds = array<i64: 1, 1>}]} {
    %c0_i32 = arith.constant 0 : i32
    %0 = arith.cmpi eq, %arg0, %c0_i32 : i32
    %1 = arith.extui %0 : i1 to i32
    %c0_i32_0 = arith.constant 0 : i32
    %2 = arith.cmpi ne, %1, %c0_i32_0 : i32
    scf.if %2 {
      %cst_25 = arith.constant 0.000000e+00 : f32
      %56 = vector.broadcast %cst_25 : f32 to vector<1x1xf32>
      %c0_26 = arith.constant 0 : index
      %c0_27 = arith.constant 0 : index
      %57 = vector.load %arg4[%c0_26, %c0_27] : memref<1x1xf32, #tpu.memory_space<vmem>>, vector<1x1xf32>
      tpu.vector_store %arg4[%c0_26, %c0_27], %56 {strides = array<i32>} : memref<1x1xf32, #tpu.memory_space<vmem>>, vector<1x1xf32>,
    } else {
    }
    %c0 = arith.constant 0 : index
    %c0_1 = arith.constant 0 : index
    %3 = vector.load %arg1[%c0, %c0_1] : memref<128x32xf32, #tpu.memory_space<vmem>>, vector<128x32xf32>
    %c0_2 = arith.constant 0 : index
    %c0_3 = arith.constant 0 : index
    %4 = vector.load %arg2[%c0_2, %c0_3] : memref<128x32xf32, #tpu.memory_space<vmem>>, vector<128x32xf32>
    %c0_4 = arith.constant 0 : index
    %c0_5 = arith.constant 0 : index
    %c0_6 = arith.constant 0 : index
    %5 = vector.load %arg3[%c0_4, %c0_5, %c0_6] : memref<8x128x32xf32, #tpu.memory_space<vmem>>, vector<8x128x32xf32>
    %6 = arith.mulf %3, %4 : vector<128x32xf32>
    %cst = arith.constant dense<0.000000e+00> : vector<128xf32>
    %7 = vector.multi_reduction <add>, %6, %cst [1] : vector<128x32xf32> to vector<128xf32>
    %8 = vector.shape_cast %7 : vector<128xf32> to vector<128x1xf32>
    %cst_7 = arith.constant 14.2857141 : f32
    %9 = vector.broadcast %cst_7 : f32 to vector<128x1xf32>
    %10 = arith.mulf %8, %9 : vector<128x1xf32>
    %11 = math.exp %10 : vector<128x1xf32>
    %12 = vector.shape_cast %3 : vector<128x32xf32> to vector<1x128x32xf32>
    %13 = vector.broadcast %12 : vector<1x128x32xf32> to vector<8x128x32xf32>
    %14 = arith.mulf %5, %13 : vector<8x128x32xf32>
    %cst_8 = arith.constant dense<0.000000e+00> : vector<8x128xf32>
    %15 = vector.multi_reduction <add>, %14, %cst_8 [2] : vector<8x128x32xf32> to vector<8x128xf32>
    %16 = vector.shape_cast %15 : vector<8x128xf32> to vector<8x128x1xf32>
    %17 = vector.shape_cast %4 : vector<128x32xf32> to vector<1x128x32xf32>
    %18 = vector.broadcast %17 : vector<1x128x32xf32> to vector<8x128x32xf32>
    %19 = arith.mulf %5, %18 : vector<8x128x32xf32>
    %cst_9 = arith.constant dense<0.000000e+00> : vector<8x128xf32>
    %20 = vector.multi_reduction <add>, %19, %cst_9 [2] : vector<8x128x32xf32> to vector<8x128xf32>
    %21 = vector.shape_cast %20 : vector<8x128xf32> to vector<8x128x1xf32>
    %cst_10 = arith.constant 14.2857141 : f32
    %22 = vector.broadcast %cst_10 : f32 to vector<8x128x1xf32>
    %23 = arith.mulf %16, %22 : vector<8x128x1xf32>
    %24 = math.exp %23 : vector<8x128x1xf32>
    %cst_11 = arith.constant dense<0.000000e+00> : vector<128x1xf32>
    %25 = vector.multi_reduction <add>, %24, %cst_11 [0] : vector<8x128x1xf32> to vector<128x1xf32>
    %26 = arith.addf %25, %11 : vector<128x1xf32>
    %cst_12 = arith.constant 14.2857141 : f32
    %27 = vector.broadcast %cst_12 : f32 to vector<8x128x1xf32>
    %28 = arith.mulf %21, %27 : vector<8x128x1xf32>
    %29 = math.exp %28 : vector<8x128x1xf32>
    %cst_13 = arith.constant dense<0.000000e+00> : vector<128x1xf32>
    %30 = vector.multi_reduction <add>, %29, %cst_13 [0] : vector<8x128x1xf32> to vector<128x1xf32>
    %31 = arith.addf %30, %11 : vector<128x1xf32>
    %cst_14 = arith.constant 9.99999993E-9 : f32
    %32 = vector.broadcast %cst_14 : f32 to vector<128x1xf32>
    %33 = arith.addf %26, %32 : vector<128x1xf32>
    %34 = arith.divf %11, %33 : vector<128x1xf32>
    %35 = math.log %34 : vector<128x1xf32>
    %cst_15 = arith.constant 0.000000e+00 : f32
    %36 = vector.broadcast %cst_15 : f32 to vector<128x1xf32>
    %37 = arith.subf %36, %35 : vector<128x1xf32>
    %cst_16 = arith.constant 9.99999993E-9 : f32
    %38 = vector.broadcast %cst_16 : f32 to vector<128x1xf32>
    %39 = arith.addf %31, %38 : vector<128x1xf32>
    %40 = arith.divf %11, %39 : vector<128x1xf32>
    %41 = math.log %40 : vector<128x1xf32>
    %cst_17 = arith.constant 0.000000e+00 : f32
    %42 = vector.broadcast %cst_17 : f32 to vector<128x1xf32>
    %43 = arith.subf %42, %41 : vector<128x1xf32>
    %c0_18 = arith.constant 0 : index
    %c0_19 = arith.constant 0 : index
    %44 = vector.load %arg4[%c0_18, %c0_19] : memref<1x1xf32, #tpu.memory_space<vmem>>, vector<1x1xf32>
    %45 = arith.addf %37, %43 : vector<128x1xf32>
    %46 = vector.shape_cast %45 : vector<128x1xf32> to vector<1x128x1xf32>
    %cst_20 = arith.constant dense<0.000000e+00> : vector<1xf32>
    %47 = vector.multi_reduction <add>, %46, %cst_20 [1, 2] : vector<1x128x1xf32> to vector<1xf32>
    %48 = vector.shape_cast %47 : vector<1xf32> to vector<1x1x1xf32>
    %49 = vector.extract %48[0, 0, 0] : f32 from vector<1x1x1xf32>
    %50 = vector.broadcast %49 : f32 to vector<1x1xf32>
    %51 = arith.addf %44, %50 : vector<1x1xf32>
    %c0_21 = arith.constant 0 : index
    %c0_22 = arith.constant 0 : index
    %52 = vector.load %arg4[%c0_21, %c0_22] : memref<1x1xf32, #tpu.memory_space<vmem>>, vector<1x1xf32>
    tpu.vector_store %arg4[%c0_21, %c0_22], %51 {strides = array<i32>} : memref<1x1xf32, #tpu.memory_space<vmem>>, vector<1x1xf32>,
    %c0_i32_23 = arith.constant 0 : i32
    %53 = arith.cmpi eq, %arg0, %c0_i32_23 : i32
    %54 = arith.extui %53 : i1 to i32
    %c0_i32_24 = arith.constant 0 : i32
    %55 = arith.cmpi ne, %54, %c0_i32_24 : i32
    scf.if %55 {
      %c0_25 = arith.constant 0 : index
      %c0_26 = arith.constant 0 : index
      %56 = vector.load %arg4[%c0_25, %c0_26] : memref<1x1xf32, #tpu.memory_space<vmem>>, vector<1x1xf32>
      %cst_27 = arith.constant 7.812500e-03 : f32
      %57 = vector.broadcast %cst_27 : f32 to vector<1x1xf32>
      %58 = arith.mulf %56, %57 : vector<1x1xf32>
      %c0_28 = arith.constant 0 : index
      %c0_29 = arith.constant 0 : index
      %59 = vector.load %arg4[%c0_28, %c0_29] : memref<1x1xf32, #tpu.memory_space<vmem>>, vector<1x1xf32>
      tpu.vector_store %arg4[%c0_28, %c0_29], %58 {strides = array<i32>} : memref<1x1xf32, #tpu.memory_space<vmem>>, vector<1x1xf32>,
    } else {
    }
    return
  }
  func.func @transform_0(%arg0: i32) -> (i32, i32) {
    %c0_i32 = arith.constant 0 : i32
    %c0_i32_0 = arith.constant 0 : i32
    return %arg0, %c0_i32 : i32, i32
  }
  func.func @transform_1(%arg0: i32) -> (i32, i32) {
    %c0_i32 = arith.constant 0 : i32
    %c0_i32_0 = arith.constant 0 : i32
    return %arg0, %c0_i32 : i32, i32
  }
  func.func @transform_2(%arg0: i32) -> (i32, i32, i32) {
    %c0_i32 = arith.constant 0 : i32
    %c0_i32_0 = arith.constant 0 : i32
    %c0_i32_1 = arith.constant 0 : i32
    return %c0_i32, %arg0, %c0_i32_0 : i32, i32, i32
  }
  func.func @transform_3(%arg0: i32) -> (i32, i32) {
    %c0_i32 = arith.constant 0 : i32
    %c0_i32_0 = arith.constant 0 : i32
    %c0_i32_1 = arith.constant 0 : i32
    return %c0_i32, %c0_i32_0 : i32, i32
  }
}

</mosaic_0001>

<llo_original>
// kernel: rnsf_contrastive_loss.4
$region0: #{rnsf_contrastive_loss.4}
  #allocation0 [shape = 'u32[]', space=smem, size = 0x4, offset = 0x4, fixed_abs, tag = 'smem constant byte address 0x4 - core index']
  #allocation1 [shape = 'u32[144,128]{1,0:T(1,128)}', space=vmem, size = 0x12000, scoped, tag = 'internal scratch']
  %s0 = inlined_call_operand.vmem [shape: f32[1,128], index: 0, kind: input, shape index: {}]
  %s1 = inlined_call_operand.vmem [shape: f32[128,1], index: 1, kind: input, shape index: {}]
  %s2 = inlined_call_operand.vmem [shape: f32[128,1], index: 2, kind: input, shape index: {}]
  %s3 = inlined_call_operand.vmem [shape: f32[128,128], index: 3, kind: output, shape index: {}]
  %s4 = sld [smem:[#allocation0]]
  $region22: #{rnsf_contrastive_loss.4} parent=0
    _
  %s6 = ssub.s32 1, %s4
  %s7 = scalar_select 0, %s6, %s4
  // Predicated region
  $region2: #{rnsf_contrastive_loss.4} parent=0 // pred_check
    _
  $region3: #{rnsf_contrastive_loss.4} parent=0 // pred_check_branch
    %9 = sbr.rel (0) target = $region5
  $region4: #{rnsf_contrastive_loss.4} parent=0 // pred_region
    _
  $region5: #{rnsf_contrastive_loss.4} parent=0 // pred_fallthru
    _
  // Predicated region
  $region6: #{rnsf_contrastive_loss.4} parent=0 // pred_check
    _
  $region7: #{rnsf_contrastive_loss.4} parent=0 // pred_check_branch
    %11 = sbr.rel (0) target = $region9
  $region8: #{rnsf_contrastive_loss.4} parent=0 // pred_region
    _
  $region9: #{rnsf_contrastive_loss.4} parent=0 // pred_fallthru
    _
  // Predicated region
  $region10: #{rnsf_contrastive_loss.4} parent=0 // pred_check
    _
  $region11: #{rnsf_contrastive_loss.4} parent=0 // pred_check_branch
    %13 = sbr.rel (0) target = $region13
  $region12: #{rnsf_contrastive_loss.4} parent=0 // pred_region
    _
  $region13: #{rnsf_contrastive_loss.4} parent=0 // pred_fallthru
    _
  %v14 = vld [vmem:[%s0] sm:$0x1]
  %v15 = vld [vmem:[%s1] sm:$0xff]
  %v16 = vld [vmem:[%s1 + $0x8] sm:$0xff]
  %v17 = vld [vmem:[%s1 + $0x10] sm:$0xff]
  %v18 = vld [vmem:[%s1 + $0x18] sm:$0xff]
  %v19 = vld [vmem:[%s1 + $0x20] sm:$0xff]
  %v20 = vld [vmem:[%s1 + $0x28] sm:$0xff]
  %v21 = vld [vmem:[%s1 + $0x30] sm:$0xff]
  %v22 = vld [vmem:[%s1 + $0x38] sm:$0xff]
  %v23 = vld [vmem:[%s1 + $0x40] sm:$0xff]
  %v24 = vld [vmem:[%s1 + $0x48] sm:$0xff]
  %v25 = vld [vmem:[%s1 + $0x50] sm:$0xff]
  %v26 = vld [vmem:[%s1 + $0x58] sm:$0xff]
  %v27 = vld [vmem:[%s1 + $0x60] sm:$0xff]
  %v28 = vld [vmem:[%s1 + $0x68] sm:$0xff]
  %v29 = vld [vmem:[%s1 + $0x70] sm:$0xff]
  %v30 = vld [vmem:[%s1 + $0x78] sm:$0xff]
  %v31 = vld [vmem:[%s2] sm:$0xff]
  %v32 = vld [vmem:[%s2 + $0x8] sm:$0xff]
  %v33 = vld [vmem:[%s2 + $0x10] sm:$0xff]
  %v34 = vld [vmem:[%s2 + $0x18] sm:$0xff]
  %v35 = vld [vmem:[%s2 + $0x20] sm:$0xff]
  %v36 = vld [vmem:[%s2 + $0x28] sm:$0xff]
  %v37 = vld [vmem:[%s2 + $0x30] sm:$0xff]
  %v38 = vld [vmem:[%s2 + $0x38] sm:$0xff]
  %v39 = vld [vmem:[%s2 + $0x40] sm:$0xff]
  %v40 = vld [vmem:[%s2 + $0x48] sm:$0xff]
  %v41 = vld [vmem:[%s2 + $0x50] sm:$0xff]
  %v42 = vld [vmem:[%s2 + $0x58] sm:$0xff]
  %v43 = vld [vmem:[%s2 + $0x60] sm:$0xff]
  %v44 = vld [vmem:[%s2 + $0x68] sm:$0xff]
  %v45 = vld [vmem:[%s2 + $0x70] sm:$0xff]
  %v46 = vld [vmem:[%s2 + $0x78] sm:$0xff]
  %v48 = vlaneseq
  %v49 = vshrl.u32 %v48, 7
  %v50 = vsub.s32 0, %v49
  %v51 = vrot.slane %v14, %v50
  %54 = vset.pattern.permute.xlu0 0
  %55 = vperm.xlu0 %54, %v15
  %v56 = vpop.permute.xlu0 %55
  %59 = vset.pattern.permute.xlu0 0
  %60 = vperm.xlu0 %59, %v16
  %v61 = vpop.permute.xlu0 %60
  %64 = vset.pattern.permute.xlu0 0
  %65 = vperm.xlu0 %64, %v17
  %v66 = vpop.permute.xlu0 %65
  %69 = vset.pattern.permute.xlu0 0
  %70 = vperm.xlu0 %69, %v18
  %v71 = vpop.permute.xlu0 %70
  %74 = vset.pattern.permute.xlu0 0
  %75 = vperm.xlu0 %74, %v19
  %v76 = vpop.permute.xlu0 %75
  %79 = vset.pattern.permute.xlu0 0
  %80 = vperm.xlu0 %79, %v20
  %v81 = vpop.permute.xlu0 %80
  %84 = vset.pattern.permute.xlu0 0
  %85 = vperm.xlu0 %84, %v21
  %v86 = vpop.permute.xlu0 %85
  %89 = vset.pattern.permute.xlu0 0
  %90 = vperm.xlu0 %89, %v22
  %v91 = vpop.permute.xlu0 %90
  %94 = vset.pattern.permute.xlu0 0
  %95 = vperm.xlu0 %94, %v23
  %v96 = vpop.permute.xlu0 %95
  %99 = vset.pattern.permute.xlu0 0
  %100 = vperm.xlu0 %99, %v24
  %v101 = vpop.permute.xlu0 %100
  %104 = vset.pattern.permute.xlu0 0
  %105 = vperm.xlu0 %104, %v25
  %v106 = vpop.permute.xlu0 %105
  %109 = vset.pattern.permute.xlu0 0
  %110 = vperm.xlu0 %109, %v26
  %v111 = vpop.permute.xlu0 %110
  %114 = vset.pattern.permute.xlu0 0
  %115 = vperm.xlu0 %114, %v27
  %v116 = vpop.permute.xlu0 %115
  %119 = vset.pattern.permute.xlu0 0
  %120 = vperm.xlu0 %119, %v28
  %v121 = vpop.permute.xlu0 %120
  %124 = vset.pattern.permute.xlu0 0
  %125 = vperm.xlu0 %124, %v29
  %v126 = vpop.permute.xlu0 %125
  %129 = vset.pattern.permute.xlu0 0
  %130 = vperm.xlu0 %129, %v30
  %v131 = vpop.permute.xlu0 %130
  %vm133 = vcmp.ne.f32.partialorder %v51, %v56
  %vm134 = vcmp.ne.f32.partialorder %v51, %v61
  %vm135 = vcmp.ne.f32.partialorder %v51, %v66
  %vm136 = vcmp.ne.f32.partialorder %v51, %v71
  %vm137 = vcmp.ne.f32.partialorder %v51, %v76
  %vm138 = vcmp.ne.f32.partialorder %v51, %v81
  %vm139 = vcmp.ne.f32.partialorder %v51, %v86
  %vm140 = vcmp.ne.f32.partialorder %v51, %v91
  %vm141 = vcmp.ne.f32.partialorder %v51, %v96
  %vm142 = vcmp.ne.f32.partialorder %v51, %v101
  %vm143 = vcmp.ne.f32.partialorder %v51, %v106
  %vm144 = vcmp.ne.f32.partialorder %v51, %v111
  %vm145 = vcmp.ne.f32.partialorder %v51, %v116
  %vm146 = vcmp.ne.f32.partialorder %v51, %v121
  %vm147 = vcmp.ne.f32.partialorder %v51, %v126
  %vm148 = vcmp.ne.f32.partialorder %v51, %v131
  %v149 = vsel %vm133, 1, 0
  %v150 = vsel %vm134, 1, 0
  %v151 = vsel %vm135, 1, 0
  %v152 = vsel %vm136, 1, 0
  %v153 = vsel %vm137, 1, 0
  %v154 = vsel %vm138, 1, 0
  %v155 = vsel %vm139, 1, 0
  %v156 = vsel %vm140, 1, 0
  %v157 = vsel %vm141, 1, 0
  %v158 = vsel %vm142, 1, 0
  %v159 = vsel %vm143, 1, 0
  %v160 = vsel %vm144, 1, 0
  %v161 = vsel %vm145, 1, 0
  %v162 = vsel %vm146, 1, 0
  %v163 = vsel %vm147, 1, 0
  %v164 = vsel %vm148, 1, 0
  %v165 = vcvt.s32.f32 %v149
  %v166 = vcvt.s32.f32 %v150
  %v167 = vcvt.s32.f32 %v151
  %v168 = vcvt.s32.f32 %v152
  %v169 = vcvt.s32.f32 %v153
  %v170 = vcvt.s32.f32 %v154
  %v171 = vcvt.s32.f32 %v155
  %v172 = vcvt.s32.f32 %v156
  %v173 = vcvt.s32.f32 %v157
  %v174 = vcvt.s32.f32 %v158
  %v175 = vcvt.s32.f32 %v159
  %v176 = vcvt.s32.f32 %v160
  %v177 = vcvt.s32.f32 %v161
  %v178 = vcvt.s32.f32 %v162
  %v179 = vcvt.s32.f32 %v163
  %v180 = vcvt.s32.f32 %v164
  %182 = vset.pattern.permute.xlu0 0
  %183 = vperm.xlu0 %182, %v31
  %v184 = vpop.permute.xlu0 %183
  %187 = vset.pattern.permute.xlu0 0
  %188 = vperm.xlu0 %187, %v32
  %v189 = vpop.permute.xlu0 %188
  %192 = vset.pattern.permute.xlu0 0
  %193 = vperm.xlu0 %192, %v33
  %v194 = vpop.permute.xlu0 %193
  %197 = vset.pattern.permute.xlu0 0
  %198 = vperm.xlu0 %197, %v34
  %v199 = vpop.permute.xlu0 %198
  %202 = vset.pattern.permute.xlu0 0
  %203 = vperm.xlu0 %202, %v35
  %v204 = vpop.permute.xlu0 %203
  %207 = vset.pattern.permute.xlu0 0
  %208 = vperm.xlu0 %207, %v36
  %v209 = vpop.permute.xlu0 %208
  %212 = vset.pattern.permute.xlu0 0
  %213 = vperm.xlu0 %212, %v37
  %v214 = vpop.permute.xlu0 %213
  %217 = vset.pattern.permute.xlu0 0
  %218 = vperm.xlu0 %217, %v38
  %v219 = vpop.permute.xlu0 %218
  %222 = vset.pattern.permute.xlu0 0
  %223 = vperm.xlu0 %222, %v39
  %v224 = vpop.permute.xlu0 %223
  %227 = vset.pattern.permute.xlu0 0
  %228 = vperm.xlu0 %227, %v40
  %v229 = vpop.permute.xlu0 %228
  %232 = vset.pattern.permute.xlu0 0
  %233 = vperm.xlu0 %232, %v41
  %v234 = vpop.permute.xlu0 %233
  %237 = vset.pattern.permute.xlu0 0
  %238 = vperm.xlu0 %237, %v42
  %v239 = vpop.permute.xlu0 %238
  %242 = vset.pattern.permute.xlu0 0
  %243 = vperm.xlu0 %242, %v43
  %v244 = vpop.permute.xlu0 %243
  %247 = vset.pattern.permute.xlu0 0
  %248 = vperm.xlu0 %247, %v44
  %v249 = vpop.permute.xlu0 %248
  %252 = vset.pattern.permute.xlu0 0
  %253 = vperm.xlu0 %252, %v45
  %v254 = vpop.permute.xlu0 %253
  %257 = vset.pattern.permute.xlu0 0
  %258 = vperm.xlu0 %257, %v46
  %v259 = vpop.permute.xlu0 %258
  %v261 = vmul.f32 %v165, %v184
  %v262 = vmul.f32 %v166, %v189
  %v263 = vmul.f32 %v167, %v194
  %v264 = vmul.f32 %v168, %v199
  %v265 = vmul.f32 %v169, %v204
  %v266 = vmul.f32 %v170, %v209
  %v267 = vmul.f32 %v171, %v214
  %v268 = vmul.f32 %v172, %v219
  %v269 = vmul.f32 %v173, %v224
  %v270 = vmul.f32 %v174, %v229
  %v271 = vmul.f32 %v175, %v234
  %v272 = vmul.f32 %v176, %v239
  %v273 = vmul.f32 %v177, %v244
  %v274 = vmul.f32 %v178, %v249
  %v275 = vmul.f32 %v179, %v254
  %v276 = vmul.f32 %v180, %v259
  %277 = vst [vmem:[%s3] sm:$0xff] %v261
  %278 = vst [vmem:[%s3 + $0x8] sm:$0xff] %v262
  %279 = vst [vmem:[%s3 + $0x10] sm:$0xff] %v263
  %280 = vst [vmem:[%s3 + $0x18] sm:$0xff] %v264
  %281 = vst [vmem:[%s3 + $0x20] sm:$0xff] %v265
  %282 = vst [vmem:[%s3 + $0x28] sm:$0xff] %v266
  %283 = vst [vmem:[%s3 + $0x30] sm:$0xff] %v267
  %284 = vst [vmem:[%s3 + $0x38] sm:$0xff] %v268
  %285 = vst [vmem:[%s3 + $0x40] sm:$0xff] %v269
  %286 = vst [vmem:[%s3 + $0x48] sm:$0xff] %v270
  %287 = vst [vmem:[%s3 + $0x50] sm:$0xff] %v271
  %288 = vst [vmem:[%s3 + $0x58] sm:$0xff] %v272
  %289 = vst [vmem:[%s3 + $0x60] sm:$0xff] %v273
  %290 = vst [vmem:[%s3 + $0x68] sm:$0xff] %v274
  %291 = vst [vmem:[%s3 + $0x70] sm:$0xff] %v275
  %292 = vst [vmem:[%s3 + $0x78] sm:$0xff] %v276
  // Predicated region
  $region14: #{rnsf_contrastive_loss.4} parent=0 // pred_check
    _
  $region15: #{rnsf_contrastive_loss.4} parent=0 // pred_check_branch
    %294 = sbr.rel (0) target = $region17
  $region16: #{rnsf_contrastive_loss.4} parent=0 // pred_region
    _
  $region17: #{rnsf_contrastive_loss.4} parent=0 // pred_fallthru
    _
  // Predicated region
  $region18: #{rnsf_contrastive_loss.4} parent=0 // pred_check
    _
  $region19: #{rnsf_contrastive_loss.4} parent=0 // pred_check_branch
    %296 = sbr.rel (0) target = $region21
  $region20: #{rnsf_contrastive_loss.4} parent=0 // pred_region
    _
  $region21: #{rnsf_contrastive_loss.4} parent=0 // pred_fallthru
    _

// kernel: rnsf_contrastive_loss.3
$region0: #{rnsf_contrastive_loss.3}
  #allocation0 [shape = 'u32[]', space=smem, size = 0x4, offset = 0x4, fixed_abs, tag = 'smem constant byte address 0x4 - core index']
  #allocation1 [shape = 'u32[144,128]{1,0:T(1,128)}', space=vmem, size = 0x12000, scoped, tag = 'internal scratch']
  %s0 = inlined_call_operand.vmem [shape: f32[128,32], index: 0, kind: input, shape index: {}]
  %s1 = inlined_call_operand.vmem [shape: f32[128,32], index: 1, kind: input, shape index: {}]
  %s2 = inlined_call_operand.vmem [shape: f32[128,32], index: 2, kind: input, shape index: {}]
  %s3 = inlined_call_operand.vmem [shape: f32[128,32], index: 3, kind: output, shape index: {0}]
  %s4 = inlined_call_operand.vmem [shape: f32[128,32], index: 4, kind: output, shape index: {1}]
  %s5 = inlined_call_operand.vmem [shape: f32[128,32], index: 5, kind: output, shape index: {2}]
  %6 = xla_tuple %s3, %s4, %s5
  %s7 = sld [smem:[#allocation0]]
  $region38: #{rnsf_contrastive_loss.3} parent=0
    _
  %s9 = ssub.s32 1, %s7
  %s10 = scalar_select 0, %s9, %s7
  // Predicated region
  $region2: #{rnsf_contrastive_loss.3} parent=0 // pred_check
    _
  $region3: #{rnsf_contrastive_loss.3} parent=0 // pred_check_branch
    %12 = sbr.rel (0) target = $region5
  $region4: #{rnsf_contrastive_loss.3} parent=0 // pred_region
    _
  $region5: #{rnsf_contrastive_loss.3} parent=0 // pred_fallthru
    _
  // Predicated region
  $region6: #{rnsf_contrastive_loss.3} parent=0 // pred_check
    _
  $region7: #{rnsf_contrastive_loss.3} parent=0 // pred_check_branch
    %14 = sbr.rel (0) target = $region9
  $region8: #{rnsf_contrastive_loss.3} parent=0 // pred_region
    _
  $region9: #{rnsf_contrastive_loss.3} parent=0 // pred_fallthru
    _
  // Predicated region
  $region10: #{rnsf_contrastive_loss.3} parent=0 // pred_check
    _
  $region11: #{rnsf_contrastive_loss.3} parent=0 // pred_check_branch
    %16 = sbr.rel (0) target = $region13
  $region12: #{rnsf_contrastive_loss.3} parent=0 // pred_region
    _
  $region13: #{rnsf_contrastive_loss.3} parent=0 // pred_fallthru
    _
  %v17 = vld [vmem:[%s0] sm:$0xff]
  %v18 = vld [vmem:[%s0 + $0x8] sm:$0xff]
  %v19 = vld [vmem:[%s0 + $0x10] sm:$0xff]
  %v20 = vld [vmem:[%s0 + $0x18] sm:$0xff]
  %v21 = vld [vmem:[%s0 + $0x20] sm:$0xff]
  %v22 = vld [vmem:[%s0 + $0x28] sm:$0xff]
  %v23 = vld [vmem:[%s0 + $0x30] sm:$0xff]
  %v24 = vld [vmem:[%s0 + $0x38] sm:$0xff]
  %v25 = vld [vmem:[%s0 + $0x40] sm:$0xff]
  %v26 = vld [vmem:[%s0 + $0x48] sm:$0xff]
  %v27 = vld [vmem:[%s0 + $0x50] sm:$0xff]
  %v28 = vld [vmem:[%s0 + $0x58] sm:$0xff]
  %v29 = vld [vmem:[%s0 + $0x60] sm:$0xff]
  %v30 = vld [vmem:[%s0 + $0x68] sm:$0xff]
  %v31 = vld [vmem:[%s0 + $0x70] sm:$0xff]
  %v32 = vld [vmem:[%s0 + $0x78] sm:$0xff]
  %v33 = vmul.f32 %v17, %v17
  %v34 = vmul.f32 %v18, %v18
  %v35 = vmul.f32 %v19, %v19
  %v36 = vmul.f32 %v20, %v20
  %v37 = vmul.f32 %v21, %v21
  %v38 = vmul.f32 %v22, %v22
  %v39 = vmul.f32 %v23, %v23
  %v40 = vmul.f32 %v24, %v24
  %v41 = vmul.f32 %v25, %v25
  %v42 = vmul.f32 %v26, %v26
  %v43 = vmul.f32 %v27, %v27
  %v44 = vmul.f32 %v28, %v28
  %v45 = vmul.f32 %v29, %v29
  %v46 = vmul.f32 %v30, %v30
  %v47 = vmul.f32 %v31, %v31
  %v48 = vmul.f32 %v32, %v32
  %vm49 = vcmask 261120
  %v50 = vsel %vm49, %v33, 0.0
  %51 = vadd.xlane.f32.xlu0 %v50
  %v52 = vpop.xlane.xlu0 %51
  %v53 = vsel %vm49, %v34, 0.0
  %54 = vadd.xlane.f32.xlu0 %v53
  %v55 = vpop.xlane.xlu0 %54
  %v56 = vsel %vm49, %v35, 0.0
  %57 = vadd.xlane.f32.xlu0 %v56
  %v58 = vpop.xlane.xlu0 %57
  %v59 = vsel %vm49, %v36, 0.0
  %60 = vadd.xlane.f32.xlu0 %v59
  %v61 = vpop.xlane.xlu0 %60
  %v62 = vsel %vm49, %v37, 0.0
  %63 = vadd.xlane.f32.xlu0 %v62
  %v64 = vpop.xlane.xlu0 %63
  %v65 = vsel %vm49, %v38, 0.0
  %66 = vadd.xlane.f32.xlu0 %v65
  %v67 = vpop.xlane.xlu0 %66
  %v68 = vsel %vm49, %v39, 0.0
  %69 = vadd.xlane.f32.xlu0 %v68
  %v70 = vpop.xlane.xlu0 %69
  %v71 = vsel %vm49, %v40, 0.0
  %72 = vadd.xlane.f32.xlu0 %v71
  %v73 = vpop.xlane.xlu0 %72
  %v74 = vsel %vm49, %v41, 0.0
  %75 = vadd.xlane.f32.xlu0 %v74
  %v76 = vpop.xlane.xlu0 %75
  %v77 = vsel %vm49, %v42, 0.0
  %78 = vadd.xlane.f32.xlu0 %v77
  %v79 = vpop.xlane.xlu0 %78
  %v80 = vsel %vm49, %v43, 0.0
  %81 = vadd.xlane.f32.xlu0 %v80
  %v82 = vpop.xlane.xlu0 %81
  %v83 = vsel %vm49, %v44, 0.0
  %84 = vadd.xlane.f32.xlu0 %v83
  %v85 = vpop.xlane.xlu0 %84
  %v86 = vsel %vm49, %v45, 0.0
  %87 = vadd.xlane.f32.xlu0 %v86
  %v88 = vpop.xlane.xlu0 %87
  %v89 = vsel %vm49, %v46, 0.0
  %90 = vadd.xlane.f32.xlu0 %v89
  %v91 = vpop.xlane.xlu0 %90
  %v92 = vsel %vm49, %v47, 0.0
  %93 = vadd.xlane.f32.xlu0 %v92
  %v94 = vpop.xlane.xlu0 %93
  %v95 = vsel %vm49, %v48, 0.0
  %96 = vadd.xlane.f32.xlu0 %v95
  %v97 = vpop.xlane.xlu0 %96
  %v98 = vrsqrt.pop %v52
  %v99 = vmul.f32 %v52, %v98
  %vm100 = vcmp.eq.f32.partialorder %v52, inf
  %v101 = vsel %vm100, %v52, %v99
  %vm102 = vcmp.eq.f32.partialorder %v52, 0.0
  %v103 = vand.u32 %v52, 2147483648
  %v104 = vsel %vm102, %v103, %v101
  %v105 = vrsqrt.pop %v55
  %v106 = vmul.f32 %v55, %v105
  %vm107 = vcmp.eq.f32.partialorder %v55, inf
  %v108 = vsel %vm107, %v55, %v106
  %vm109 = vcmp.eq.f32.partialorder %v55, 0.0
  %v110 = vand.u32 %v55, 2147483648
  %v111 = vsel %vm109, %v110, %v108
  %v112 = vrsqrt.pop %v58
  %v113 = vmul.f32 %v58, %v112
  %vm114 = vcmp.eq.f32.partialorder %v58, inf
  %v115 = vsel %vm114, %v58, %v113
  %vm116 = vcmp.eq.f32.partialorder %v58, 0.0
  %v117 = vand.u32 %v58, 2147483648
  %v118 = vsel %vm116, %v117, %v115
  %v119 = vrsqrt.pop %v61
  %v120 = vmul.f32 %v61, %v119
  %vm121 = vcmp.eq.f32.partialorder %v61, inf
  %v122 = vsel %vm121, %v61, %v120
  %vm123 = vcmp.eq.f32.partialorder %v61, 0.0
  %v124 = vand.u32 %v61, 2147483648
  %v125 = vsel %vm123, %v124, %v122
  %v126 = vrsqrt.pop %v64
  %v127 = vmul.f32 %v64, %v126
  %vm128 = vcmp.eq.f32.partialorder %v64, inf
  %v129 = vsel %vm128, %v64, %v127
  %vm130 = vcmp.eq.f32.partialorder %v64, 0.0
  %v131 = vand.u32 %v64, 2147483648
  %v132 = vsel %vm130, %v131, %v129
  %v133 = vrsqrt.pop %v67
  %v134 = vmul.f32 %v67, %v133
  %vm135 = vcmp.eq.f32.partialorder %v67, inf
  %v136 = vsel %vm135, %v67, %v134
  %vm137 = vcmp.eq.f32.partialorder %v67, 0.0
  %v138 = vand.u32 %v67, 2147483648
  %v139 = vsel %vm137, %v138, %v136
  %v140 = vrsqrt.pop %v70
  %v141 = vmul.f32 %v70, %v140
  %vm142 = vcmp.eq.f32.partialorder %v70, inf
  %v143 = vsel %vm142, %v70, %v141
  %vm144 = vcmp.eq.f32.partialorder %v70, 0.0
  %v145 = vand.u32 %v70, 2147483648
  %v146 = vsel %vm144, %v145, %v143
  %v147 = vrsqrt.pop %v73
  %v148 = vmul.f32 %v73, %v147
  %vm149 = vcmp.eq.f32.partialorder %v73, inf
  %v150 = vsel %vm149, %v73, %v148
  %vm151 = vcmp.eq.f32.partialorder %v73, 0.0
  %v152 = vand.u32 %v73, 2147483648
  %v153 = vsel %vm151, %v152, %v150
  %v154 = vrsqrt.pop %v76
  %v155 = vmul.f32 %v76, %v154
  %vm156 = vcmp.eq.f32.partialorder %v76, inf
  %v157 = vsel %vm156, %v76, %v155
  %vm158 = vcmp.eq.f32.partialorder %v76, 0.0
  %v159 = vand.u32 %v76, 2147483648
  %v160 = vsel %vm158, %v159, %v157
  %v161 = vrsqrt.pop %v79
  %v162 = vmul.f32 %v79, %v161
  %vm163 = vcmp.eq.f32.partialorder %v79, inf
  %v164 = vsel %vm163, %v79, %v162
  %vm165 = vcmp.eq.f32.partialorder %v79, 0.0
  %v166 = vand.u32 %v79, 2147483648
  %v167 = vsel %vm165, %v166, %v164
  %v168 = vrsqrt.pop %v82
  %v169 = vmul.f32 %v82, %v168
  %vm170 = vcmp.eq.f32.partialorder %v82, inf
  %v171 = vsel %vm170, %v82, %v169
  %vm172 = vcmp.eq.f32.partialorder %v82, 0.0
  %v173 = vand.u32 %v82, 2147483648
  %v174 = vsel %vm172, %v173, %v171
  %v175 = vrsqrt.pop %v85
  %v176 = vmul.f32 %v85, %v175
  %vm177 = vcmp.eq.f32.partialorder %v85, inf
  %v178 = vsel %vm177, %v85, %v176
  %vm179 = vcmp.eq.f32.partialorder %v85, 0.0
  %v180 = vand.u32 %v85, 2147483648
  %v181 = vsel %vm179, %v180, %v178
  %v182 = vrsqrt.pop %v88
  %v183 = vmul.f32 %v88, %v182
  %vm184 = vcmp.eq.f32.partialorder %v88, inf
  %v185 = vsel %vm184, %v88, %v183
  %vm186 = vcmp.eq.f32.partialorder %v88, 0.0
  %v187 = vand.u32 %v88, 2147483648
  %v188 = vsel %vm186, %v187, %v185
  %v189 = vrsqrt.pop %v91
  %v190 = vmul.f32 %v91, %v189
  %vm191 = vcmp.eq.f32.partialorder %v91, inf
  %v192 = vsel %vm191, %v91, %v190
  %vm193 = vcmp.eq.f32.partialorder %v91, 0.0
  %v194 = vand.u32 %v91, 2147483648
  %v195 = vsel %vm193, %v194, %v192
  %v196 = vrsqrt.pop %v94
  %v197 = vmul.f32 %v94, %v196
  %vm198 = vcmp.eq.f32.partialorder %v94, inf
  %v199 = vsel %vm198, %v94, %v197
  %vm200 = vcmp.eq.f32.partialorder %v94, 0.0
  %v201 = vand.u32 %v94, 2147483648
  %v202 = vsel %vm200, %v201, %v199
  %v203 = vrsqrt.pop %v97
  %v204 = vmul.f32 %v97, %v203
  %vm205 = vcmp.eq.f32.partialorder %v97, inf
  %v206 = vsel %vm205, %v97, %v204
  %vm207 = vcmp.eq.f32.partialorder %v97, 0.0
  %v208 = vand.u32 %v97, 2147483648
  %v209 = vsel %vm207, %v208, %v206
  %v210 = vmax.f32 %v104, 1e-12
  %v211 = vmax.f32 %v111, 1e-12
  %v212 = vmax.f32 %v118, 1e-12
  %v213 = vmax.f32 %v125, 1e-12
  %v214 = vmax.f32 %v132, 1e-12
  %v215 = vmax.f32 %v139, 1e-12
  %v216 = vmax.f32 %v146, 1e-12
  %v217 = vmax.f32 %v153, 1e-12
  %v218 = vmax.f32 %v160, 1e-12
  %v219 = vmax.f32 %v167, 1e-12
  %v220 = vmax.f32 %v174, 1e-12
  %v221 = vmax.f32 %v181, 1e-12
  %v222 = vmax.f32 %v188, 1e-12
  %v223 = vmax.f32 %v195, 1e-12
  %v224 = vmax.f32 %v202, 1e-12
  %v225 = vmax.f32 %v209, 1e-12
  %v226 = vrcp.pop %v210
  %v227 = vmul.f32 %v17, %v226
  %v228 = vrcp.pop %v211
  %v229 = vmul.f32 %v18, %v228
  %v230 = vrcp.pop %v212
  %v231 = vmul.f32 %v19, %v230
  %v232 = vrcp.pop %v213
  %v233 = vmul.f32 %v20, %v232
  %v234 = vrcp.pop %v214
  %v235 = vmul.f32 %v21, %v234
  %v236 = vrcp.pop %v215
  %v237 = vmul.f32 %v22, %v236
  %v238 = vrcp.pop %v216
  %v239 = vmul.f32 %v23, %v238
  %v240 = vrcp.pop %v217
  %v241 = vmul.f32 %v24, %v240
  %v242 = vrcp.pop %v218
  %v243 = vmul.f32 %v25, %v242
  %v244 = vrcp.pop %v219
  %v245 = vmul.f32 %v26, %v244
  %v246 = vrcp.pop %v220
  %v247 = vmul.f32 %v27, %v246
  %v248 = vrcp.pop %v221
  %v249 = vmul.f32 %v28, %v248
  %v250 = vrcp.pop %v222
  %v251 = vmul.f32 %v29, %v250
  %v252 = vrcp.pop %v223
  %v253 = vmul.f32 %v30, %v252
  %v254 = vrcp.pop %v224
  %v255 = vmul.f32 %v31, %v254
  %v256 = vrcp.pop %v225
  %v257 = vmul.f32 %v32, %v256
  %258 = vst.msk [vmem:[%s3] sm:$0xff] %vm49, %v227
  %259 = vst.msk [vmem:[%s3 + $0x8] sm:$0xff] %vm49, %v229
  %260 = vst.msk [vmem:[%s3 + $0x10] sm:$0xff] %vm49, %v231
  %261 = vst.msk [vmem:[%s3 + $0x18] sm:$0xff] %vm49, %v233
  %262 = vst.msk [vmem:[%s3 + $0x20] sm:$0xff] %vm49, %v235
  %263 = vst.msk [vmem:[%s3 + $0x28] sm:$0xff] %vm49, %v237
  %264 = vst.msk [vmem:[%s3 + $0x30] sm:$0xff] %vm49, %v239
  %265 = vst.msk [vmem:[%s3 + $0x38] sm:$0xff] %vm49, %v241
  %266 = vst.msk [vmem:[%s3 + $0x40] sm:$0xff] %vm49, %v243
  %267 = vst.msk [vmem:[%s3 + $0x48] sm:$0xff] %vm49, %v245
  %268 = vst.msk [vmem:[%s3 + $0x50] sm:$0xff] %vm49, %v247
  %269 = vst.msk [vmem:[%s3 + $0x58] sm:$0xff] %vm49, %v249
  %270 = vst.msk [vmem:[%s3 + $0x60] sm:$0xff] %vm49, %v251
  %271 = vst.msk [vmem:[%s3 + $0x68] sm:$0xff] %vm49, %v253
  %272 = vst.msk [vmem:[%s3 + $0x70] sm:$0xff] %vm49, %v255
  %273 = vst.msk [vmem:[%s3 + $0x78] sm:$0xff] %vm49, %v257
  %v274 = vld [vmem:[%s1] sm:$0xff]
  %v275 = vld [vmem:[%s1 + $0x8] sm:$0xff]
  %v276 = vld [vmem:[%s1 + $0x10] sm:$0xff]
  %v277 = vld [vmem:[%s1 + $0x18] sm:$0xff]
  %v278 = vld [vmem:[%s1 + $0x20] sm:$0xff]
  %v279 = vld [vmem:[%s1 + $0x28] sm:$0xff]
  %v280 = vld [vmem:[%s1 + $0x30] sm:$0xff]
  %v281 = vld [vmem:[%s1 + $0x38] sm:$0xff]
  %v282 = vld [vmem:[%s1 + $0x40] sm:$0xff]
  %v283 = vld [vmem:[%s1 + $0x48] sm:$0xff]
  %v284 = vld [vmem:[%s1 + $0x50] sm:$0xff]
  %v285 = vld [vmem:[%s1 + $0x58] sm:$0xff]
  %v286 = vld [vmem:[%s1 + $0x60] sm:$0xff]
  %v287 = vld [vmem:[%s1 + $0x68] sm:$0xff]
  %v288 = vld [vmem:[%s1 + $0x70] sm:$0xff]
  %v289 = vld [vmem:[%s1 + $0x78] sm:$0xff]
  %v290 = vmul.f32 %v274, %v274
  %v291 = vmul.f32 %v275, %v275
  %v292 = vmul.f32 %v276, %v276
  %v293 = vmul.f32 %v277, %v277
  %v294 = vmul.f32 %v278, %v278
  %v295 = vmul.f32 %v279, %v279
  %v296 = vmul.f32 %v280, %v280
  %v297 = vmul.f32 %v281, %v281
  %v298 = vmul.f32 %v282, %v282
  %v299 = vmul.f32 %v283, %v283
  %v300 = vmul.f32 %v284, %v284
  %v301 = vmul.f32 %v285, %v285
  %v302 = vmul.f32 %v286, %v286
  %v303 = vmul.f32 %v287, %v287
  %v304 = vmul.f32 %v288, %v288
  %v305 = vmul.f32 %v289, %v289
  %v306 = vsel %vm49, %v290, 0.0
  %307 = vadd.xlane.f32.xlu0 %v306
  %v308 = vpop.xlane.xlu0 %307
  %v309 = vsel %vm49, %v291, 0.0
  %310 = vadd.xlane.f32.xlu0 %v309
  %v311 = vpop.xlane.xlu0 %310
  %v312 = vsel %vm49, %v292, 0.0
  %313 = vadd.xlane.f32.xlu0 %v312
  %v314 = vpop.xlane.xlu0 %313
  %v315 = vsel %vm49, %v293, 0.0
  %316 = vadd.xlane.f32.xlu0 %v315
  %v317 = vpop.xlane.xlu0 %316
  %v318 = vsel %vm49, %v294, 0.0
  %319 = vadd.xlane.f32.xlu0 %v318
  %v320 = vpop.xlane.xlu0 %319
  %v321 = vsel %vm49, %v295, 0.0
  %322 = vadd.xlane.f32.xlu0 %v321
  %v323 = vpop.xlane.xlu0 %322
  %v324 = vsel %vm49, %v296, 0.0
  %325 = vadd.xlane.f32.xlu0 %v324
  %v326 = vpop.xlane.xlu0 %325
  %v327 = vsel %vm49, %v297, 0.0
  %328 = vadd.xlane.f32.xlu0 %v327
  %v329 = vpop.xlane.xlu0 %328
  %v330 = vsel %vm49, %v298, 0.0
  %331 = vadd.xlane.f32.xlu0 %v330
  %v332 = vpop.xlane.xlu0 %331
  %v333 = vsel %vm49, %v299, 0.0
  %334 = vadd.xlane.f32.xlu0 %v333
  %v335 = vpop.xlane.xlu0 %334
  %v336 = vsel %vm49, %v300, 0.0
  %337 = vadd.xlane.f32.xlu0 %v336
  %v338 = vpop.xlane.xlu0 %337
  %v339 = vsel %vm49, %v301, 0.0
  %340 = vadd.xlane.f32.xlu0 %v339
  %v341 = vpop.xlane.xlu0 %340
  %v342 = vsel %vm49, %v302, 0.0
  %343 = vadd.xlane.f32.xlu0 %v342
  %v344 = vpop.xlane.xlu0 %343
  %v345 = vsel %vm49, %v303, 0.0
  %346 = vadd.xlane.f32.xlu0 %v345
  %v347 = vpop.xlane.xlu0 %346
  %v348 = vsel %vm49, %v304, 0.0
  %349 = vadd.xlane.f32.xlu0 %v348
  %v350 = vpop.xlane.xlu0 %349
  %v351 = vsel %vm49, %v305, 0.0
  %352 = vadd.xlane.f32.xlu0 %v351
  %v353 = vpop.xlane.xlu0 %352
  %v354 = vrsqrt.pop %v308
  %v355 = vmul.f32 %v308, %v354
  %vm356 = vcmp.eq.f32.partialorder %v308, inf
  %v357 = vsel %vm356, %v308, %v355
  %vm358 = vcmp.eq.f32.partialorder %v308, 0.0
  %v359 = vand.u32 %v308, 2147483648
  %v360 = vsel %vm358, %v359, %v357
  %v361 = vrsqrt.pop %v311
  %v362 = vmul.f32 %v311, %v361
  %vm363 = vcmp.eq.f32.partialorder %v311, inf
  %v364 = vsel %vm363, %v311, %v362
  %vm365 = vcmp.eq.f32.partialorder %v311, 0.0
  %v366 = vand.u32 %v311, 2147483648
  %v367 = vsel %vm365, %v366, %v364
  %v368 = vrsqrt.pop %v314
  %v369 = vmul.f32 %v314, %v368
  %vm370 = vcmp.eq.f32.partialorder %v314, inf
  %v371 = vsel %vm370, %v314, %v369
  %vm372 = vcmp.eq.f32.partialorder %v314, 0.0
  %v373 = vand.u32 %v314, 2147483648
  %v374 = vsel %vm372, %v373, %v371
  %v375 = vrsqrt.pop %v317
  %v376 = vmul.f32 %v317, %v375
  %vm377 = vcmp.eq.f32.partialorder %v317, inf
  %v378 = vsel %vm377, %v317, %v376
  %vm379 = vcmp.eq.f32.partialorder %v317, 0.0
  %v380 = vand.u32 %v317, 2147483648
  %v381 = vsel %vm379, %v380, %v378
  %v382 = vrsqrt.pop %v320
  %v383 = vmul.f32 %v320, %v382
  %vm384 = vcmp.eq.f32.partialorder %v320, inf
  %v385 = vsel %vm384, %v320, %v383
  %vm386 = vcmp.eq.f32.partialorder %v320, 0.0
  %v387 = vand.u32 %v320, 2147483648
  %v388 = vsel %vm386, %v387, %v385
  %v389 = vrsqrt.pop %v323
  %v390 = vmul.f32 %v323, %v389
  %vm391 = vcmp.eq.f32.partialorder %v323, inf
  %v392 = vsel %vm391, %v323, %v390
  %vm393 = vcmp.eq.f32.partialorder %v323, 0.0
  %v394 = vand.u32 %v323, 2147483648
  %v395 = vsel %vm393, %v394, %v392
  %v396 = vrsqrt.pop %v326
  %v397 = vmul.f32 %v326, %v396
  %vm398 = vcmp.eq.f32.partialorder %v326, inf
  %v399 = vsel %vm398, %v326, %v397
  %vm400 = vcmp.eq.f32.partialorder %v326, 0.0
  %v401 = vand.u32 %v326, 2147483648
  %v402 = vsel %vm400, %v401, %v399
  %v403 = vrsqrt.pop %v329
  %v404 = vmul.f32 %v329, %v403
  %vm405 = vcmp.eq.f32.partialorder %v329, inf
  %v406 = vsel %vm405, %v329, %v404
  %vm407 = vcmp.eq.f32.partialorder %v329, 0.0
  %v408 = vand.u32 %v329, 2147483648
  %v409 = vsel %vm407, %v408, %v406
  %v410 = vrsqrt.pop %v332
  %v411 = vmul.f32 %v332, %v410
  %vm412 = vcmp.eq.f32.partialorder %v332, inf
  %v413 = vsel %vm412, %v332, %v411
  %vm414 = vcmp.eq.f32.partialorder %v332, 0.0
  %v415 = vand.u32 %v332, 2147483648
  %v416 = vsel %vm414, %v415, %v413
  %v417 = vrsqrt.pop %v335
  %v418 = vmul.f32 %v335, %v417
  %vm419 = vcmp.eq.f32.partialorder %v335, inf
  %v420 = vsel %vm419, %v335, %v418
  %vm421 = vcmp.eq.f32.partialorder %v335, 0.0
  %v422 = vand.u32 %v335, 2147483648
  %v423 = vsel %vm421, %v422, %v420
  %v424 = vrsqrt.pop %v338
  %v425 = vmul.f32 %v338, %v424
  %vm426 = vcmp.eq.f32.partialorder %v338, inf
  %v427 = vsel %vm426, %v338, %v425
  %vm428 = vcmp.eq.f32.partialorder %v338, 0.0
  %v429 = vand.u32 %v338, 2147483648
  %v430 = vsel %vm428, %v429, %v427
  %v431 = vrsqrt.pop %v341
  %v432 = vmul.f32 %v341, %v431
  %vm433 = vcmp.eq.f32.partialorder %v341, inf
  %v434 = vsel %vm433, %v341, %v432
  %vm435 = vcmp.eq.f32.partialorder %v341, 0.0
  %v436 = vand.u32 %v341, 2147483648
  %v437 = vsel %vm435, %v436, %v434
  %v438 = vrsqrt.pop %v344
  %v439 = vmul.f32 %v344, %v438
  %vm440 = vcmp.eq.f32.partialorder %v344, inf
  %v441 = vsel %vm440, %v344, %v439
  %vm442 = vcmp.eq.f32.partialorder %v344, 0.0
  %v443 = vand.u32 %v344, 2147483648
  %v444 = vsel %vm442, %v443, %v441
  %v445 = vrsqrt.pop %v347
  %v446 = vmul.f32 %v347, %v445
  %vm447 = vcmp.eq.f32.partialorder %v347, inf
  %v448 = vsel %vm447, %v347, %v446
  %vm449 = vcmp.eq.f32.partialorder %v347, 0.0
  %v450 = vand.u32 %v347, 2147483648
  %v451 = vsel %vm449, %v450, %v448
  %v452 = vrsqrt.pop %v350
  %v453 = vmul.f32 %v350, %v452
  %vm454 = vcmp.eq.f32.partialorder %v350, inf
  %v455 = vsel %vm454, %v350, %v453
  %vm456 = vcmp.eq.f32.partialorder %v350, 0.0
  %v457 = vand.u32 %v350, 2147483648
  %v458 = vsel %vm456, %v457, %v455
  %v459 = vrsqrt.pop %v353
  %v460 = vmul.f32 %v353, %v459
  %vm461 = vcmp.eq.f32.partialorder %v353, inf
  %v462 = vsel %vm461, %v353, %v460
  %vm463 = vcmp.eq.f32.partialorder %v353, 0.0
  %v464 = vand.u32 %v353, 2147483648
  %v465 = vsel %vm463, %v464, %v462
  %v466 = vmax.f32 %v360, 1e-12
  %v467 = vmax.f32 %v367, 1e-12
  %v468 = vmax.f32 %v374, 1e-12
  %v469 = vmax.f32 %v381, 1e-12
  %v470 = vmax.f32 %v388, 1e-12
  %v471 = vmax.f32 %v395, 1e-12
  %v472 = vmax.f32 %v402, 1e-12
  %v473 = vmax.f32 %v409, 1e-12
  %v474 = vmax.f32 %v416, 1e-12
  %v475 = vmax.f32 %v423, 1e-12
  %v476 = vmax.f32 %v430, 1e-12
  %v477 = vmax.f32 %v437, 1e-12
  %v478 = vmax.f32 %v444, 1e-12
  %v479 = vmax.f32 %v451, 1e-12
  %v480 = vmax.f32 %v458, 1e-12
  %v481 = vmax.f32 %v465, 1e-12
  %v482 = vrcp.pop %v466
  %v483 = vmul.f32 %v274, %v482
  %v484 = vrcp.pop %v467
  %v485 = vmul.f32 %v275, %v484
  %v486 = vrcp.pop %v468
  %v487 = vmul.f32 %v276, %v486
  %v488 = vrcp.pop %v469
  %v489 = vmul.f32 %v277, %v488
  %v490 = vrcp.pop %v470
  %v491 = vmul.f32 %v278, %v490
  %v492 = vrcp.pop %v471
  %v493 = vmul.f32 %v279, %v492
  %v494 = vrcp.pop %v472
  %v495 = vmul.f32 %v280, %v494
  %v496 = vrcp.pop %v473
  %v497 = vmul.f32 %v281, %v496
  %v498 = vrcp.pop %v474
  %v499 = vmul.f32 %v282, %v498
  %v500 = vrcp.pop %v475
  %v501 = vmul.f32 %v283, %v500
  %v502 = vrcp.pop %v476
  %v503 = vmul.f32 %v284, %v502
  %v504 = vrcp.pop %v477
  %v505 = vmul.f32 %v285, %v504
  %v506 = vrcp.pop %v478
  %v507 = vmul.f32 %v286, %v506
  %v508 = vrcp.pop %v479
  %v509 = vmul.f32 %v287, %v508
  %v510 = vrcp.pop %v480
  %v511 = vmul.f32 %v288, %v510
  %v512 = vrcp.pop %v481
  %v513 = vmul.f32 %v289, %v512
  %514 = vst.msk [vmem:[%s4] sm:$0xff] %vm49, %v483
  %515 = vst.msk [vmem:[%s4 + $0x8] sm:$0xff] %vm49, %v485
  %516 = vst.msk [vmem:[%s4 + $0x10] sm:$0xff] %vm49, %v487
  %517 = vst.msk [vmem:[%s4 + $0x18] sm:$0xff] %vm49, %v489
  %518 = vst.msk [vmem:[%s4 + $0x20] sm:$0xff] %vm49, %v491
  %519 = vst.msk [vmem:[%s4 + $0x28] sm:$0xff] %vm49, %v493
  %520 = vst.msk [vmem:[%s4 + $0x30] sm:$0xff] %vm49, %v495
  %521 = vst.msk [vmem:[%s4 + $0x38] sm:$0xff] %vm49, %v497
  %522 = vst.msk [vmem:[%s4 + $0x40] sm:$0xff] %vm49, %v499
  %523 = vst.msk [vmem:[%s4 + $0x48] sm:$0xff] %vm49, %v501
  %524 = vst.msk [vmem:[%s4 + $0x50] sm:$0xff] %vm49, %v503
  %525 = vst.msk [vmem:[%s4 + $0x58] sm:$0xff] %vm49, %v505
  %526 = vst.msk [vmem:[%s4 + $0x60] sm:$0xff] %vm49, %v507
  %527 = vst.msk [vmem:[%s4 + $0x68] sm:$0xff] %vm49, %v509
  %528 = vst.msk [vmem:[%s4 + $0x70] sm:$0xff] %vm49, %v511
  %529 = vst.msk [vmem:[%s4 + $0x78] sm:$0xff] %vm49, %v513
  %v530 = vld [vmem:[%s2] sm:$0xff]
  %v531 = vld [vmem:[%s2 + $0x8] sm:$0xff]
  %v532 = vld [vmem:[%s2 + $0x10] sm:$0xff]
  %v533 = vld [vmem:[%s2 + $0x18] sm:$0xff]
  %v534 = vld [vmem:[%s2 + $0x20] sm:$0xff]
  %v535 = vld [vmem:[%s2 + $0x28] sm:$0xff]
  %v536 = vld [vmem:[%s2 + $0x30] sm:$0xff]
  %v537 = vld [vmem:[%s2 + $0x38] sm:$0xff]
  %v538 = vld [vmem:[%s2 + $0x40] sm:$0xff]
  %v539 = vld [vmem:[%s2 + $0x48] sm:$0xff]
  %v540 = vld [vmem:[%s2 + $0x50] sm:$0xff]
  %v541 = vld [vmem:[%s2 + $0x58] sm:$0xff]
  %v542 = vld [vmem:[%s2 + $0x60] sm:$0xff]
  %v543 = vld [vmem:[%s2 + $0x68] sm:$0xff]
  %v544 = vld [vmem:[%s2 + $0x70] sm:$0xff]
  %v545 = vld [vmem:[%s2 + $0x78] sm:$0xff]
  %v546 = vmul.f32 %v530, %v530
  %v547 = vmul.f32 %v531, %v531
  %v548 = vmul.f32 %v532, %v532
  %v549 = vmul.f32 %v533, %v533
  %v550 = vmul.f32 %v534, %v534
  %v551 = vmul.f32 %v535, %v535
  %v552 = vmul.f32 %v536, %v536
  %v553 = vmul.f32 %v537, %v537
  %v554 = vmul.f32 %v538, %v538
  %v555 = vmul.f32 %v539, %v539
  %v556 = vmul.f32 %v540, %v540
  %v557 = vmul.f32 %v541, %v541
  %v558 = vmul.f32 %v542, %v542
  %v559 = vmul.f32 %v543, %v543
  %v560 = vmul.f32 %v544, %v544
  %v561 = vmul.f32 %v545, %v545
  %v562 = vsel %vm49, %v546, 0.0
  %563 = vadd.xlane.f32.xlu0 %v562
  %v564 = vpop.xlane.xlu0 %563
  %v565 = vsel %vm49, %v547, 0.0
  %566 = vadd.xlane.f32.xlu0 %v565
  %v567 = vpop.xlane.xlu0 %566
  %v568 = vsel %vm49, %v548, 0.0
  %569 = vadd.xlane.f32.xlu0 %v568
  %v570 = vpop.xlane.xlu0 %569
  %v571 = vsel %vm49, %v549, 0.0
  %572 = vadd.xlane.f32.xlu0 %v571
  %v573 = vpop.xlane.xlu0 %572
  %v574 = vsel %vm49, %v550, 0.0
  %575 = vadd.xlane.f32.xlu0 %v574
  %v576 = vpop.xlane.xlu0 %575
  %v577 = vsel %vm49, %v551, 0.0
  %578 = vadd.xlane.f32.xlu0 %v577
  %v579 = vpop.xlane.xlu0 %578
  %v580 = vsel %vm49, %v552, 0.0
  %581 = vadd.xlane.f32.xlu0 %v580
  %v582 = vpop.xlane.xlu0 %581
  %v583 = vsel %vm49, %v553, 0.0
  %584 = vadd.xlane.f32.xlu0 %v583
  %v585 = vpop.xlane.xlu0 %584
  %v586 = vsel %vm49, %v554, 0.0
  %587 = vadd.xlane.f32.xlu0 %v586
  %v588 = vpop.xlane.xlu0 %587
  %v589 = vsel %vm49, %v555, 0.0
  %590 = vadd.xlane.f32.xlu0 %v589
  %v591 = vpop.xlane.xlu0 %590
  %v592 = vsel %vm49, %v556, 0.0
  %593 = vadd.xlane.f32.xlu0 %v592
  %v594 = vpop.xlane.xlu0 %593
  %v595 = vsel %vm49, %v557, 0.0
  %596 = vadd.xlane.f32.xlu0 %v595
  %v597 = vpop.xlane.xlu0 %596
  %v598 = vsel %vm49, %v558, 0.0
  %599 = vadd.xlane.f32.xlu0 %v598
  %v600 = vpop.xlane.xlu0 %599
  %v601 = vsel %vm49, %v559, 0.0
  %602 = vadd.xlane.f32.xlu0 %v601
  %v603 = vpop.xlane.xlu0 %602
  %v604 = vsel %vm49, %v560, 0.0
  %605 = vadd.xlane.f32.xlu0 %v604
  %v606 = vpop.xlane.xlu0 %605
  %v607 = vsel %vm49, %v561, 0.0
  %608 = vadd.xlane.f32.xlu0 %v607
  %v609 = vpop.xlane.xlu0 %608
  %v610 = vrsqrt.pop %v564
  %v611 = vmul.f32 %v564, %v610
  %vm612 = vcmp.eq.f32.partialorder %v564, inf
  %v613 = vsel %vm612, %v564, %v611
  %vm614 = vcmp.eq.f32.partialorder %v564, 0.0
  %v615 = vand.u32 %v564, 2147483648
  %v616 = vsel %vm614, %v615, %v613
  %v617 = vrsqrt.pop %v567
  %v618 = vmul.f32 %v567, %v617
  %vm619 = vcmp.eq.f32.partialorder %v567, inf
  %v620 = vsel %vm619, %v567, %v618
  %vm621 = vcmp.eq.f32.partialorder %v567, 0.0
  %v622 = vand.u32 %v567, 2147483648
  %v623 = vsel %vm621, %v622, %v620
  %v624 = vrsqrt.pop %v570
  %v625 = vmul.f32 %v570, %v624
  %vm626 = vcmp.eq.f32.partialorder %v570, inf
  %v627 = vsel %vm626, %v570, %v625
  %vm628 = vcmp.eq.f32.partialorder %v570, 0.0
  %v629 = vand.u32 %v570, 2147483648
  %v630 = vsel %vm628, %v629, %v627
  %v631 = vrsqrt.pop %v573
  %v632 = vmul.f32 %v573, %v631
  %vm633 = vcmp.eq.f32.partialorder %v573, inf
  %v634 = vsel %vm633, %v573, %v632
  %vm635 = vcmp.eq.f32.partialorder %v573, 0.0
  %v636 = vand.u32 %v573, 2147483648
  %v637 = vsel %vm635, %v636, %v634
  %v638 = vrsqrt.pop %v576
  %v639 = vmul.f32 %v576, %v638
  %vm640 = vcmp.eq.f32.partialorder %v576, inf
  %v641 = vsel %vm640, %v576, %v639
  %vm642 = vcmp.eq.f32.partialorder %v576, 0.0
  %v643 = vand.u32 %v576, 2147483648
  %v644 = vsel %vm642, %v643, %v641
  %v645 = vrsqrt.pop %v579
  %v646 = vmul.f32 %v579, %v645
  %vm647 = vcmp.eq.f32.partialorder %v579, inf
  %v648 = vsel %vm647, %v579, %v646
  %vm649 = vcmp.eq.f32.partialorder %v579, 0.0
  %v650 = vand.u32 %v579, 2147483648
  %v651 = vsel %vm649, %v650, %v648
  %v652 = vrsqrt.pop %v582
  %v653 = vmul.f32 %v582, %v652
  %vm654 = vcmp.eq.f32.partialorder %v582, inf
  %v655 = vsel %vm654, %v582, %v653
  %vm656 = vcmp.eq.f32.partialorder %v582, 0.0
  %v657 = vand.u32 %v582, 2147483648
  %v658 = vsel %vm656, %v657, %v655
  %v659 = vrsqrt.pop %v585
  %v660 = vmul.f32 %v585, %v659
  %vm661 = vcmp.eq.f32.partialorder %v585, inf
  %v662 = vsel %vm661, %v585, %v660
  %vm663 = vcmp.eq.f32.partialorder %v585, 0.0
  %v664 = vand.u32 %v585, 2147483648
  %v665 = vsel %vm663, %v664, %v662
  %v666 = vrsqrt.pop %v588
  %v667 = vmul.f32 %v588, %v666
  %vm668 = vcmp.eq.f32.partialorder %v588, inf
  %v669 = vsel %vm668, %v588, %v667
  %vm670 = vcmp.eq.f32.partialorder %v588, 0.0
  %v671 = vand.u32 %v588, 2147483648
  %v672 = vsel %vm670, %v671, %v669
  %v673 = vrsqrt.pop %v591
  %v674 = vmul.f32 %v591, %v673
  %vm675 = vcmp.eq.f32.partialorder %v591, inf
  %v676 = vsel %vm675, %v591, %v674
  %vm677 = vcmp.eq.f32.partialorder %v591, 0.0
  %v678 = vand.u32 %v591, 2147483648
  %v679 = vsel %vm677, %v678, %v676
  %v680 = vrsqrt.pop %v594
  %v681 = vmul.f32 %v594, %v680
  %vm682 = vcmp.eq.f32.partialorder %v594, inf
  %v683 = vsel %vm682, %v594, %v681
  %vm684 = vcmp.eq.f32.partialorder %v594, 0.0
  %v685 = vand.u32 %v594, 2147483648
  %v686 = vsel %vm684, %v685, %v683
  %v687 = vrsqrt.pop %v597
  %v688 = vmul.f32 %v597, %v687
  %vm689 = vcmp.eq.f32.partialorder %v597, inf
  %v690 = vsel %vm689, %v597, %v688
  %vm691 = vcmp.eq.f32.partialorder %v597, 0.0
  %v692 = vand.u32 %v597, 2147483648
  %v693 = vsel %vm691, %v692, %v690
  %v694 = vrsqrt.pop %v600
  %v695 = vmul.f32 %v600, %v694
  %vm696 = vcmp.eq.f32.partialorder %v600, inf
  %v697 = vsel %vm696, %v600, %v695
  %vm698 = vcmp.eq.f32.partialorder %v600, 0.0
  %v699 = vand.u32 %v600, 2147483648
  %v700 = vsel %vm698, %v699, %v697
  %v701 = vrsqrt.pop %v603
  %v702 = vmul.f32 %v603, %v701
  %vm703 = vcmp.eq.f32.partialorder %v603, inf
  %v704 = vsel %vm703, %v603, %v702
  %vm705 = vcmp.eq.f32.partialorder %v603, 0.0
  %v706 = vand.u32 %v603, 2147483648
  %v707 = vsel %vm705, %v706, %v704
  %v708 = vrsqrt.pop %v606
  %v709 = vmul.f32 %v606, %v708
  %vm710 = vcmp.eq.f32.partialorder %v606, inf
  %v711 = vsel %vm710, %v606, %v709
  %vm712 = vcmp.eq.f32.partialorder %v606, 0.0
  %v713 = vand.u32 %v606, 2147483648
  %v714 = vsel %vm712, %v713, %v711
  %v715 = vrsqrt.pop %v609
  %v716 = vmul.f32 %v609, %v715
  %vm717 = vcmp.eq.f32.partialorder %v609, inf
  %v718 = vsel %vm717, %v609, %v716
  %vm719 = vcmp.eq.f32.partialorder %v609, 0.0
  %v720 = vand.u32 %v609, 2147483648
  %v721 = vsel %vm719, %v720, %v718
  %v722 = vmax.f32 %v616, 1e-12
  %v723 = vmax.f32 %v623, 1e-12
  %v724 = vmax.f32 %v630, 1e-12
  %v725 = vmax.f32 %v637, 1e-12
  %v726 = vmax.f32 %v644, 1e-12
  %v727 = vmax.f32 %v651, 1e-12
  %v728 = vmax.f32 %v658, 1e-12
  %v729 = vmax.f32 %v665, 1e-12
  %v730 = vmax.f32 %v672, 1e-12
  %v731 = vmax.f32 %v679, 1e-12
  %v732 = vmax.f32 %v686, 1e-12
  %v733 = vmax.f32 %v693, 1e-12
  %v734 = vmax.f32 %v700, 1e-12
  %v735 = vmax.f32 %v707, 1e-12
  %v736 = vmax.f32 %v714, 1e-12
  %v737 = vmax.f32 %v721, 1e-12
  %v738 = vrcp.pop %v722
  %v739 = vmul.f32 %v530, %v738
  %v740 = vrcp.pop %v723
  %v741 = vmul.f32 %v531, %v740
  %v742 = vrcp.pop %v724
  %v743 = vmul.f32 %v532, %v742
  %v744 = vrcp.pop %v725
  %v745 = vmul.f32 %v533, %v744
  %v746 = vrcp.pop %v726
  %v747 = vmul.f32 %v534, %v746
  %v748 = vrcp.pop %v727
  %v749 = vmul.f32 %v535, %v748
  %v750 = vrcp.pop %v728
  %v751 = vmul.f32 %v536, %v750
  %v752 = vrcp.pop %v729
  %v753 = vmul.f32 %v537, %v752
  %v754 = vrcp.pop %v730
  %v755 = vmul.f32 %v538, %v754
  %v756 = vrcp.pop %v731
  %v757 = vmul.f32 %v539, %v756
  %v758 = vrcp.pop %v732
  %v759 = vmul.f32 %v540, %v758
  %v760 = vrcp.pop %v733
  %v761 = vmul.f32 %v541, %v760
  %v762 = vrcp.pop %v734
  %v763 = vmul.f32 %v542, %v762
  %v764 = vrcp.pop %v735
  %v765 = vmul.f32 %v543, %v764
  %v766 = vrcp.pop %v736
  %v767 = vmul.f32 %v544, %v766
  %v768 = vrcp.pop %v737
  %v769 = vmul.f32 %v545, %v768
  %770 = vst.msk [vmem:[%s5] sm:$0xff] %vm49, %v739
  %771 = vst.msk [vmem:[%s5 + $0x8] sm:$0xff] %vm49, %v741
  %772 = vst.msk [vmem:[%s5 + $0x10] sm:$0xff] %vm49, %v743
  %773 = vst.msk [vmem:[%s5 + $0x18] sm:$0xff] %vm49, %v745
  %774 = vst.msk [vmem:[%s5 + $0x20] sm:$0xff] %vm49, %v747
  %775 = vst.msk [vmem:[%s5 + $0x28] sm:$0xff] %vm49, %v749
  %776 = vst.msk [vmem:[%s5 + $0x30] sm:$0xff] %vm49, %v751
  %777 = vst.msk [vmem:[%s5 + $0x38] sm:$0xff] %vm49, %v753
  %778 = vst.msk [vmem:[%s5 + $0x40] sm:$0xff] %vm49, %v755
  %779 = vst.msk [vmem:[%s5 + $0x48] sm:$0xff] %vm49, %v757
  %780 = vst.msk [vmem:[%s5 + $0x50] sm:$0xff] %vm49, %v759
  %781 = vst.msk [vmem:[%s5 + $0x58] sm:$0xff] %vm49, %v761
  %782 = vst.msk [vmem:[%s5 + $0x60] sm:$0xff] %vm49, %v763
  %783 = vst.msk [vmem:[%s5 + $0x68] sm:$0xff] %vm49, %v765
  %784 = vst.msk [vmem:[%s5 + $0x70] sm:$0xff] %vm49, %v767
  %785 = vst.msk [vmem:[%s5 + $0x78] sm:$0xff] %vm49, %v769
  // Predicated region
  $region14: #{rnsf_contrastive_loss.3} parent=0 // pred_check
    _
  $region15: #{rnsf_contrastive_loss.3} parent=0 // pred_check_branch
    %787 = sbr.rel (0) target = $region17
  $region16: #{rnsf_contrastive_loss.3} parent=0 // pred_region
    _
  $region17: #{rnsf_contrastive_loss.3} parent=0 // pred_fallthru
    _
  // Predicated region
  $region18: #{rnsf_contrastive_loss.3} parent=0 // pred_check
    _
  $region19: #{rnsf_contrastive_loss.3} parent=0 // pred_check_branch
    %789 = sbr.rel (0) target = $region21
  $region20: #{rnsf_contrastive_loss.3} parent=0 // pred_region
    _
  $region21: #{rnsf_contrastive_loss.3} parent=0 // pred_fallthru
    _
  // Predicated region
  $region22: #{rnsf_contrastive_loss.3} parent=0 // pred_check
    _
  $region23: #{rnsf_contrastive_loss.3} parent=0 // pred_check_branch
    %791 = sbr.rel (0) target = $region25
  $region24: #{rnsf_contrastive_loss.3} parent=0 // pred_region
    _
  $region25: #{rnsf_contrastive_loss.3} parent=0 // pred_fallthru
    _
  // Predicated region
  $region26: #{rnsf_contrastive_loss.3} parent=0 // pred_check
    _
  $region27: #{rnsf_contrastive_loss.3} parent=0 // pred_check_branch
    %793 = sbr.rel (0) target = $region29
  $region28: #{rnsf_contrastive_loss.3} parent=0 // pred_region
    _
  $region29: #{rnsf_contrastive_loss.3} parent=0 // pred_fallthru
    _
  // Predicated region
  $region30: #{rnsf_contrastive_loss.3} parent=0 // pred_check
    _
  $region31: #{rnsf_contrastive_loss.3} parent=0 // pred_check_branch
    %795 = sbr.rel (0) target = $region33
  $region32: #{rnsf_contrastive_loss.3} parent=0 // pred_region
    _
  $region33: #{rnsf_contrastive_loss.3} parent=0 // pred_fallthru
    _
  // Predicated region
  $region34: #{rnsf_contrastive_loss.3} parent=0 // pred_check
    _
  $region35: #{rnsf_contrastive_loss.3} parent=0 // pred_check_branch
    %797 = sbr.rel (0) target = $region37
  $region36: #{rnsf_contrastive_loss.3} parent=0 // pred_region
    _
  $region37: #{rnsf_contrastive_loss.3} parent=0 // pred_fallthru
    _

// kernel: rnsf_contrastive_loss.5
$region0: #{rnsf_contrastive_loss.5}
  #allocation0 [shape = 'u32[]', space=smem, size = 0x4, offset = 0x4, fixed_abs, tag = 'smem constant byte address 0x4 - core index']
  #allocation1 [shape = 'u32[144,128]{1,0:T(1,128)}', space=vmem, size = 0x12000, scoped, tag = 'internal scratch']
  %s0 = inlined_call_operand.vmem [shape: f32[128,32], index: 0, kind: input, shape index: {}]
  %s1 = inlined_call_operand.vmem [shape: f32[128,32], index: 1, kind: input, shape index: {}]
  %s2 = inlined_call_operand.vmem [shape: f32[8,128,32], index: 2, kind: input, shape index: {}]
  %s3 = inlined_call_operand.hbm [shape: f32[1,1], index: 3, kind: output, shape index: {}]
  %s4 = sld [smem:[#allocation0]]
  $region30: #{rnsf_contrastive_loss.5} parent=0
    _
  %s6 = ssub.s32 1, %s4
  %s7 = scalar_select 0, %s6, %s4
  $region1: #{rnsf_contrastive_loss.5} parent=0
    #allocation2 [shape = 'u8[512]{0}', space=vmem, size = 0x400, scoped, tag = 'output window, operand 0, single buffered']
    #allocation3 [shape = 's32[1]{0}', space=sflag, size = 0x4, scoped, tag = 'scoped memory for rnsf_contrastive_loss.5']
    %8 = vsyncpa [#allocation3], 0
    // Predicated region
    $region2: #{rnsf_contrastive_loss.5} parent=1 // pred_check
      _
    $region3: #{rnsf_contrastive_loss.5} parent=1 // pred_check_branch
      %10 = sbr.rel (0) target = $region5
    $region4: #{rnsf_contrastive_loss.5} parent=1 // pred_region
      _
    $region5: #{rnsf_contrastive_loss.5} parent=1 // pred_fallthru
      _
    // Predicated region
    $region6: #{rnsf_contrastive_loss.5} parent=1 // pred_check
      _
    $region7: #{rnsf_contrastive_loss.5} parent=1 // pred_check_branch
      %12 = sbr.rel (0) target = $region9
    $region8: #{rnsf_contrastive_loss.5} parent=1 // pred_region
      _
    $region9: #{rnsf_contrastive_loss.5} parent=1 // pred_fallthru
      _
    // Predicated region
    $region10: #{rnsf_contrastive_loss.5} parent=1 // pred_check
      _
    $region11: #{rnsf_contrastive_loss.5} parent=1 // pred_check_branch
      %14 = sbr.rel (0) target = $region13
    $region12: #{rnsf_contrastive_loss.5} parent=1 // pred_region
      _
    $region13: #{rnsf_contrastive_loss.5} parent=1 // pred_fallthru
      _
    %p15 = scmp.eq.s32.totalorder 0, 0
    // Predicated region
    $region14: #{rnsf_contrastive_loss.5} parent=1 // pred_check
      %p16 = pneg %p15
    $region15: #{rnsf_contrastive_loss.5} parent=1 // pred_check_branch
      %18 = sbr.rel (%p16) target = $region17
    $region16: #{rnsf_contrastive_loss.5} parent=1 // pred_region
      %vm19 = vcmask 0
      %20 = vst.msk [vmem:[#allocation2] sm:$0x1] %vm19, 0.0
    $region17: #{rnsf_contrastive_loss.5} parent=1 // pred_fallthru
      _
    %v21 = vld [vmem:[%s0] sm:$0xff]
    %v22 = vld [vmem:[%s0 + $0x8] sm:$0xff]
    %v23 = vld [vmem:[%s0 + $0x10] sm:$0xff]
    %v24 = vld [vmem:[%s0 + $0x18] sm:$0xff]
    %v25 = vld [vmem:[%s0 + $0x20] sm:$0xff]
    %v26 = vld [vmem:[%s0 + $0x28] sm:$0xff]
    %v27 = vld [vmem:[%s0 + $0x30] sm:$0xff]
    %v28 = vld [vmem:[%s0 + $0x38] sm:$0xff]
    %v29 = vld [vmem:[%s0 + $0x40] sm:$0xff]
    %v30 = vld [vmem:[%s0 + $0x48] sm:$0xff]
    %v31 = vld [vmem:[%s0 + $0x50] sm:$0xff]
    %v32 = vld [vmem:[%s0 + $0x58] sm:$0xff]
    %v33 = vld [vmem:[%s0 + $0x60] sm:$0xff]
    %v34 = vld [vmem:[%s0 + $0x68] sm:$0xff]
    %v35 = vld [vmem:[%s0 + $0x70] sm:$0xff]
    %v36 = vld [vmem:[%s0 + $0x78] sm:$0xff]
    %v37 = vld [vmem:[%s1] sm:$0xff]
    %v38 = vld [vmem:[%s1 + $0x8] sm:$0xff]
    %v39 = vld [vmem:[%s1 + $0x10] sm:$0xff]
    %v40 = vld [vmem:[%s1 + $0x18] sm:$0xff]
    %v41 = vld [vmem:[%s1 + $0x20] sm:$0xff]
    %v42 = vld [vmem:[%s1 + $0x28] sm:$0xff]
    %v43 = vld [vmem:[%s1 + $0x30] sm:$0xff]
    %v44 = vld [vmem:[%s1 + $0x38] sm:$0xff]
    %v45 = vld [vmem:[%s1 + $0x40] sm:$0xff]
    %v46 = vld [vmem:[%s1 + $0x48] sm:$0xff]
    %v47 = vld [vmem:[%s1 + $0x50] sm:$0xff]
    %v48 = vld [vmem:[%s1 + $0x58] sm:$0xff]
    %v49 = vld [vmem:[%s1 + $0x60] sm:$0xff]
    %v50 = vld [vmem:[%s1 + $0x68] sm:$0xff]
    %v51 = vld [vmem:[%s1 + $0x70] sm:$0xff]
    %v52 = vld [vmem:[%s1 + $0x78] sm:$0xff]
    %v53 = vld [vmem:[%s2] sm:$0xff]
    %v54 = vld [vmem:[%s2 + $0x8] sm:$0xff]
    %v55 = vld [vmem:[%s2 + $0x10] sm:$0xff]
    %v56 = vld [vmem:[%s2 + $0x18] sm:$0xff]
    %v57 = vld [vmem:[%s2 + $0x20] sm:$0xff]
    %v58 = vld [vmem:[%s2 + $0x28] sm:$0xff]
    %v59 = vld [vmem:[%s2 + $0x30] sm:$0xff]
    %v60 = vld [vmem:[%s2 + $0x38] sm:$0xff]
    %v61 = vld [vmem:[%s2 + $0x40] sm:$0xff]
    %v62 = vld [vmem:[%s2 + $0x48] sm:$0xff]
    %v63 = vld [vmem:[%s2 + $0x50] sm:$0xff]
    %v64 = vld [vmem:[%s2 + $0x58] sm:$0xff]
    %v65 = vld [vmem:[%s2 + $0x60] sm:$0xff]
    %v66 = vld [vmem:[%s2 + $0x68] sm:$0xff]
    %v67 = vld [vmem:[%s2 + $0x70] sm:$0xff]
    %v68 = vld [vmem:[%s2 + $0x78] sm:$0xff]
    %v69 = vld [vmem:[%s2 + $0x80] sm:$0xff]
    %v70 = vld [vmem:[%s2 + $0x88] sm:$0xff]
    %v71 = vld [vmem:[%s2 + $0x90] sm:$0xff]
    %v72 = vld [vmem:[%s2 + $0x98] sm:$0xff]
    %v73 = vld [vmem:[%s2 + $0xa0] sm:$0xff]
    %v74 = vld [vmem:[%s2 + $0xa8] sm:$0xff]
    %v75 = vld [vmem:[%s2 + $0xb0] sm:$0xff]
    %v76 = vld [vmem:[%s2 + $0xb8] sm:$0xff]
    %v77 = vld [vmem:[%s2 + $0xc0] sm:$0xff]
    %v78 = vld [vmem:[%s2 + $0xc8] sm:$0xff]
    %v79 = vld [vmem:[%s2 + $0xd0] sm:$0xff]
    %v80 = vld [vmem:[%s2 + $0xd8] sm:$0xff]
    %v81 = vld [vmem:[%s2 + $0xe0] sm:$0xff]
    %v82 = vld [vmem:[%s2 + $0xe8] sm:$0xff]
    %v83 = vld [vmem:[%s2 + $0xf0] sm:$0xff]
    %v84 = vld [vmem:[%s2 + $0xf8] sm:$0xff]
    %v85 = vld [vmem:[%s2 + $0x100] sm:$0xff]
    %v86 = vld [vmem:[%s2 + $0x108] sm:$0xff]
    %v87 = vld [vmem:[%s2 + $0x110] sm:$0xff]
    %v88 = vld [vmem:[%s2 + $0x118] sm:$0xff]
    %v89 = vld [vmem:[%s2 + $0x120] sm:$0xff]
    %v90 = vld [vmem:[%s2 + $0x128] sm:$0xff]
    %v91 = vld [vmem:[%s2 + $0x130] sm:$0xff]
    %v92 = vld [vmem:[%s2 + $0x138] sm:$0xff]
    %v93 = vld [vmem:[%s2 + $0x140] sm:$0xff]
    %v94 = vld [vmem:[%s2 + $0x148] sm:$0xff]
    %v95 = vld [vmem:[%s2 + $0x150] sm:$0xff]
    %v96 = vld [vmem:[%s2 + $0x158] sm:$0xff]
    %v97 = vld [vmem:[%s2 + $0x160] sm:$0xff]
    %v98 = vld [vmem:[%s2 + $0x168] sm:$0xff]
    %v99 = vld [vmem:[%s2 + $0x170] sm:$0xff]
    %v100 = vld [vmem:[%s2 + $0x178] sm:$0xff]
    %v101 = vld [vmem:[%s2 + $0x180] sm:$0xff]
    %v102 = vld [vmem:[%s2 + $0x188] sm:$0xff]
    %v103 = vld [vmem:[%s2 + $0x190] sm:$0xff]
    %v104 = vld [vmem:[%s2 + $0x198] sm:$0xff]
    %v105 = vld [vmem:[%s2 + $0x1a0] sm:$0xff]
    %v106 = vld [vmem:[%s2 + $0x1a8] sm:$0xff]
    %v107 = vld [vmem:[%s2 + $0x1b0] sm:$0xff]
    %v108 = vld [vmem:[%s2 + $0x1b8] sm:$0xff]
    %v109 = vld [vmem:[%s2 + $0x1c0] sm:$0xff]
    %v110 = vld [vmem:[%s2 + $0x1c8] sm:$0xff]
    %v111 = vld [vmem:[%s2 + $0x1d0] sm:$0xff]
    %v112 = vld [vmem:[%s2 + $0x1d8] sm:$0xff]
    %v113 = vld [vmem:[%s2 + $0x1e0] sm:$0xff]
    %v114 = vld [vmem:[%s2 + $0x1e8] sm:$0xff]
    %v115 = vld [vmem:[%s2 + $0x1f0] sm:$0xff]
    %v116 = vld [vmem:[%s2 + $0x1f8] sm:$0xff]
    %v117 = vld [vmem:[%s2 + $0x200] sm:$0xff]
    %v118 = vld [vmem:[%s2 + $0x208] sm:$0xff]
    %v119 = vld [vmem:[%s2 + $0x210] sm:$0xff]
    %v120 = vld [vmem:[%s2 + $0x218] sm:$0xff]
    %v121 = vld [vmem:[%s2 + $0x220] sm:$0xff]
    %v122 = vld [vmem:[%s2 + $0x228] sm:$0xff]
    %v123 = vld [vmem:[%s2 + $0x230] sm:$0xff]
    %v124 = vld [vmem:[%s2 + $0x238] sm:$0xff]
    %v125 = vld [vmem:[%s2 + $0x240] sm:$0xff]
    %v126 = vld [vmem:[%s2 + $0x248] sm:$0xff]
    %v127 = vld [vmem:[%s2 + $0x250] sm:$0xff]
    %v128 = vld [vmem:[%s2 + $0x258] sm:$0xff]
    %v129 = vld [vmem:[%s2 + $0x260] sm:$0xff]
    %v130 = vld [vmem:[%s2 + $0x268] sm:$0xff]
    %v131 = vld [vmem:[%s2 + $0x270] sm:$0xff]
    %v132 = vld [vmem:[%s2 + $0x278] sm:$0xff]
    %v133 = vld [vmem:[%s2 + $0x280] sm:$0xff]
    %v134 = vld [vmem:[%s2 + $0x288] sm:$0xff]
    %v135 = vld [vmem:[%s2 + $0x290] sm:$0xff]
    %v136 = vld [vmem:[%s2 + $0x298] sm:$0xff]
    %v137 = vld [vmem:[%s2 + $0x2a0] sm:$0xff]
    %v138 = vld [vmem:[%s2 + $0x2a8] sm:$0xff]
    %v139 = vld [vmem:[%s2 + $0x2b0] sm:$0xff]
    %v140 = vld [vmem:[%s2 + $0x2b8] sm:$0xff]
    %v141 = vld [vmem:[%s2 + $0x2c0] sm:$0xff]
    %v142 = vld [vmem:[%s2 + $0x2c8] sm:$0xff]
    %v143 = vld [vmem:[%s2 + $0x2d0] sm:$0xff]
    %v144 = vld [vmem:[%s2 + $0x2d8] sm:$0xff]
    %v145 = vld [vmem:[%s2 + $0x2e0] sm:$0xff]
    %v146 = vld [vmem:[%s2 + $0x2e8] sm:$0xff]
    %v147 = vld [vmem:[%s2 + $0x2f0] sm:$0xff]
    %v148 = vld [vmem:[%s2 + $0x2f8] sm:$0xff]
    %v149 = vld [vmem:[%s2 + $0x300] sm:$0xff]
    %v150 = vld [vmem:[%s2 + $0x308] sm:$0xff]
    %v151 = vld [vmem:[%s2 + $0x310] sm:$0xff]
    %v152 = vld [vmem:[%s2 + $0x318] sm:$0xff]
    %v153 = vld [vmem:[%s2 + $0x320] sm:$0xff]
    %v154 = vld [vmem:[%s2 + $0x328] sm:$0xff]
    %v155 = vld [vmem:[%s2 + $0x330] sm:$0xff]
    %v156 = vld [vmem:[%s2 + $0x338] sm:$0xff]
    %v157 = vld [vmem:[%s2 + $0x340] sm:$0xff]
    %v158 = vld [vmem:[%s2 + $0x348] sm:$0xff]
    %v159 = vld [vmem:[%s2 + $0x350] sm:$0xff]
    %v160 = vld [vmem:[%s2 + $0x358] sm:$0xff]
    %v161 = vld [vmem:[%s2 + $0x360] sm:$0xff]
    %v162 = vld [vmem:[%s2 + $0x368] sm:$0xff]
    %v163 = vld [vmem:[%s2 + $0x370] sm:$0xff]
    %v164 = vld [vmem:[%s2 + $0x378] sm:$0xff]
    %v165 = vld [vmem:[%s2 + $0x380] sm:$0xff]
    %v166 = vld [vmem:[%s2 + $0x388] sm:$0xff]
    %v167 = vld [vmem:[%s2 + $0x390] sm:$0xff]
    %v168 = vld [vmem:[%s2 + $0x398] sm:$0xff]
    %v169 = vld [vmem:[%s2 + $0x3a0] sm:$0xff]
    %v170 = vld [vmem:[%s2 + $0x3a8] sm:$0xff]
    %v171 = vld [vmem:[%s2 + $0x3b0] sm:$0xff]
    %v172 = vld [vmem:[%s2 + $0x3b8] sm:$0xff]
    %v173 = vld [vmem:[%s2 + $0x3c0] sm:$0xff]
    %v174 = vld [vmem:[%s2 + $0x3c8] sm:$0xff]
    %v175 = vld [vmem:[%s2 + $0x3d0] sm:$0xff]
    %v176 = vld [vmem:[%s2 + $0x3d8] sm:$0xff]
    %v177 = vld [vmem:[%s2 + $0x3e0] sm:$0xff]
    %v178 = vld [vmem:[%s2 + $0x3e8] sm:$0xff]
    %v179 = vld [vmem:[%s2 + $0x3f0] sm:$0xff]
    %v180 = vld [vmem:[%s2 + $0x3f8] sm:$0xff]
    %v181 = vmul.f32 %v21, %v37
    %v182 = vmul.f32 %v22, %v38
    %v183 = vmul.f32 %v23, %v39
    %v184 = vmul.f32 %v24, %v40
    %v185 = vmul.f32 %v25, %v41
    %v186 = vmul.f32 %v26, %v42
    %v187 = vmul.f32 %v27, %v43
    %v188 = vmul.f32 %v28, %v44
    %v189 = vmul.f32 %v29, %v45
    %v190 = vmul.f32 %v30, %v46
    %v191 = vmul.f32 %v31, %v47
    %v192 = vmul.f32 %v32, %v48
    %v193 = vmul.f32 %v33, %v49
    %v194 = vmul.f32 %v34, %v50
    %v195 = vmul.f32 %v35, %v51
    %v196 = vmul.f32 %v36, %v52
    %vm197 = vcmask 261120
    %v198 = vsel %vm197, %v181, 0.0
    %199 = vadd.xlane.f32.xlu0 %v198
    %v200 = vpop.xlane.xlu0 %199
    %v201 = vsel %vm197, %v182, 0.0
    %202 = vadd.xlane.f32.xlu0 %v201
    %v203 = vpop.xlane.xlu0 %202
    %v204 = vsel %vm197, %v183, 0.0
    %205 = vadd.xlane.f32.xlu0 %v204
    %v206 = vpop.xlane.xlu0 %205
    %v207 = vsel %vm197, %v184, 0.0
    %208 = vadd.xlane.f32.xlu0 %v207
    %v209 = vpop.xlane.xlu0 %208
    %v210 = vsel %vm197, %v185, 0.0
    %211 = vadd.xlane.f32.xlu0 %v210
    %v212 = vpop.xlane.xlu0 %211
    %v213 = vsel %vm197, %v186, 0.0
    %214 = vadd.xlane.f32.xlu0 %v213
    %v215 = vpop.xlane.xlu0 %214
    %v216 = vsel %vm197, %v187, 0.0
    %217 = vadd.xlane.f32.xlu0 %v216
    %v218 = vpop.xlane.xlu0 %217
    %v219 = vsel %vm197, %v188, 0.0
    %220 = vadd.xlane.f32.xlu0 %v219
    %v221 = vpop.xlane.xlu0 %220
    %v222 = vsel %vm197, %v189, 0.0
    %223 = vadd.xlane.f32.xlu0 %v222
    %v224 = vpop.xlane.xlu0 %223
    %v225 = vsel %vm197, %v190, 0.0
    %226 = vadd.xlane.f32.xlu0 %v225
    %v227 = vpop.xlane.xlu0 %226
    %v228 = vsel %vm197, %v191, 0.0
    %229 = vadd.xlane.f32.xlu0 %v228
    %v230 = vpop.xlane.xlu0 %229
    %v231 = vsel %vm197, %v192, 0.0
    %232 = vadd.xlane.f32.xlu0 %v231
    %v233 = vpop.xlane.xlu0 %232
    %v234 = vsel %vm197, %v193, 0.0
    %235 = vadd.xlane.f32.xlu0 %v234
    %v236 = vpop.xlane.xlu0 %235
    %v237 = vsel %vm197, %v194, 0.0
    %238 = vadd.xlane.f32.xlu0 %v237
    %v239 = vpop.xlane.xlu0 %238
    %v240 = vsel %vm197, %v195, 0.0
    %241 = vadd.xlane.f32.xlu0 %v240
    %v242 = vpop.xlane.xlu0 %241
    %v243 = vsel %vm197, %v196, 0.0
    %244 = vadd.xlane.f32.xlu0 %v243
    %v245 = vpop.xlane.xlu0 %244
    %v246 = vmul.f32 %v200, 14.285714
    %v247 = vmul.f32 %v203, 14.285714
    %v248 = vmul.f32 %v206, 14.285714
    %v249 = vmul.f32 %v209, 14.285714
    %v250 = vmul.f32 %v212, 14.285714
    %v251 = vmul.f32 %v215, 14.285714
    %v252 = vmul.f32 %v218, 14.285714
    %v253 = vmul.f32 %v221, 14.285714
    %v254 = vmul.f32 %v224, 14.285714
    %v255 = vmul.f32 %v227, 14.285714
    %v256 = vmul.f32 %v230, 14.285714
    %v257 = vmul.f32 %v233, 14.285714
    %v258 = vmul.f32 %v236, 14.285714
    %v259 = vmul.f32 %v239, 14.285714
    %v260 = vmul.f32 %v242, 14.285714
    %v261 = vmul.f32 %v245, 14.285714
    %v262 = vmul.f32 %v246, 1.442695
    %v263 = vpow.pop %v262
    %v264 = vmul.f32 %v247, 1.442695
    %v265 = vpow.pop %v264
    %v266 = vmul.f32 %v248, 1.442695
    %v267 = vpow.pop %v266
    %v268 = vmul.f32 %v249, 1.442695
    %v269 = vpow.pop %v268
    %v270 = vmul.f32 %v250, 1.442695
    %v271 = vpow.pop %v270
    %v272 = vmul.f32 %v251, 1.442695
    %v273 = vpow.pop %v272
    %v274 = vmul.f32 %v252, 1.442695
    %v275 = vpow.pop %v274
    %v276 = vmul.f32 %v253, 1.442695
    %v277 = vpow.pop %v276
    %v278 = vmul.f32 %v254, 1.442695
    %v279 = vpow.pop %v278
    %v280 = vmul.f32 %v255, 1.442695
    %v281 = vpow.pop %v280
    %v282 = vmul.f32 %v256, 1.442695
    %v283 = vpow.pop %v282
    %v284 = vmul.f32 %v257, 1.442695
    %v285 = vpow.pop %v284
    %v286 = vmul.f32 %v258, 1.442695
    %v287 = vpow.pop %v286
    %v288 = vmul.f32 %v259, 1.442695
    %v289 = vpow.pop %v288
    %v290 = vmul.f32 %v260, 1.442695
    %v291 = vpow.pop %v290
    %v292 = vmul.f32 %v261, 1.442695
    %v293 = vpow.pop %v292
    %v294 = vmul.f32 %v53, %v21
    %v295 = vmul.f32 %v54, %v22
    %v296 = vmul.f32 %v55, %v23
    %v297 = vmul.f32 %v56, %v24
    %v298 = vmul.f32 %v57, %v25
    %v299 = vmul.f32 %v58, %v26
    %v300 = vmul.f32 %v59, %v27
    %v301 = vmul.f32 %v60, %v28
    %v302 = vmul.f32 %v61, %v29
    %v303 = vmul.f32 %v62, %v30
    %v304 = vmul.f32 %v63, %v31
    %v305 = vmul.f32 %v64, %v32
    %v306 = vmul.f32 %v65, %v33
    %v307 = vmul.f32 %v66, %v34
    %v308 = vmul.f32 %v67, %v35
    %v309 = vmul.f32 %v68, %v36
    %v310 = vmul.f32 %v69, %v21
    %v311 = vmul.f32 %v70, %v22
    %v312 = vmul.f32 %v71, %v23
    %v313 = vmul.f32 %v72, %v24
    %v314 = vmul.f32 %v73, %v25
    %v315 = vmul.f32 %v74, %v26
    %v316 = vmul.f32 %v75, %v27
    %v317 = vmul.f32 %v76, %v28
    %v318 = vmul.f32 %v77, %v29
    %v319 = vmul.f32 %v78, %v30
    %v320 = vmul.f32 %v79, %v31
    %v321 = vmul.f32 %v80, %v32
    %v322 = vmul.f32 %v81, %v33
    %v323 = vmul.f32 %v82, %v34
    %v324 = vmul.f32 %v83, %v35
    %v325 = vmul.f32 %v84, %v36
    %v326 = vmul.f32 %v85, %v21
    %v327 = vmul.f32 %v86, %v22
    %v328 = vmul.f32 %v87, %v23
    %v329 = vmul.f32 %v88, %v24
    %v330 = vmul.f32 %v89, %v25
    %v331 = vmul.f32 %v90, %v26
    %v332 = vmul.f32 %v91, %v27
    %v333 = vmul.f32 %v92, %v28
    %v334 = vmul.f32 %v93, %v29
    %v335 = vmul.f32 %v94, %v30
    %v336 = vmul.f32 %v95, %v31
    %v337 = vmul.f32 %v96, %v32
    %v338 = vmul.f32 %v97, %v33
    %v339 = vmul.f32 %v98, %v34
    %v340 = vmul.f32 %v99, %v35
    %v341 = vmul.f32 %v100, %v36
    %v342 = vmul.f32 %v101, %v21
    %v343 = vmul.f32 %v102, %v22
    %v344 = vmul.f32 %v103, %v23
    %v345 = vmul.f32 %v104, %v24
    %v346 = vmul.f32 %v105, %v25
    %v347 = vmul.f32 %v106, %v26
    %v348 = vmul.f32 %v107, %v27
    %v349 = vmul.f32 %v108, %v28
    %v350 = vmul.f32 %v109, %v29
    %v351 = vmul.f32 %v110, %v30
    %v352 = vmul.f32 %v111, %v31
    %v353 = vmul.f32 %v112, %v32
    %v354 = vmul.f32 %v113, %v33
    %v355 = vmul.f32 %v114, %v34
    %v356 = vmul.f32 %v115, %v35
    %v357 = vmul.f32 %v116, %v36
    %v358 = vmul.f32 %v117, %v21
    %v359 = vmul.f32 %v118, %v22
    %v360 = vmul.f32 %v119, %v23
    %v361 = vmul.f32 %v120, %v24
    %v362 = vmul.f32 %v121, %v25
    %v363 = vmul.f32 %v122, %v26
    %v364 = vmul.f32 %v123, %v27
    %v365 = vmul.f32 %v124, %v28
    %v366 = vmul.f32 %v125, %v29
    %v367 = vmul.f32 %v126, %v30
    %v368 = vmul.f32 %v127, %v31
    %v369 = vmul.f32 %v128, %v32
    %v370 = vmul.f32 %v129, %v33
    %v371 = vmul.f32 %v130, %v34
    %v372 = vmul.f32 %v131, %v35
    %v373 = vmul.f32 %v132, %v36
    %v374 = vmul.f32 %v133, %v21
    %v375 = vmul.f32 %v134, %v22
    %v376 = vmul.f32 %v135, %v23
    %v377 = vmul.f32 %v136, %v24
    %v378 = vmul.f32 %v137, %v25
    %v379 = vmul.f32 %v138, %v26
    %v380 = vmul.f32 %v139, %v27
    %v381 = vmul.f32 %v140, %v28
    %v382 = vmul.f32 %v141, %v29
    %v383 = vmul.f32 %v142, %v30
    %v384 = vmul.f32 %v143, %v31
    %v385 = vmul.f32 %v144, %v32
    %v386 = vmul.f32 %v145, %v33
    %v387 = vmul.f32 %v146, %v34
    %v388 = vmul.f32 %v147, %v35
    %v389 = vmul.f32 %v148, %v36
    %v390 = vmul.f32 %v149, %v21
    %v391 = vmul.f32 %v150, %v22
    %v392 = vmul.f32 %v151, %v23
    %v393 = vmul.f32 %v152, %v24
    %v394 = vmul.f32 %v153, %v25
    %v395 = vmul.f32 %v154, %v26
    %v396 = vmul.f32 %v155, %v27
    %v397 = vmul.f32 %v156, %v28
    %v398 = vmul.f32 %v157, %v29
    %v399 = vmul.f32 %v158, %v30
    %v400 = vmul.f32 %v159, %v31
    %v401 = vmul.f32 %v160, %v32
    %v402 = vmul.f32 %v161, %v33
    %v403 = vmul.f32 %v162, %v34
    %v404 = vmul.f32 %v163, %v35
    %v405 = vmul.f32 %v164, %v36
    %v406 = vmul.f32 %v165, %v21
    %v407 = vmul.f32 %v166, %v22
    %v408 = vmul.f32 %v167, %v23
    %v409 = vmul.f32 %v168, %v24
    %v410 = vmul.f32 %v169, %v25
    %v411 = vmul.f32 %v170, %v26
    %v412 = vmul.f32 %v171, %v27
    %v413 = vmul.f32 %v172, %v28
    %v414 = vmul.f32 %v173, %v29
    %v415 = vmul.f32 %v174, %v30
    %v416 = vmul.f32 %v175, %v31
    %v417 = vmul.f32 %v176, %v32
    %v418 = vmul.f32 %v177, %v33
    %v419 = vmul.f32 %v178, %v34
    %v420 = vmul.f32 %v179, %v35
    %v421 = vmul.f32 %v180, %v36
    %v422 = vsel %vm197, %v294, 0.0
    %423 = vadd.xlane.f32.xlu0 %v422
    %v424 = vpop.xlane.xlu0 %423
    %v425 = vsel %vm197, %v295, 0.0
    %426 = vadd.xlane.f32.xlu0 %v425
    %v427 = vpop.xlane.xlu0 %426
    %v428 = vsel %vm197, %v296, 0.0
    %429 = vadd.xlane.f32.xlu0 %v428
    %v430 = vpop.xlane.xlu0 %429
    %v431 = vsel %vm197, %v297, 0.0
    %432 = vadd.xlane.f32.xlu0 %v431
    %v433 = vpop.xlane.xlu0 %432
    %v434 = vsel %vm197, %v298, 0.0
    %435 = vadd.xlane.f32.xlu0 %v434
    %v436 = vpop.xlane.xlu0 %435
    %v437 = vsel %vm197, %v299, 0.0
    %438 = vadd.xlane.f32.xlu0 %v437
    %v439 = vpop.xlane.xlu0 %438
    %v440 = vsel %vm197, %v300, 0.0
    %441 = vadd.xlane.f32.xlu0 %v440
    %v442 = vpop.xlane.xlu0 %441
    %v443 = vsel %vm197, %v301, 0.0
    %444 = vadd.xlane.f32.xlu0 %v443
    %v445 = vpop.xlane.xlu0 %444
    %v446 = vsel %vm197, %v302, 0.0
    %447 = vadd.xlane.f32.xlu0 %v446
    %v448 = vpop.xlane.xlu0 %447
    %v449 = vsel %vm197, %v303, 0.0
    %450 = vadd.xlane.f32.xlu0 %v449
    %v451 = vpop.xlane.xlu0 %450
    %v452 = vsel %vm197, %v304, 0.0
    %453 = vadd.xlane.f32.xlu0 %v452
    %v454 = vpop.xlane.xlu0 %453
    %v455 = vsel %vm197, %v305, 0.0
    %456 = vadd.xlane.f32.xlu0 %v455
    %v457 = vpop.xlane.xlu0 %456
    %v458 = vsel %vm197, %v306, 0.0
    %459 = vadd.xlane.f32.xlu0 %v458
    %v460 = vpop.xlane.xlu0 %459
    %v461 = vsel %vm197, %v307, 0.0
    %462 = vadd.xlane.f32.xlu0 %v461
    %v463 = vpop.xlane.xlu0 %462
    %v464 = vsel %vm197, %v308, 0.0
    %465 = vadd.xlane.f32.xlu0 %v464
    %v466 = vpop.xlane.xlu0 %465
    %v467 = vsel %vm197, %v309, 0.0
    %468 = vadd.xlane.f32.xlu0 %v467
    %v469 = vpop.xlane.xlu0 %468
    %v470 = vsel %vm197, %v310, 0.0
    %471 = vadd.xlane.f32.xlu0 %v470
    %v472 = vpop.xlane.xlu0 %471
    %v473 = vsel %vm197, %v311, 0.0
    %474 = vadd.xlane.f32.xlu0 %v473
    %v475 = vpop.xlane.xlu0 %474
    %v476 = vsel %vm197, %v312, 0.0
    %477 = vadd.xlane.f32.xlu0 %v476
    %v478 = vpop.xlane.xlu0 %477
    %v479 = vsel %vm197, %v313, 0.0
    %480 = vadd.xlane.f32.xlu0 %v479
    %v481 = vpop.xlane.xlu0 %480
    %v482 = vsel %vm197, %v314, 0.0
    %483 = vadd.xlane.f32.xlu0 %v482
    %v484 = vpop.xlane.xlu0 %483
    %v485 = vsel %vm197, %v315, 0.0
    %486 = vadd.xlane.f32.xlu0 %v485
    %v487 = vpop.xlane.xlu0 %486
    %v488 = vsel %vm197, %v316, 0.0
    %489 = vadd.xlane.f32.xlu0 %v488
    %v490 = vpop.xlane.xlu0 %489
    %v491 = vsel %vm197, %v317, 0.0
    %492 = vadd.xlane.f32.xlu0 %v491
    %v493 = vpop.xlane.xlu0 %492
    %v494 = vsel %vm197, %v318, 0.0
    %495 = vadd.xlane.f32.xlu0 %v494
    %v496 = vpop.xlane.xlu0 %495
    %v497 = vsel %vm197, %v319, 0.0
    %498 = vadd.xlane.f32.xlu0 %v497
    %v499 = vpop.xlane.xlu0 %498
    %v500 = vsel %vm197, %v320, 0.0
    %501 = vadd.xlane.f32.xlu0 %v500
    %v502 = vpop.xlane.xlu0 %501
    %v503 = vsel %vm197, %v321, 0.0
    %504 = vadd.xlane.f32.xlu0 %v503
    %v505 = vpop.xlane.xlu0 %504
    %v506 = vsel %vm197, %v322, 0.0
    %507 = vadd.xlane.f32.xlu0 %v506
    %v508 = vpop.xlane.xlu0 %507
    %v509 = vsel %vm197, %v323, 0.0
    %510 = vadd.xlane.f32.xlu0 %v509
    %v511 = vpop.xlane.xlu0 %510
    %v512 = vsel %vm197, %v324, 0.0
    %513 = vadd.xlane.f32.xlu0 %v512
    %v514 = vpop.xlane.xlu0 %513
    %v515 = vsel %vm197, %v325, 0.0
    %516 = vadd.xlane.f32.xlu0 %v515
    %v517 = vpop.xlane.xlu0 %516
    %v518 = vsel %vm197, %v326, 0.0
    %519 = vadd.xlane.f32.xlu0 %v518
    %v520 = vpop.xlane.xlu0 %519
    %v521 = vsel %vm197, %v327, 0.0
    %522 = vadd.xlane.f32.xlu0 %v521
    %v523 = vpop.xlane.xlu0 %522
    %v524 = vsel %vm197, %v328, 0.0
    %525 = vadd.xlane.f32.xlu0 %v524
    %v526 = vpop.xlane.xlu0 %525
    %v527 = vsel %vm197, %v329, 0.0
    %528 = vadd.xlane.f32.xlu0 %v527
    %v529 = vpop.xlane.xlu0 %528
    %v530 = vsel %vm197, %v330, 0.0
    %531 = vadd.xlane.f32.xlu0 %v530
    %v532 = vpop.xlane.xlu0 %531
    %v533 = vsel %vm197, %v331, 0.0
    %534 = vadd.xlane.f32.xlu0 %v533
    %v535 = vpop.xlane.xlu0 %534
    %v536 = vsel %vm197, %v332, 0.0
    %537 = vadd.xlane.f32.xlu0 %v536
    %v538 = vpop.xlane.xlu0 %537
    %v539 = vsel %vm197, %v333, 0.0
    %540 = vadd.xlane.f32.xlu0 %v539
    %v541 = vpop.xlane.xlu0 %540
    %v542 = vsel %vm197, %v334, 0.0
    %543 = vadd.xlane.f32.xlu0 %v542
    %v544 = vpop.xlane.xlu0 %543
    %v545 = vsel %vm197, %v335, 0.0
    %546 = vadd.xlane.f32.xlu0 %v545
    %v547 = vpop.xlane.xlu0 %546
    %v548 = vsel %vm197, %v336, 0.0
    %549 = vadd.xlane.f32.xlu0 %v548
    %v550 = vpop.xlane.xlu0 %549
    %v551 = vsel %vm197, %v337, 0.0
    %552 = vadd.xlane.f32.xlu0 %v551
    %v553 = vpop.xlane.xlu0 %552
    %v554 = vsel %vm197, %v338, 0.0
    %555 = vadd.xlane.f32.xlu0 %v554
    %v556 = vpop.xlane.xlu0 %555
    %v557 = vsel %vm197, %v339, 0.0
    %558 = vadd.xlane.f32.xlu0 %v557
    %v559 = vpop.xlane.xlu0 %558
    %v560 = vsel %vm197, %v340, 0.0
    %561 = vadd.xlane.f32.xlu0 %v560
    %v562 = vpop.xlane.xlu0 %561
    %v563 = vsel %vm197, %v341, 0.0
    %564 = vadd.xlane.f32.xlu0 %v563
    %v565 = vpop.xlane.xlu0 %564
    %v566 = vsel %vm197, %v342, 0.0
    %567 = vadd.xlane.f32.xlu0 %v566
    %v568 = vpop.xlane.xlu0 %567
    %v569 = vsel %vm197, %v343, 0.0
    %570 = vadd.xlane.f32.xlu0 %v569
    %v571 = vpop.xlane.xlu0 %570
    %v572 = vsel %vm197, %v344, 0.0
    %573 = vadd.xlane.f32.xlu0 %v572
    %v574 = vpop.xlane.xlu0 %573
    %v575 = vsel %vm197, %v345, 0.0
    %576 = vadd.xlane.f32.xlu0 %v575
    %v577 = vpop.xlane.xlu0 %576
    %v578 = vsel %vm197, %v346, 0.0
    %579 = vadd.xlane.f32.xlu0 %v578
    %v580 = vpop.xlane.xlu0 %579
    %v581 = vsel %vm197, %v347, 0.0
    %582 = vadd.xlane.f32.xlu0 %v581
    %v583 = vpop.xlane.xlu0 %582
    %v584 = vsel %vm197, %v348, 0.0
    %585 = vadd.xlane.f32.xlu0 %v584
    %v586 = vpop.xlane.xlu0 %585
    %v587 = vsel %vm197, %v349, 0.0
    %588 = vadd.xlane.f32.xlu0 %v587
    %v589 = vpop.xlane.xlu0 %588
    %v590 = vsel %vm197, %v350, 0.0
    %591 = vadd.xlane.f32.xlu0 %v590
    %v592 = vpop.xlane.xlu0 %591
    %v593 = vsel %vm197, %v351, 0.0
    %594 = vadd.xlane.f32.xlu0 %v593
    %v595 = vpop.xlane.xlu0 %594
    %v596 = vsel %vm197, %v352, 0.0
    %597 = vadd.xlane.f32.xlu0 %v596
    %v598 = vpop.xlane.xlu0 %597
    %v599 = vsel %vm197, %v353, 0.0
    %600 = vadd.xlane.f32.xlu0 %v599
    %v601 = vpop.xlane.xlu0 %600
    %v602 = vsel %vm197, %v354, 0.0
    %603 = vadd.xlane.f32.xlu0 %v602
    %v604 = vpop.xlane.xlu0 %603
    %v605 = vsel %vm197, %v355, 0.0
    %606 = vadd.xlane.f32.xlu0 %v605
    %v607 = vpop.xlane.xlu0 %606
    %v608 = vsel %vm197, %v356, 0.0
    %609 = vadd.xlane.f32.xlu0 %v608
    %v610 = vpop.xlane.xlu0 %609
    %v611 = vsel %vm197, %v357, 0.0
    %612 = vadd.xlane.f32.xlu0 %v611
    %v613 = vpop.xlane.xlu0 %612
    %v614 = vsel %vm197, %v358, 0.0
    %615 = vadd.xlane.f32.xlu0 %v614
    %v616 = vpop.xlane.xlu0 %615
    %v617 = vsel %vm197, %v359, 0.0
    %618 = vadd.xlane.f32.xlu0 %v617
    %v619 = vpop.xlane.xlu0 %618
    %v620 = vsel %vm197, %v360, 0.0
    %621 = vadd.xlane.f32.xlu0 %v620
    %v622 = vpop.xlane.xlu0 %621
    %v623 = vsel %vm197, %v361, 0.0
    %624 = vadd.xlane.f32.xlu0 %v623
    %v625 = vpop.xlane.xlu0 %624
    %v626 = vsel %vm197, %v362, 0.0
    %627 = vadd.xlane.f32.xlu0 %v626
    %v628 = vpop.xlane.xlu0 %627
    %v629 = vsel %vm197, %v363, 0.0
    %630 = vadd.xlane.f32.xlu0 %v629
    %v631 = vpop.xlane.xlu0 %630
    %v632 = vsel %vm197, %v364, 0.0
    %633 = vadd.xlane.f32.xlu0 %v632
    %v634 = vpop.xlane.xlu0 %633
    %v635 = vsel %vm197, %v365, 0.0
    %636 = vadd.xlane.f32.xlu0 %v635
    %v637 = vpop.xlane.xlu0 %636
    %v638 = vsel %vm197, %v366, 0.0
    %639 = vadd.xlane.f32.xlu0 %v638
    %v640 = vpop.xlane.xlu0 %639
    %v641 = vsel %vm197, %v367, 0.0
    %642 = vadd.xlane.f32.xlu0 %v641
    %v643 = vpop.xlane.xlu0 %642
    %v644 = vsel %vm197, %v368, 0.0
    %645 = vadd.xlane.f32.xlu0 %v644
    %v646 = vpop.xlane.xlu0 %645
    %v647 = vsel %vm197, %v369, 0.0
    %648 = vadd.xlane.f32.xlu0 %v647
    %v649 = vpop.xlane.xlu0 %648
    %v650 = vsel %vm197, %v370, 0.0
    %651 = vadd.xlane.f32.xlu0 %v650
    %v652 = vpop.xlane.xlu0 %651
    %v653 = vsel %vm197, %v371, 0.0
    %654 = vadd.xlane.f32.xlu0 %v653
    %v655 = vpop.xlane.xlu0 %654
    %v656 = vsel %vm197, %v372, 0.0
    %657 = vadd.xlane.f32.xlu0 %v656
    %v658 = vpop.xlane.xlu0 %657
    %v659 = vsel %vm197, %v373, 0.0
    %660 = vadd.xlane.f32.xlu0 %v659
    %v661 = vpop.xlane.xlu0 %660
    %v662 = vsel %vm197, %v374, 0.0
    %663 = vadd.xlane.f32.xlu0 %v662
    %v664 = vpop.xlane.xlu0 %663
    %v665 = vsel %vm197, %v375, 0.0
    %666 = vadd.xlane.f32.xlu0 %v665
    %v667 = vpop.xlane.xlu0 %666
    %v668 = vsel %vm197, %v376, 0.0
    %669 = vadd.xlane.f32.xlu0 %v668
    %v670 = vpop.xlane.xlu0 %669
    %v671 = vsel %vm197, %v377, 0.0
    %672 = vadd.xlane.f32.xlu0 %v671
    %v673 = vpop.xlane.xlu0 %672
    %v674 = vsel %vm197, %v378, 0.0
    %675 = vadd.xlane.f32.xlu0 %v674
    %v676 = vpop.xlane.xlu0 %675
    %v677 = vsel %vm197, %v379, 0.0
    %678 = vadd.xlane.f32.xlu0 %v677
    %v679 = vpop.xlane.xlu0 %678
    %v680 = vsel %vm197, %v380, 0.0
    %681 = vadd.xlane.f32.xlu0 %v680
    %v682 = vpop.xlane.xlu0 %681
    %v683 = vsel %vm197, %v381, 0.0
    %684 = vadd.xlane.f32.xlu0 %v683
    %v685 = vpop.xlane.xlu0 %684
    %v686 = vsel %vm197, %v382, 0.0
    %687 = vadd.xlane.f32.xlu0 %v686
    %v688 = vpop.xlane.xlu0 %687
    %v689 = vsel %vm197, %v383, 0.0
    %690 = vadd.xlane.f32.xlu0 %v689
    %v691 = vpop.xlane.xlu0 %690
    %v692 = vsel %vm197, %v384, 0.0
    %693 = vadd.xlane.f32.xlu0 %v692
    %v694 = vpop.xlane.xlu0 %693
    %v695 = vsel %vm197, %v385, 0.0
    %696 = vadd.xlane.f32.xlu0 %v695
    %v697 = vpop.xlane.xlu0 %696
    %v698 = vsel %vm197, %v386, 0.0
    %699 = vadd.xlane.f32.xlu0 %v698
    %v700 = vpop.xlane.xlu0 %699
    %v701 = vsel %vm197, %v387, 0.0
    %702 = vadd.xlane.f32.xlu0 %v701
    %v703 = vpop.xlane.xlu0 %702
    %v704 = vsel %vm197, %v388, 0.0
    %705 = vadd.xlane.f32.xlu0 %v704
    %v706 = vpop.xlane.xlu0 %705
    %v707 = vsel %vm197, %v389, 0.0
    %708 = vadd.xlane.f32.xlu0 %v707
    %v709 = vpop.xlane.xlu0 %708
    %v710 = vsel %vm197, %v390, 0.0
    %711 = vadd.xlane.f32.xlu0 %v710
    %v712 = vpop.xlane.xlu0 %711
    %v713 = vsel %vm197, %v391, 0.0
    %714 = vadd.xlane.f32.xlu0 %v713
    %v715 = vpop.xlane.xlu0 %714
    %v716 = vsel %vm197, %v392, 0.0
    %717 = vadd.xlane.f32.xlu0 %v716
    %v718 = vpop.xlane.xlu0 %717
    %v719 = vsel %vm197, %v393, 0.0
    %720 = vadd.xlane.f32.xlu0 %v719
    %v721 = vpop.xlane.xlu0 %720
    %v722 = vsel %vm197, %v394, 0.0
    %723 = vadd.xlane.f32.xlu0 %v722
    %v724 = vpop.xlane.xlu0 %723
    %v725 = vsel %vm197, %v395, 0.0
    %726 = vadd.xlane.f32.xlu0 %v725
    %v727 = vpop.xlane.xlu0 %726
    %v728 = vsel %vm197, %v396, 0.0
    %729 = vadd.xlane.f32.xlu0 %v728
    %v730 = vpop.xlane.xlu0 %729
    %v731 = vsel %vm197, %v397, 0.0
    %732 = vadd.xlane.f32.xlu0 %v731
    %v733 = vpop.xlane.xlu0 %732
    %v734 = vsel %vm197, %v398, 0.0
    %735 = vadd.xlane.f32.xlu0 %v734
    %v736 = vpop.xlane.xlu0 %735
    %v737 = vsel %vm197, %v399, 0.0
    %738 = vadd.xlane.f32.xlu0 %v737
    %v739 = vpop.xlane.xlu0 %738
    %v740 = vsel %vm197, %v400, 0.0
    %741 = vadd.xlane.f32.xlu0 %v740
    %v742 = vpop.xlane.xlu0 %741
    %v743 = vsel %vm197, %v401, 0.0
    %744 = vadd.xlane.f32.xlu0 %v743
    %v745 = vpop.xlane.xlu0 %744
    %v746 = vsel %vm197, %v402, 0.0
    %747 = vadd.xlane.f32.xlu0 %v746
    %v748 = vpop.xlane.xlu0 %747
    %v749 = vsel %vm197, %v403, 0.0
    %750 = vadd.xlane.f32.xlu0 %v749
    %v751 = vpop.xlane.xlu0 %750
    %v752 = vsel %vm197, %v404, 0.0
    %753 = vadd.xlane.f32.xlu0 %v752
    %v754 = vpop.xlane.xlu0 %753
    %v755 = vsel %vm197, %v405, 0.0
    %756 = vadd.xlane.f32.xlu0 %v755
    %v757 = vpop.xlane.xlu0 %756
    %v758 = vsel %vm197, %v406, 0.0
    %759 = vadd.xlane.f32.xlu0 %v758
    %v760 = vpop.xlane.xlu0 %759
    %v761 = vsel %vm197, %v407, 0.0
    %762 = vadd.xlane.f32.xlu0 %v761
    %v763 = vpop.xlane.xlu0 %762
    %v764 = vsel %vm197, %v408, 0.0
    %765 = vadd.xlane.f32.xlu0 %v764
    %v766 = vpop.xlane.xlu0 %765
    %v767 = vsel %vm197, %v409, 0.0
    %768 = vadd.xlane.f32.xlu0 %v767
    %v769 = vpop.xlane.xlu0 %768
    %v770 = vsel %vm197, %v410, 0.0
    %771 = vadd.xlane.f32.xlu0 %v770
    %v772 = vpop.xlane.xlu0 %771
    %v773 = vsel %vm197, %v411, 0.0
    %774 = vadd.xlane.f32.xlu0 %v773
    %v775 = vpop.xlane.xlu0 %774
    %v776 = vsel %vm197, %v412, 0.0
    %777 = vadd.xlane.f32.xlu0 %v776
    %v778 = vpop.xlane.xlu0 %777
    %v779 = vsel %vm197, %v413, 0.0
    %780 = vadd.xlane.f32.xlu0 %v779
    %v781 = vpop.xlane.xlu0 %780
    %v782 = vsel %vm197, %v414, 0.0
    %783 = vadd.xlane.f32.xlu0 %v782
    %v784 = vpop.xlane.xlu0 %783
    %v785 = vsel %vm197, %v415, 0.0
    %786 = vadd.xlane.f32.xlu0 %v785
    %v787 = vpop.xlane.xlu0 %786
    %v788 = vsel %vm197, %v416, 0.0
    %789 = vadd.xlane.f32.xlu0 %v788
    %v790 = vpop.xlane.xlu0 %789
    %v791 = vsel %vm197, %v417, 0.0
    %792 = vadd.xlane.f32.xlu0 %v791
    %v793 = vpop.xlane.xlu0 %792
    %v794 = vsel %vm197, %v418, 0.0
    %795 = vadd.xlane.f32.xlu0 %v794
    %v796 = vpop.xlane.xlu0 %795
    %v797 = vsel %vm197, %v419, 0.0
    %798 = vadd.xlane.f32.xlu0 %v797
    %v799 = vpop.xlane.xlu0 %798
    %v800 = vsel %vm197, %v420, 0.0
    %801 = vadd.xlane.f32.xlu0 %v800
    %v802 = vpop.xlane.xlu0 %801
    %v803 = vsel %vm197, %v421, 0.0
    %804 = vadd.xlane.f32.xlu0 %v803
    %v805 = vpop.xlane.xlu0 %804
    %v806 = vmul.f32 %v53, %v37
    %v807 = vmul.f32 %v54, %v38
    %v808 = vmul.f32 %v55, %v39
    %v809 = vmul.f32 %v56, %v40
    %v810 = vmul.f32 %v57, %v41
    %v811 = vmul.f32 %v58, %v42
    %v812 = vmul.f32 %v59, %v43
    %v813 = vmul.f32 %v60, %v44
    %v814 = vmul.f32 %v61, %v45
    %v815 = vmul.f32 %v62, %v46
    %v816 = vmul.f32 %v63, %v47
    %v817 = vmul.f32 %v64, %v48
    %v818 = vmul.f32 %v65, %v49
    %v819 = vmul.f32 %v66, %v50
    %v820 = vmul.f32 %v67, %v51
    %v821 = vmul.f32 %v68, %v52
    %v822 = vmul.f32 %v69, %v37
    %v823 = vmul.f32 %v70, %v38
    %v824 = vmul.f32 %v71, %v39
    %v825 = vmul.f32 %v72, %v40
    %v826 = vmul.f32 %v73, %v41
    %v827 = vmul.f32 %v74, %v42
    %v828 = vmul.f32 %v75, %v43
    %v829 = vmul.f32 %v76, %v44
    %v830 = vmul.f32 %v77, %v45
    %v831 = vmul.f32 %v78, %v46
    %v832 = vmul.f32 %v79, %v47
    %v833 = vmul.f32 %v80, %v48
    %v834 = vmul.f32 %v81, %v49
    %v835 = vmul.f32 %v82, %v50
    %v836 = vmul.f32 %v83, %v51
    %v837 = vmul.f32 %v84, %v52
    %v838 = vmul.f32 %v85, %v37
    %v839 = vmul.f32 %v86, %v38
    %v840 = vmul.f32 %v87, %v39
    %v841 = vmul.f32 %v88, %v40
    %v842 = vmul.f32 %v89, %v41
    %v843 = vmul.f32 %v90, %v42
    %v844 = vmul.f32 %v91, %v43
    %v845 = vmul.f32 %v92, %v44
    %v846 = vmul.f32 %v93, %v45
    %v847 = vmul.f32 %v94, %v46
    %v848 = vmul.f32 %v95, %v47
    %v849 = vmul.f32 %v96, %v48
    %v850 = vmul.f32 %v97, %v49
    %v851 = vmul.f32 %v98, %v50
    %v852 = vmul.f32 %v99, %v51
    %v853 = vmul.f32 %v100, %v52
    %v854 = vmul.f32 %v101, %v37
    %v855 = vmul.f32 %v102, %v38
    %v856 = vmul.f32 %v103, %v39
    %v857 = vmul.f32 %v104, %v40
    %v858 = vmul.f32 %v105, %v41
    %v859 = vmul.f32 %v106, %v42
    %v860 = vmul.f32 %v107, %v43
    %v861 = vmul.f32 %v108, %v44
    %v862 = vmul.f32 %v109, %v45
    %v863 = vmul.f32 %v110, %v46
    %v864 = vmul.f32 %v111, %v47
    %v865 = vmul.f32 %v112, %v48
    %v866 = vmul.f32 %v113, %v49
    %v867 = vmul.f32 %v114, %v50
    %v868 = vmul.f32 %v115, %v51
    %v869 = vmul.f32 %v116, %v52
    %v870 = vmul.f32 %v117, %v37
    %v871 = vmul.f32 %v118, %v38
    %v872 = vmul.f32 %v119, %v39
    %v873 = vmul.f32 %v120, %v40
    %v874 = vmul.f32 %v121, %v41
    %v875 = vmul.f32 %v122, %v42
    %v876 = vmul.f32 %v123, %v43
    %v877 = vmul.f32 %v124, %v44
    %v878 = vmul.f32 %v125, %v45
    %v879 = vmul.f32 %v126, %v46
    %v880 = vmul.f32 %v127, %v47
    %v881 = vmul.f32 %v128, %v48
    %v882 = vmul.f32 %v129, %v49
    %v883 = vmul.f32 %v130, %v50
    %v884 = vmul.f32 %v131, %v51
    %v885 = vmul.f32 %v132, %v52
    %v886 = vmul.f32 %v133, %v37
    %v887 = vmul.f32 %v134, %v38
    %v888 = vmul.f32 %v135, %v39
    %v889 = vmul.f32 %v136, %v40
    %v890 = vmul.f32 %v137, %v41
    %v891 = vmul.f32 %v138, %v42
    %v892 = vmul.f32 %v139, %v43
    %v893 = vmul.f32 %v140, %v44
    %v894 = vmul.f32 %v141, %v45
    %v895 = vmul.f32 %v142, %v46
    %v896 = vmul.f32 %v143, %v47
    %v897 = vmul.f32 %v144, %v48
    %v898 = vmul.f32 %v145, %v49
    %v899 = vmul.f32 %v146, %v50
    %v900 = vmul.f32 %v147, %v51
    %v901 = vmul.f32 %v148, %v52
    %v902 = vmul.f32 %v149, %v37
    %v903 = vmul.f32 %v150, %v38
    %v904 = vmul.f32 %v151, %v39
    %v905 = vmul.f32 %v152, %v40
    %v906 = vmul.f32 %v153, %v41
    %v907 = vmul.f32 %v154, %v42
    %v908 = vmul.f32 %v155, %v43
    %v909 = vmul.f32 %v156, %v44
    %v910 = vmul.f32 %v157, %v45
    %v911 = vmul.f32 %v158, %v46
    %v912 = vmul.f32 %v159, %v47
    %v913 = vmul.f32 %v160, %v48
    %v914 = vmul.f32 %v161, %v49
    %v915 = vmul.f32 %v162, %v50
    %v916 = vmul.f32 %v163, %v51
    %v917 = vmul.f32 %v164, %v52
    %v918 = vmul.f32 %v165, %v37
    %v919 = vmul.f32 %v166, %v38
    %v920 = vmul.f32 %v167, %v39
    %v921 = vmul.f32 %v168, %v40
    %v922 = vmul.f32 %v169, %v41
    %v923 = vmul.f32 %v170, %v42
    %v924 = vmul.f32 %v171, %v43
    %v925 = vmul.f32 %v172, %v44
    %v926 = vmul.f32 %v173, %v45
    %v927 = vmul.f32 %v174, %v46
    %v928 = vmul.f32 %v175, %v47
    %v929 = vmul.f32 %v176, %v48
    %v930 = vmul.f32 %v177, %v49
    %v931 = vmul.f32 %v178, %v50
    %v932 = vmul.f32 %v179, %v51
    %v933 = vmul.f32 %v180, %v52
    %v934 = vsel %vm197, %v806, 0.0
    %935 = vadd.xlane.f32.xlu0 %v934
    %v936 = vpop.xlane.xlu0 %935
    %v937 = vsel %vm197, %v807, 0.0
    %938 = vadd.xlane.f32.xlu0 %v937
    %v939 = vpop.xlane.xlu0 %938
    %v940 = vsel %vm197, %v808, 0.0
    %941 = vadd.xlane.f32.xlu0 %v940
    %v942 = vpop.xlane.xlu0 %941
    %v943 = vsel %vm197, %v809, 0.0
    %944 = vadd.xlane.f32.xlu0 %v943
    %v945 = vpop.xlane.xlu0 %944
    %v946 = vsel %vm197, %v810, 0.0
    %947 = vadd.xlane.f32.xlu0 %v946
    %v948 = vpop.xlane.xlu0 %947
    %v949 = vsel %vm197, %v811, 0.0
    %950 = vadd.xlane.f32.xlu0 %v949
    %v951 = vpop.xlane.xlu0 %950
    %v952 = vsel %vm197, %v812, 0.0
    %953 = vadd.xlane.f32.xlu0 %v952
    %v954 = vpop.xlane.xlu0 %953
    %v955 = vsel %vm197, %v813, 0.0
    %956 = vadd.xlane.f32.xlu0 %v955
    %v957 = vpop.xlane.xlu0 %956
    %v958 = vsel %vm197, %v814, 0.0
    %959 = vadd.xlane.f32.xlu0 %v958
    %v960 = vpop.xlane.xlu0 %959
    %v961 = vsel %vm197, %v815, 0.0
    %962 = vadd.xlane.f32.xlu0 %v961
    %v963 = vpop.xlane.xlu0 %962
    %v964 = vsel %vm197, %v816, 0.0
    %965 = vadd.xlane.f32.xlu0 %v964
    %v966 = vpop.xlane.xlu0 %965
    %v967 = vsel %vm197, %v817, 0.0
    %968 = vadd.xlane.f32.xlu0 %v967
    %v969 = vpop.xlane.xlu0 %968
    %v970 = vsel %vm197, %v818, 0.0
    %971 = vadd.xlane.f32.xlu0 %v970
    %v972 = vpop.xlane.xlu0 %971
    %v973 = vsel %vm197, %v819, 0.0
    %974 = vadd.xlane.f32.xlu0 %v973
    %v975 = vpop.xlane.xlu0 %974
    %v976 = vsel %vm197, %v820, 0.0
    %977 = vadd.xlane.f32.xlu0 %v976
    %v978 = vpop.xlane.xlu0 %977
    %v979 = vsel %vm197, %v821, 0.0
    %980 = vadd.xlane.f32.xlu0 %v979
    %v981 = vpop.xlane.xlu0 %980
    %v982 = vsel %vm197, %v822, 0.0
    %983 = vadd.xlane.f32.xlu0 %v982
    %v984 = vpop.xlane.xlu0 %983
    %v985 = vsel %vm197, %v823, 0.0
    %986 = vadd.xlane.f32.xlu0 %v985
    %v987 = vpop.xlane.xlu0 %986
    %v988 = vsel %vm197, %v824, 0.0
    %989 = vadd.xlane.f32.xlu0 %v988
    %v990 = vpop.xlane.xlu0 %989
    %v991 = vsel %vm197, %v825, 0.0
    %992 = vadd.xlane.f32.xlu0 %v991
    %v993 = vpop.xlane.xlu0 %992
    %v994 = vsel %vm197, %v826, 0.0
    %995 = vadd.xlane.f32.xlu0 %v994
    %v996 = vpop.xlane.xlu0 %995
    %v997 = vsel %vm197, %v827, 0.0
    %998 = vadd.xlane.f32.xlu0 %v997
    %v999 = vpop.xlane.xlu0 %998
    %v1000 = vsel %vm197, %v828, 0.0
    %1001 = vadd.xlane.f32.xlu0 %v1000
    %v1002 = vpop.xlane.xlu0 %1001
    %v1003 = vsel %vm197, %v829, 0.0
    %1004 = vadd.xlane.f32.xlu0 %v1003
    %v1005 = vpop.xlane.xlu0 %1004
    %v1006 = vsel %vm197, %v830, 0.0
    %1007 = vadd.xlane.f32.xlu0 %v1006
    %v1008 = vpop.xlane.xlu0 %1007
    %v1009 = vsel %vm197, %v831, 0.0
    %1010 = vadd.xlane.f32.xlu0 %v1009
    %v1011 = vpop.xlane.xlu0 %1010
    %v1012 = vsel %vm197, %v832, 0.0
    %1013 = vadd.xlane.f32.xlu0 %v1012
    %v1014 = vpop.xlane.xlu0 %1013
    %v1015 = vsel %vm197, %v833, 0.0
    %1016 = vadd.xlane.f32.xlu0 %v1015
    %v1017 = vpop.xlane.xlu0 %1016
    %v1018 = vsel %vm197, %v834, 0.0
    %1019 = vadd.xlane.f32.xlu0 %v1018
    %v1020 = vpop.xlane.xlu0 %1019
    %v1021 = vsel %vm197, %v835, 0.0
    %1022 = vadd.xlane.f32.xlu0 %v1021
    %v1023 = vpop.xlane.xlu0 %1022
    %v1024 = vsel %vm197, %v836, 0.0
    %1025 = vadd.xlane.f32.xlu0 %v1024
    %v1026 = vpop.xlane.xlu0 %1025
    %v1027 = vsel %vm197, %v837, 0.0
    %1028 = vadd.xlane.f32.xlu0 %v1027
    %v1029 = vpop.xlane.xlu0 %1028
    %v1030 = vsel %vm197, %v838, 0.0
    %1031 = vadd.xlane.f32.xlu0 %v1030
    %v1032 = vpop.xlane.xlu0 %1031
    %v1033 = vsel %vm197, %v839, 0.0
    %1034 = vadd.xlane.f32.xlu0 %v1033
    %v1035 = vpop.xlane.xlu0 %1034
    %v1036 = vsel %vm197, %v840, 0.0
    %1037 = vadd.xlane.f32.xlu0 %v1036
    %v1038 = vpop.xlane.xlu0 %1037
    %v1039 = vsel %vm197, %v841, 0.0
    %1040 = vadd.xlane.f32.xlu0 %v1039
    %v1041 = vpop.xlane.xlu0 %1040
    %v1042 = vsel %vm197, %v842, 0.0
    %1043 = vadd.xlane.f32.xlu0 %v1042
    %v1044 = vpop.xlane.xlu0 %1043
    %v1045 = vsel %vm197, %v843, 0.0
    %1046 = vadd.xlane.f32.xlu0 %v1045
    %v1047 = vpop.xlane.xlu0 %1046
    %v1048 = vsel %vm197, %v844, 0.0
    %1049 = vadd.xlane.f32.xlu0 %v1048
    %v1050 = vpop.xlane.xlu0 %1049
    %v1051 = vsel %vm197, %v845, 0.0
    %1052 = vadd.xlane.f32.xlu0 %v1051
    %v1053 = vpop.xlane.xlu0 %1052
    %v1054 = vsel %vm197, %v846, 0.0
    %1055 = vadd.xlane.f32.xlu0 %v1054
    %v1056 = vpop.xlane.xlu0 %1055
    %v1057 = vsel %vm197, %v847, 0.0
    %1058 = vadd.xlane.f32.xlu0 %v1057
    %v1059 = vpop.xlane.xlu0 %1058
    %v1060 = vsel %vm197, %v848, 0.0
    %1061 = vadd.xlane.f32.xlu0 %v1060
    %v1062 = vpop.xlane.xlu0 %1061
    %v1063 = vsel %vm197, %v849, 0.0
    %1064 = vadd.xlane.f32.xlu0 %v1063
    %v1065 = vpop.xlane.xlu0 %1064
    %v1066 = vsel %vm197, %v850, 0.0
    %1067 = vadd.xlane.f32.xlu0 %v1066
    %v1068 = vpop.xlane.xlu0 %1067
    %v1069 = vsel %vm197, %v851, 0.0
    %1070 = vadd.xlane.f32.xlu0 %v1069
    %v1071 = vpop.xlane.xlu0 %1070
    %v1072 = vsel %vm197, %v852, 0.0
    %1073 = vadd.xlane.f32.xlu0 %v1072
    %v1074 = vpop.xlane.xlu0 %1073
    %v1075 = vsel %vm197, %v853, 0.0
    %1076 = vadd.xlane.f32.xlu0 %v1075
    %v1077 = vpop.xlane.xlu0 %1076
    %v1078 = vsel %vm197, %v854, 0.0
    %1079 = vadd.xlane.f32.xlu0 %v1078
    %v1080 = vpop.xlane.xlu0 %1079
    %v1081 = vsel %vm197, %v855, 0.0
    %1082 = vadd.xlane.f32.xlu0 %v1081
    %v1083 = vpop.xlane.xlu0 %1082
    %v1084 = vsel %vm197, %v856, 0.0
    %1085 = vadd.xlane.f32.xlu0 %v1084
    %v1086 = vpop.xlane.xlu0 %1085
    %v1087 = vsel %vm197, %v857, 0.0
    %1088 = vadd.xlane.f32.xlu0 %v1087
    %v1089 = vpop.xlane.xlu0 %1088
    %v1090 = vsel %vm197, %v858, 0.0
    %1091 = vadd.xlane.f32.xlu0 %v1090
    %v1092 = vpop.xlane.xlu0 %1091
    %v1093 = vsel %vm197, %v859, 0.0
    %1094 = vadd.xlane.f32.xlu0 %v1093
    %v1095 = vpop.xlane.xlu0 %1094
    %v1096 = vsel %vm197, %v860, 0.0
    %1097 = vadd.xlane.f32.xlu0 %v1096
    %v1098 = vpop.xlane.xlu0 %1097
    %v1099 = vsel %vm197, %v861, 0.0
    %1100 = vadd.xlane.f32.xlu0 %v1099
    %v1101 = vpop.xlane.xlu0 %1100
    %v1102 = vsel %vm197, %v862, 0.0
    %1103 = vadd.xlane.f32.xlu0 %v1102
    %v1104 = vpop.xlane.xlu0 %1103
    %v1105 = vsel %vm197, %v863, 0.0
    %1106 = vadd.xlane.f32.xlu0 %v1105
    %v1107 = vpop.xlane.xlu0 %1106
    %v1108 = vsel %vm197, %v864, 0.0
    %1109 = vadd.xlane.f32.xlu0 %v1108
    %v1110 = vpop.xlane.xlu0 %1109
    %v1111 = vsel %vm197, %v865, 0.0
    %1112 = vadd.xlane.f32.xlu0 %v1111
    %v1113 = vpop.xlane.xlu0 %1112
    %v1114 = vsel %vm197, %v866, 0.0
    %1115 = vadd.xlane.f32.xlu0 %v1114
    %v1116 = vpop.xlane.xlu0 %1115
    %v1117 = vsel %vm197, %v867, 0.0
    %1118 = vadd.xlane.f32.xlu0 %v1117
    %v1119 = vpop.xlane.xlu0 %1118
    %v1120 = vsel %vm197, %v868, 0.0
    %1121 = vadd.xlane.f32.xlu0 %v1120
    %v1122 = vpop.xlane.xlu0 %1121
    %v1123 = vsel %vm197, %v869, 0.0
    %1124 = vadd.xlane.f32.xlu0 %v1123
    %v1125 = vpop.xlane.xlu0 %1124
    %v1126 = vsel %vm197, %v870, 0.0
    %1127 = vadd.xlane.f32.xlu0 %v1126
    %v1128 = vpop.xlane.xlu0 %1127
    %v1129 = vsel %vm197, %v871, 0.0
    %1130 = vadd.xlane.f32.xlu0 %v1129
    %v1131 = vpop.xlane.xlu0 %1130
    %v1132 = vsel %vm197, %v872, 0.0
    %1133 = vadd.xlane.f32.xlu0 %v1132
    %v1134 = vpop.xlane.xlu0 %1133
    %v1135 = vsel %vm197, %v873, 0.0
    %1136 = vadd.xlane.f32.xlu0 %v1135
    %v1137 = vpop.xlane.xlu0 %1136
    %v1138 = vsel %vm197, %v874, 0.0
    %1139 = vadd.xlane.f32.xlu0 %v1138
    %v1140 = vpop.xlane.xlu0 %1139
    %v1141 = vsel %vm197, %v875, 0.0
    %1142 = vadd.xlane.f32.xlu0 %v1141
    %v1143 = vpop.xlane.xlu0 %1142
    %v1144 = vsel %vm197, %v876, 0.0
    %1145 = vadd.xlane.f32.xlu0 %v1144
    %v1146 = vpop.xlane.xlu0 %1145
    %v1147 = vsel %vm197, %v877, 0.0
    %1148 = vadd.xlane.f32.xlu0 %v1147
    %v1149 = vpop.xlane.xlu0 %1148
    %v1150 = vsel %vm197, %v878, 0.0
    %1151 = vadd.xlane.f32.xlu0 %v1150
    %v1152 = vpop.xlane.xlu0 %1151
    %v1153 = vsel %vm197, %v879, 0.0
    %1154 = vadd.xlane.f32.xlu0 %v1153
    %v1155 = vpop.xlane.xlu0 %1154
    %v1156 = vsel %vm197, %v880, 0.0
    %1157 = vadd.xlane.f32.xlu0 %v1156
    %v1158 = vpop.xlane.xlu0 %1157
    %v1159 = vsel %vm197, %v881, 0.0
    %1160 = vadd.xlane.f32.xlu0 %v1159
    %v1161 = vpop.xlane.xlu0 %1160
    %v1162 = vsel %vm197, %v882, 0.0
    %1163 = vadd.xlane.f32.xlu0 %v1162
    %v1164 = vpop.xlane.xlu0 %1163
    %v1165 = vsel %vm197, %v883, 0.0
    %1166 = vadd.xlane.f32.xlu0 %v1165
    %v1167 = vpop.xlane.xlu0 %1166
    %v1168 = vsel %vm197, %v884, 0.0
    %1169 = vadd.xlane.f32.xlu0 %v1168
    %v1170 = vpop.xlane.xlu0 %1169
    %v1171 = vsel %vm197, %v885, 0.0
    %1172 = vadd.xlane.f32.xlu0 %v1171
    %v1173 = vpop.xlane.xlu0 %1172
    %v1174 = vsel %vm197, %v886, 0.0
    %1175 = vadd.xlane.f32.xlu0 %v1174
    %v1176 = vpop.xlane.xlu0 %1175
    %v1177 = vsel %vm197, %v887, 0.0
    %1178 = vadd.xlane.f32.xlu0 %v1177
    %v1179 = vpop.xlane.xlu0 %1178
    %v1180 = vsel %vm197, %v888, 0.0
    %1181 = vadd.xlane.f32.xlu0 %v1180
    %v1182 = vpop.xlane.xlu0 %1181
    %v1183 = vsel %vm197, %v889, 0.0
    %1184 = vadd.xlane.f32.xlu0 %v1183
    %v1185 = vpop.xlane.xlu0 %1184
    %v1186 = vsel %vm197, %v890, 0.0
    %1187 = vadd.xlane.f32.xlu0 %v1186
    %v1188 = vpop.xlane.xlu0 %1187
    %v1189 = vsel %vm197, %v891, 0.0
    %1190 = vadd.xlane.f32.xlu0 %v1189
    %v1191 = vpop.xlane.xlu0 %1190
    %v1192 = vsel %vm197, %v892, 0.0
    %1193 = vadd.xlane.f32.xlu0 %v1192
    %v1194 = vpop.xlane.xlu0 %1193
    %v1195 = vsel %vm197, %v893, 0.0
    %1196 = vadd.xlane.f32.xlu0 %v1195
    %v1197 = vpop.xlane.xlu0 %1196
    %v1198 = vsel %vm197, %v894, 0.0
    %1199 = vadd.xlane.f32.xlu0 %v1198
    %v1200 = vpop.xlane.xlu0 %1199
    %v1201 = vsel %vm197, %v895, 0.0
    %1202 = vadd.xlane.f32.xlu0 %v1201
    %v1203 = vpop.xlane.xlu0 %1202
    %v1204 = vsel %vm197, %v896, 0.0
    %1205 = vadd.xlane.f32.xlu0 %v1204
    %v1206 = vpop.xlane.xlu0 %1205
    %v1207 = vsel %vm197, %v897, 0.0
    %1208 = vadd.xlane.f32.xlu0 %v1207
    %v1209 = vpop.xlane.xlu0 %1208
    %v1210 = vsel %vm197, %v898, 0.0
    %1211 = vadd.xlane.f32.xlu0 %v1210
    %v1212 = vpop.xlane.xlu0 %1211
    %v1213 = vsel %vm197, %v899, 0.0
    %1214 = vadd.xlane.f32.xlu0 %v1213
    %v1215 = vpop.xlane.xlu0 %1214
    %v1216 = vsel %vm197, %v900, 0.0
    %1217 = vadd.xlane.f32.xlu0 %v1216
    %v1218 = vpop.xlane.xlu0 %1217
    %v1219 = vsel %vm197, %v901, 0.0
    %1220 = vadd.xlane.f32.xlu0 %v1219
    %v1221 = vpop.xlane.xlu0 %1220
    %v1222 = vsel %vm197, %v902, 0.0
    %1223 = vadd.xlane.f32.xlu0 %v1222
    %v1224 = vpop.xlane.xlu0 %1223
    %v1225 = vsel %vm197, %v903, 0.0
    %1226 = vadd.xlane.f32.xlu0 %v1225
    %v1227 = vpop.xlane.xlu0 %1226
    %v1228 = vsel %vm197, %v904, 0.0
    %1229 = vadd.xlane.f32.xlu0 %v1228
    %v1230 = vpop.xlane.xlu0 %1229
    %v1231 = vsel %vm197, %v905, 0.0
    %1232 = vadd.xlane.f32.xlu0 %v1231
    %v1233 = vpop.xlane.xlu0 %1232
    %v1234 = vsel %vm197, %v906, 0.0
    %1235 = vadd.xlane.f32.xlu0 %v1234
    %v1236 = vpop.xlane.xlu0 %1235
    %v1237 = vsel %vm197, %v907, 0.0
    %1238 = vadd.xlane.f32.xlu0 %v1237
    %v1239 = vpop.xlane.xlu0 %1238
    %v1240 = vsel %vm197, %v908, 0.0
    %1241 = vadd.xlane.f32.xlu0 %v1240
    %v1242 = vpop.xlane.xlu0 %1241
    %v1243 = vsel %vm197, %v909, 0.0
    %1244 = vadd.xlane.f32.xlu0 %v1243
    %v1245 = vpop.xlane.xlu0 %1244
    %v1246 = vsel %vm197, %v910, 0.0
    %1247 = vadd.xlane.f32.xlu0 %v1246
    %v1248 = vpop.xlane.xlu0 %1247
    %v1249 = vsel %vm197, %v911, 0.0
    %1250 = vadd.xlane.f32.xlu0 %v1249
    %v1251 = vpop.xlane.xlu0 %1250
    %v1252 = vsel %vm197, %v912, 0.0
    %1253 = vadd.xlane.f32.xlu0 %v1252
    %v1254 = vpop.xlane.xlu0 %1253
    %v1255 = vsel %vm197, %v913, 0.0
    %1256 = vadd.xlane.f32.xlu0 %v1255
    %v1257 = vpop.xlane.xlu0 %1256
    %v1258 = vsel %vm197, %v914, 0.0
    %1259 = vadd.xlane.f32.xlu0 %v1258
    %v1260 = vpop.xlane.xlu0 %1259
    %v1261 = vsel %vm197, %v915, 0.0
    %1262 = vadd.xlane.f32.xlu0 %v1261
    %v1263 = vpop.xlane.xlu0 %1262
    %v1264 = vsel %vm197, %v916, 0.0
    %1265 = vadd.xlane.f32.xlu0 %v1264
    %v1266 = vpop.xlane.xlu0 %1265
    %v1267 = vsel %vm197, %v917, 0.0
    %1268 = vadd.xlane.f32.xlu0 %v1267
    %v1269 = vpop.xlane.xlu0 %1268
    %v1270 = vsel %vm197, %v918, 0.0
    %1271 = vadd.xlane.f32.xlu0 %v1270
    %v1272 = vpop.xlane.xlu0 %1271
    %v1273 = vsel %vm197, %v919, 0.0
    %1274 = vadd.xlane.f32.xlu0 %v1273
    %v1275 = vpop.xlane.xlu0 %1274
    %v1276 = vsel %vm197, %v920, 0.0
    %1277 = vadd.xlane.f32.xlu0 %v1276
    %v1278 = vpop.xlane.xlu0 %1277
    %v1279 = vsel %vm197, %v921, 0.0
    %1280 = vadd.xlane.f32.xlu0 %v1279
    %v1281 = vpop.xlane.xlu0 %1280
    %v1282 = vsel %vm197, %v922, 0.0
    %1283 = vadd.xlane.f32.xlu0 %v1282
    %v1284 = vpop.xlane.xlu0 %1283
    %v1285 = vsel %vm197, %v923, 0.0
    %1286 = vadd.xlane.f32.xlu0 %v1285
    %v1287 = vpop.xlane.xlu0 %1286
    %v1288 = vsel %vm197, %v924, 0.0
    %1289 = vadd.xlane.f32.xlu0 %v1288
    %v1290 = vpop.xlane.xlu0 %1289
    %v1291 = vsel %vm197, %v925, 0.0
    %1292 = vadd.xlane.f32.xlu0 %v1291
    %v1293 = vpop.xlane.xlu0 %1292
    %v1294 = vsel %vm197, %v926, 0.0
    %1295 = vadd.xlane.f32.xlu0 %v1294
    %v1296 = vpop.xlane.xlu0 %1295
    %v1297 = vsel %vm197, %v927, 0.0
    %1298 = vadd.xlane.f32.xlu0 %v1297
    %v1299 = vpop.xlane.xlu0 %1298
    %v1300 = vsel %vm197, %v928, 0.0
    %1301 = vadd.xlane.f32.xlu0 %v1300
    %v1302 = vpop.xlane.xlu0 %1301
    %v1303 = vsel %vm197, %v929, 0.0
    %1304 = vadd.xlane.f32.xlu0 %v1303
    %v1305 = vpop.xlane.xlu0 %1304
    %v1306 = vsel %vm197, %v930, 0.0
    %1307 = vadd.xlane.f32.xlu0 %v1306
    %v1308 = vpop.xlane.xlu0 %1307
    %v1309 = vsel %vm197, %v931, 0.0
    %1310 = vadd.xlane.f32.xlu0 %v1309
    %v1311 = vpop.xlane.xlu0 %1310
    %v1312 = vsel %vm197, %v932, 0.0
    %1313 = vadd.xlane.f32.xlu0 %v1312
    %v1314 = vpop.xlane.xlu0 %1313
    %v1315 = vsel %vm197, %v933, 0.0
    %1316 = vadd.xlane.f32.xlu0 %v1315
    %v1317 = vpop.xlane.xlu0 %1316
    %v1318 = vmul.f32 %v424, 14.285714
    %v1319 = vmul.f32 %v427, 14.285714
    %v1320 = vmul.f32 %v430, 14.285714
    %v1321 = vmul.f32 %v433, 14.285714
    %v1322 = vmul.f32 %v436, 14.285714
    %v1323 = vmul.f32 %v439, 14.285714
    %v1324 = vmul.f32 %v442, 14.285714
    %v1325 = vmul.f32 %v445, 14.285714
    %v1326 = vmul.f32 %v448, 14.285714
    %v1327 = vmul.f32 %v451, 14.285714
    %v1328 = vmul.f32 %v454, 14.285714
    %v1329 = vmul.f32 %v457, 14.285714
    %v1330 = vmul.f32 %v460, 14.285714
    %v1331 = vmul.f32 %v463, 14.285714
    %v1332 = vmul.f32 %v466, 14.285714
    %v1333 = vmul.f32 %v469, 14.285714
    %v1334 = vmul.f32 %v472, 14.285714
    %v1335 = vmul.f32 %v475, 14.285714
    %v1336 = vmul.f32 %v478, 14.285714
    %v1337 = vmul.f32 %v481, 14.285714
    %v1338 = vmul.f32 %v484, 14.285714
    %v1339 = vmul.f32 %v487, 14.285714
    %v1340 = vmul.f32 %v490, 14.285714
    %v1341 = vmul.f32 %v493, 14.285714
    %v1342 = vmul.f32 %v496, 14.285714
    %v1343 = vmul.f32 %v499, 14.285714
    %v1344 = vmul.f32 %v502, 14.285714
    %v1345 = vmul.f32 %v505, 14.285714
    %v1346 = vmul.f32 %v508, 14.285714
    %v1347 = vmul.f32 %v511, 14.285714
    %v1348 = vmul.f32 %v514, 14.285714
    %v1349 = vmul.f32 %v517, 14.285714
    %v1350 = vmul.f32 %v520, 14.285714
    %v1351 = vmul.f32 %v523, 14.285714
    %v1352 = vmul.f32 %v526, 14.285714
    %v1353 = vmul.f32 %v529, 14.285714
    %v1354 = vmul.f32 %v532, 14.285714
    %v1355 = vmul.f32 %v535, 14.285714
    %v1356 = vmul.f32 %v538, 14.285714
    %v1357 = vmul.f32 %v541, 14.285714
    %v1358 = vmul.f32 %v544, 14.285714
    %v1359 = vmul.f32 %v547, 14.285714
    %v1360 = vmul.f32 %v550, 14.285714
    %v1361 = vmul.f32 %v553, 14.285714
    %v1362 = vmul.f32 %v556, 14.285714
    %v1363 = vmul.f32 %v559, 14.285714
    %v1364 = vmul.f32 %v562, 14.285714
    %v1365 = vmul.f32 %v565, 14.285714
    %v1366 = vmul.f32 %v568, 14.285714
    %v1367 = vmul.f32 %v571, 14.285714
    %v1368 = vmul.f32 %v574, 14.285714
    %v1369 = vmul.f32 %v577, 14.285714
    %v1370 = vmul.f32 %v580, 14.285714
    %v1371 = vmul.f32 %v583, 14.285714
    %v1372 = vmul.f32 %v586, 14.285714
    %v1373 = vmul.f32 %v589, 14.285714
    %v1374 = vmul.f32 %v592, 14.285714
    %v1375 = vmul.f32 %v595, 14.285714
    %v1376 = vmul.f32 %v598, 14.285714
    %v1377 = vmul.f32 %v601, 14.285714
    %v1378 = vmul.f32 %v604, 14.285714
    %v1379 = vmul.f32 %v607, 14.285714
    %v1380 = vmul.f32 %v610, 14.285714
    %v1381 = vmul.f32 %v613, 14.285714
    %v1382 = vmul.f32 %v616, 14.285714
    %v1383 = vmul.f32 %v619, 14.285714
    %v1384 = vmul.f32 %v622, 14.285714
    %v1385 = vmul.f32 %v625, 14.285714
    %v1386 = vmul.f32 %v628, 14.285714
    %v1387 = vmul.f32 %v631, 14.285714
    %v1388 = vmul.f32 %v634, 14.285714
    %v1389 = vmul.f32 %v637, 14.285714
    %v1390 = vmul.f32 %v640, 14.285714
    %v1391 = vmul.f32 %v643, 14.285714
    %v1392 = vmul.f32 %v646, 14.285714
    %v1393 = vmul.f32 %v649, 14.285714
    %v1394 = vmul.f32 %v652, 14.285714
    %v1395 = vmul.f32 %v655, 14.285714
    %v1396 = vmul.f32 %v658, 14.285714
    %v1397 = vmul.f32 %v661, 14.285714
    %v1398 = vmul.f32 %v664, 14.285714
    %v1399 = vmul.f32 %v667, 14.285714
    %v1400 = vmul.f32 %v670, 14.285714
    %v1401 = vmul.f32 %v673, 14.285714
    %v1402 = vmul.f32 %v676, 14.285714
    %v1403 = vmul.f32 %v679, 14.285714
    %v1404 = vmul.f32 %v682, 14.285714
    %v1405 = vmul.f32 %v685, 14.285714
    %v1406 = vmul.f32 %v688, 14.285714
    %v1407 = vmul.f32 %v691, 14.285714
    %v1408 = vmul.f32 %v694, 14.285714
    %v1409 = vmul.f32 %v697, 14.285714
    %v1410 = vmul.f32 %v700, 14.285714
    %v1411 = vmul.f32 %v703, 14.285714
    %v1412 = vmul.f32 %v706, 14.285714
    %v1413 = vmul.f32 %v709, 14.285714
    %v1414 = vmul.f32 %v712, 14.285714
    %v1415 = vmul.f32 %v715, 14.285714
    %v1416 = vmul.f32 %v718, 14.285714
    %v1417 = vmul.f32 %v721, 14.285714
    %v1418 = vmul.f32 %v724, 14.285714
    %v1419 = vmul.f32 %v727, 14.285714
    %v1420 = vmul.f32 %v730, 14.285714
    %v1421 = vmul.f32 %v733, 14.285714
    %v1422 = vmul.f32 %v736, 14.285714
    %v1423 = vmul.f32 %v739, 14.285714
    %v1424 = vmul.f32 %v742, 14.285714
    %v1425 = vmul.f32 %v745, 14.285714
    %v1426 = vmul.f32 %v748, 14.285714
    %v1427 = vmul.f32 %v751, 14.285714
    %v1428 = vmul.f32 %v754, 14.285714
    %v1429 = vmul.f32 %v757, 14.285714
    %v1430 = vmul.f32 %v760, 14.285714
    %v1431 = vmul.f32 %v763, 14.285714
    %v1432 = vmul.f32 %v766, 14.285714
    %v1433 = vmul.f32 %v769, 14.285714
    %v1434 = vmul.f32 %v772, 14.285714
    %v1435 = vmul.f32 %v775, 14.285714
    %v1436 = vmul.f32 %v778, 14.285714
    %v1437 = vmul.f32 %v781, 14.285714
    %v1438 = vmul.f32 %v784, 14.285714
    %v1439 = vmul.f32 %v787, 14.285714
    %v1440 = vmul.f32 %v790, 14.285714
    %v1441 = vmul.f32 %v793, 14.285714
    %v1442 = vmul.f32 %v796, 14.285714
    %v1443 = vmul.f32 %v799, 14.285714
    %v1444 = vmul.f32 %v802, 14.285714
    %v1445 = vmul.f32 %v805, 14.285714
    %v1446 = vmul.f32 %v1318, 1.442695
    %v1447 = vpow.pop %v1446
    %v1448 = vmul.f32 %v1319, 1.442695
    %v1449 = vpow.pop %v1448
    %v1450 = vmul.f32 %v1320, 1.442695
    %v1451 = vpow.pop %v1450
    %v1452 = vmul.f32 %v1321, 1.442695
    %v1453 = vpow.pop %v1452
    %v1454 = vmul.f32 %v1322, 1.442695
    %v1455 = vpow.pop %v1454
    %v1456 = vmul.f32 %v1323, 1.442695
    %v1457 = vpow.pop %v1456
    %v1458 = vmul.f32 %v1324, 1.442695
    %v1459 = vpow.pop %v1458
    %v1460 = vmul.f32 %v1325, 1.442695
    %v1461 = vpow.pop %v1460
    %v1462 = vmul.f32 %v1326, 1.442695
    %v1463 = vpow.pop %v1462
    %v1464 = vmul.f32 %v1327, 1.442695
    %v1465 = vpow.pop %v1464
    %v1466 = vmul.f32 %v1328, 1.442695
    %v1467 = vpow.pop %v1466
    %v1468 = vmul.f32 %v1329, 1.442695
    %v1469 = vpow.pop %v1468
    %v1470 = vmul.f32 %v1330, 1.442695
    %v1471 = vpow.pop %v1470
    %v1472 = vmul.f32 %v1331, 1.442695
    %v1473 = vpow.pop %v1472
    %v1474 = vmul.f32 %v1332, 1.442695
    %v1475 = vpow.pop %v1474
    %v1476 = vmul.f32 %v1333, 1.442695
    %v1477 = vpow.pop %v1476
    %v1478 = vmul.f32 %v1334, 1.442695
    %v1479 = vpow.pop %v1478
    %v1480 = vmul.f32 %v1335, 1.442695
    %v1481 = vpow.pop %v1480
    %v1482 = vmul.f32 %v1336, 1.442695
    %v1483 = vpow.pop %v1482
    %v1484 = vmul.f32 %v1337, 1.442695
    %v1485 = vpow.pop %v1484
    %v1486 = vmul.f32 %v1338, 1.442695
    %v1487 = vpow.pop %v1486
    %v1488 = vmul.f32 %v1339, 1.442695
    %v1489 = vpow.pop %v1488
    %v1490 = vmul.f32 %v1340, 1.442695
    %v1491 = vpow.pop %v1490
    %v1492 = vmul.f32 %v1341, 1.442695
    %v1493 = vpow.pop %v1492
    %v1494 = vmul.f32 %v1342, 1.442695
    %v1495 = vpow.pop %v1494
    %v1496 = vmul.f32 %v1343, 1.442695
    %v1497 = vpow.pop %v1496
    %v1498 = vmul.f32 %v1344, 1.442695
    %v1499 = vpow.pop %v1498
    %v1500 = vmul.f32 %v1345, 1.442695
    %v1501 = vpow.pop %v1500
    %v1502 = vmul.f32 %v1346, 1.442695
    %v1503 = vpow.pop %v1502
    %v1504 = vmul.f32 %v1347, 1.442695
    %v1505 = vpow.pop %v1504
    %v1506 = vmul.f32 %v1348, 1.442695
    %v1507 = vpow.pop %v1506
    %v1508 = vmul.f32 %v1349, 1.442695
    %v1509 = vpow.pop %v1508
    %v1510 = vmul.f32 %v1350, 1.442695
    %v1511 = vpow.pop %v1510
    %v1512 = vmul.f32 %v1351, 1.442695
    %v1513 = vpow.pop %v1512
    %v1514 = vmul.f32 %v1352, 1.442695
    %v1515 = vpow.pop %v1514
    %v1516 = vmul.f32 %v1353, 1.442695
    %v1517 = vpow.pop %v1516
    %v1518 = vmul.f32 %v1354, 1.442695
    %v1519 = vpow.pop %v1518
    %v1520 = vmul.f32 %v1355, 1.442695
    %v1521 = vpow.pop %v1520
    %v1522 = vmul.f32 %v1356, 1.442695
    %v1523 = vpow.pop %v1522
    %v1524 = vmul.f32 %v1357, 1.442695
    %v1525 = vpow.pop %v1524
    %v1526 = vmul.f32 %v1358, 1.442695
    %v1527 = vpow.pop %v1526
    %v1528 = vmul.f32 %v1359, 1.442695
    %v1529 = vpow.pop %v1528
    %v1530 = vmul.f32 %v1360, 1.442695
    %v1531 = vpow.pop %v1530
    %v1532 = vmul.f32 %v1361, 1.442695
    %v1533 = vpow.pop %v1532
    %v1534 = vmul.f32 %v1362, 1.442695
    %v1535 = vpow.pop %v1534
    %v1536 = vmul.f32 %v1363, 1.442695
    %v1537 = vpow.pop %v1536
    %v1538 = vmul.f32 %v1364, 1.442695
    %v1539 = vpow.pop %v1538
    %v1540 = vmul.f32 %v1365, 1.442695
    %v1541 = vpow.pop %v1540
    %v1542 = vmul.f32 %v1366, 1.442695
    %v1543 = vpow.pop %v1542
    %v1544 = vmul.f32 %v1367, 1.442695
    %v1545 = vpow.pop %v1544
    %v1546 = vmul.f32 %v1368, 1.442695
    %v1547 = vpow.pop %v1546
    %v1548 = vmul.f32 %v1369, 1.442695
    %v1549 = vpow.pop %v1548
    %v1550 = vmul.f32 %v1370, 1.442695
    %v1551 = vpow.pop %v1550
    %v1552 = vmul.f32 %v1371, 1.442695
    %v1553 = vpow.pop %v1552
    %v1554 = vmul.f32 %v1372, 1.442695
    %v1555 = vpow.pop %v1554
    %v1556 = vmul.f32 %v1373, 1.442695
    %v1557 = vpow.pop %v1556
    %v1558 = vmul.f32 %v1374, 1.442695
    %v1559 = vpow.pop %v1558
    %v1560 = vmul.f32 %v1375, 1.442695
    %v1561 = vpow.pop %v1560
    %v1562 = vmul.f32 %v1376, 1.442695
    %v1563 = vpow.pop %v1562
    %v1564 = vmul.f32 %v1377, 1.442695
    %v1565 = vpow.pop %v1564
    %v1566 = vmul.f32 %v1378, 1.442695
    %v1567 = vpow.pop %v1566
    %v1568 = vmul.f32 %v1379, 1.442695
    %v1569 = vpow.pop %v1568
    %v1570 = vmul.f32 %v1380, 1.442695
    %v1571 = vpow.pop %v1570
    %v1572 = vmul.f32 %v1381, 1.442695
    %v1573 = vpow.pop %v1572
    %v1574 = vmul.f32 %v1382, 1.442695
    %v1575 = vpow.pop %v1574
    %v1576 = vmul.f32 %v1383, 1.442695
    %v1577 = vpow.pop %v1576
    %v1578 = vmul.f32 %v1384, 1.442695
    %v1579 = vpow.pop %v1578
    %v1580 = vmul.f32 %v1385, 1.442695
    %v1581 = vpow.pop %v1580
    %v1582 = vmul.f32 %v1386, 1.442695
    %v1583 = vpow.pop %v1582
    %v1584 = vmul.f32 %v1387, 1.442695
    %v1585 = vpow.pop %v1584
    %v1586 = vmul.f32 %v1388, 1.442695
    %v1587 = vpow.pop %v1586
    %v1588 = vmul.f32 %v1389, 1.442695
    %v1589 = vpow.pop %v1588
    %v1590 = vmul.f32 %v1390, 1.442695
    %v1591 = vpow.pop %v1590
    %v1592 = vmul.f32 %v1391, 1.442695
    %v1593 = vpow.pop %v1592
    %v1594 = vmul.f32 %v1392, 1.442695
    %v1595 = vpow.pop %v1594
    %v1596 = vmul.f32 %v1393, 1.442695
    %v1597 = vpow.pop %v1596
    %v1598 = vmul.f32 %v1394, 1.442695
    %v1599 = vpow.pop %v1598
    %v1600 = vmul.f32 %v1395, 1.442695
    %v1601 = vpow.pop %v1600
    %v1602 = vmul.f32 %v1396, 1.442695
    %v1603 = vpow.pop %v1602
    %v1604 = vmul.f32 %v1397, 1.442695
    %v1605 = vpow.pop %v1604
    %v1606 = vmul.f32 %v1398, 1.442695
    %v1607 = vpow.pop %v1606
    %v1608 = vmul.f32 %v1399, 1.442695
    %v1609 = vpow.pop %v1608
    %v1610 = vmul.f32 %v1400, 1.442695
    %v1611 = vpow.pop %v1610
    %v1612 = vmul.f32 %v1401, 1.442695
    %v1613 = vpow.pop %v1612
    %v1614 = vmul.f32 %v1402, 1.442695
    %v1615 = vpow.pop %v1614
    %v1616 = vmul.f32 %v1403, 1.442695
    %v1617 = vpow.pop %v1616
    %v1618 = vmul.f32 %v1404, 1.442695
    %v1619 = vpow.pop %v1618
    %v1620 = vmul.f32 %v1405, 1.442695
    %v1621 = vpow.pop %v1620
    %v1622 = vmul.f32 %v1406, 1.442695
    %v1623 = vpow.pop %v1622
    %v1624 = vmul.f32 %v1407, 1.442695
    %v1625 = vpow.pop %v1624
    %v1626 = vmul.f32 %v1408, 1.442695
    %v1627 = vpow.pop %v1626
    %v1628 = vmul.f32 %v1409, 1.442695
    %v1629 = vpow.pop %v1628
    %v1630 = vmul.f32 %v1410, 1.442695
    %v1631 = vpow.pop %v1630
    %v1632 = vmul.f32 %v1411, 1.442695
    %v1633 = vpow.pop %v1632
    %v1634 = vmul.f32 %v1412, 1.442695
    %v1635 = vpow.pop %v1634
    %v1636 = vmul.f32 %v1413, 1.442695
    %v1637 = vpow.pop %v1636
    %v1638 = vmul.f32 %v1414, 1.442695
    %v1639 = vpow.pop %v1638
    %v1640 = vmul.f32 %v1415, 1.442695
    %v1641 = vpow.pop %v1640
    %v1642 = vmul.f32 %v1416, 1.442695
    %v1643 = vpow.pop %v1642
    %v1644 = vmul.f32 %v1417, 1.442695
    %v1645 = vpow.pop %v1644
    %v1646 = vmul.f32 %v1418, 1.442695
    %v1647 = vpow.pop %v1646
    %v1648 = vmul.f32 %v1419, 1.442695
    %v1649 = vpow.pop %v1648
    %v1650 = vmul.f32 %v1420, 1.442695
    %v1651 = vpow.pop %v1650
    %v1652 = vmul.f32 %v1421, 1.442695
    %v1653 = vpow.pop %v1652
    %v1654 = vmul.f32 %v1422, 1.442695
    %v1655 = vpow.pop %v1654
    %v1656 = vmul.f32 %v1423, 1.442695
    %v1657 = vpow.pop %v1656
    %v1658 = vmul.f32 %v1424, 1.442695
    %v1659 = vpow.pop %v1658
    %v1660 = vmul.f32 %v1425, 1.442695
    %v1661 = vpow.pop %v1660
    %v1662 = vmul.f32 %v1426, 1.442695
    %v1663 = vpow.pop %v1662
    %v1664 = vmul.f32 %v1427, 1.442695
    %v1665 = vpow.pop %v1664
    %v1666 = vmul.f32 %v1428, 1.442695
    %v1667 = vpow.pop %v1666
    %v1668 = vmul.f32 %v1429, 1.442695
    %v1669 = vpow.pop %v1668
    %v1670 = vmul.f32 %v1430, 1.442695
    %v1671 = vpow.pop %v1670
    %v1672 = vmul.f32 %v1431, 1.442695
    %v1673 = vpow.pop %v1672
    %v1674 = vmul.f32 %v1432, 1.442695
    %v1675 = vpow.pop %v1674
    %v1676 = vmul.f32 %v1433, 1.442695
    %v1677 = vpow.pop %v1676
    %v1678 = vmul.f32 %v1434, 1.442695
    %v1679 = vpow.pop %v1678
    %v1680 = vmul.f32 %v1435, 1.442695
    %v1681 = vpow.pop %v1680
    %v1682 = vmul.f32 %v1436, 1.442695
    %v1683 = vpow.pop %v1682
    %v1684 = vmul.f32 %v1437, 1.442695
    %v1685 = vpow.pop %v1684
    %v1686 = vmul.f32 %v1438, 1.442695
    %v1687 = vpow.pop %v1686
    %v1688 = vmul.f32 %v1439, 1.442695
    %v1689 = vpow.pop %v1688
    %v1690 = vmul.f32 %v1440, 1.442695
    %v1691 = vpow.pop %v1690
    %v1692 = vmul.f32 %v1441, 1.442695
    %v1693 = vpow.pop %v1692
    %v1694 = vmul.f32 %v1442, 1.442695
    %v1695 = vpow.pop %v1694
    %v1696 = vmul.f32 %v1443, 1.442695
    %v1697 = vpow.pop %v1696
    %v1698 = vmul.f32 %v1444, 1.442695
    %v1699 = vpow.pop %v1698
    %v1700 = vmul.f32 %v1445, 1.442695
    %v1701 = vpow.pop %v1700
    %v1702 = vadd.f32 %v1447, %v1479
    %v1703 = vadd.f32 %v1702, %v1511
    %v1704 = vadd.f32 %v1703, %v1543
    %v1705 = vadd.f32 %v1704, %v1575
    %v1706 = vadd.f32 %v1705, %v1607
    %v1707 = vadd.f32 %v1706, %v1639
    %v1708 = vadd.f32 %v1707, %v1671
    %v1709 = vadd.f32 %v1449, %v1481
    %v1710 = vadd.f32 %v1709, %v1513
    %v1711 = vadd.f32 %v1710, %v1545
    %v1712 = vadd.f32 %v1711, %v1577
    %v1713 = vadd.f32 %v1712, %v1609
    %v1714 = vadd.f32 %v1713, %v1641
    %v1715 = vadd.f32 %v1714, %v1673
    %v1716 = vadd.f32 %v1451, %v1483
    %v1717 = vadd.f32 %v1716, %v1515
    %v1718 = vadd.f32 %v1717, %v1547
    %v1719 = vadd.f32 %v1718, %v1579
    %v1720 = vadd.f32 %v1719, %v1611
    %v1721 = vadd.f32 %v1720, %v1643
    %v1722 = vadd.f32 %v1721, %v1675
    %v1723 = vadd.f32 %v1453, %v1485
    %v1724 = vadd.f32 %v1723, %v1517
    %v1725 = vadd.f32 %v1724, %v1549
    %v1726 = vadd.f32 %v1725, %v1581
    %v1727 = vadd.f32 %v1726, %v1613
    %v1728 = vadd.f32 %v1727, %v1645
    %v1729 = vadd.f32 %v1728, %v1677
    %v1730 = vadd.f32 %v1455, %v1487
    %v1731 = vadd.f32 %v1730, %v1519
    %v1732 = vadd.f32 %v1731, %v1551
    %v1733 = vadd.f32 %v1732, %v1583
    %v1734 = vadd.f32 %v1733, %v1615
    %v1735 = vadd.f32 %v1734, %v1647
    %v1736 = vadd.f32 %v1735, %v1679
    %v1737 = vadd.f32 %v1457, %v1489
    %v1738 = vadd.f32 %v1737, %v1521
    %v1739 = vadd.f32 %v1738, %v1553
    %v1740 = vadd.f32 %v1739, %v1585
    %v1741 = vadd.f32 %v1740, %v1617
    %v1742 = vadd.f32 %v1741, %v1649
    %v1743 = vadd.f32 %v1742, %v1681
    %v1744 = vadd.f32 %v1459, %v1491
    %v1745 = vadd.f32 %v1744, %v1523
    %v1746 = vadd.f32 %v1745, %v1555
    %v1747 = vadd.f32 %v1746, %v1587
    %v1748 = vadd.f32 %v1747, %v1619
    %v1749 = vadd.f32 %v1748, %v1651
    %v1750 = vadd.f32 %v1749, %v1683
    %v1751 = vadd.f32 %v1461, %v1493
    %v1752 = vadd.f32 %v1751, %v1525
    %v1753 = vadd.f32 %v1752, %v1557
    %v1754 = vadd.f32 %v1753, %v1589
    %v1755 = vadd.f32 %v1754, %v1621
    %v1756 = vadd.f32 %v1755, %v1653
    %v1757 = vadd.f32 %v1756, %v1685
    %v1758 = vadd.f32 %v1463, %v1495
    %v1759 = vadd.f32 %v1758, %v1527
    %v1760 = vadd.f32 %v1759, %v1559
    %v1761 = vadd.f32 %v1760, %v1591
    %v1762 = vadd.f32 %v1761, %v1623
    %v1763 = vadd.f32 %v1762, %v1655
    %v1764 = vadd.f32 %v1763, %v1687
    %v1765 = vadd.f32 %v1465, %v1497
    %v1766 = vadd.f32 %v1765, %v1529
    %v1767 = vadd.f32 %v1766, %v1561
    %v1768 = vadd.f32 %v1767, %v1593
    %v1769 = vadd.f32 %v1768, %v1625
    %v1770 = vadd.f32 %v1769, %v1657
    %v1771 = vadd.f32 %v1770, %v1689
    %v1772 = vadd.f32 %v1467, %v1499
    %v1773 = vadd.f32 %v1772, %v1531
    %v1774 = vadd.f32 %v1773, %v1563
    %v1775 = vadd.f32 %v1774, %v1595
    %v1776 = vadd.f32 %v1775, %v1627
    %v1777 = vadd.f32 %v1776, %v1659
    %v1778 = vadd.f32 %v1777, %v1691
    %v1779 = vadd.f32 %v1469, %v1501
    %v1780 = vadd.f32 %v1779, %v1533
    %v1781 = vadd.f32 %v1780, %v1565
    %v1782 = vadd.f32 %v1781, %v1597
    %v1783 = vadd.f32 %v1782, %v1629
    %v1784 = vadd.f32 %v1783, %v1661
    %v1785 = vadd.f32 %v1784, %v1693
    %v1786 = vadd.f32 %v1471, %v1503
    %v1787 = vadd.f32 %v1786, %v1535
    %v1788 = vadd.f32 %v1787, %v1567
    %v1789 = vadd.f32 %v1788, %v1599
    %v1790 = vadd.f32 %v1789, %v1631
    %v1791 = vadd.f32 %v1790, %v1663
    %v1792 = vadd.f32 %v1791, %v1695
    %v1793 = vadd.f32 %v1473, %v1505
    %v1794 = vadd.f32 %v1793, %v1537
    %v1795 = vadd.f32 %v1794, %v1569
    %v1796 = vadd.f32 %v1795, %v1601
    %v1797 = vadd.f32 %v1796, %v1633
    %v1798 = vadd.f32 %v1797, %v1665
    %v1799 = vadd.f32 %v1798, %v1697
    %v1800 = vadd.f32 %v1475, %v1507
    %v1801 = vadd.f32 %v1800, %v1539
    %v1802 = vadd.f32 %v1801, %v1571
    %v1803 = vadd.f32 %v1802, %v1603
    %v1804 = vadd.f32 %v1803, %v1635
    %v1805 = vadd.f32 %v1804, %v1667
    %v1806 = vadd.f32 %v1805, %v1699
    %v1807 = vadd.f32 %v1477, %v1509
    %v1808 = vadd.f32 %v1807, %v1541
    %v1809 = vadd.f32 %v1808, %v1573
    %v1810 = vadd.f32 %v1809, %v1605
    %v1811 = vadd.f32 %v1810, %v1637
    %v1812 = vadd.f32 %v1811, %v1669
    %v1813 = vadd.f32 %v1812, %v1701
    %v1814 = vadd.f32 %v1708, %v263
    %v1815 = vadd.f32 %v1715, %v265
    %v1816 = vadd.f32 %v1722, %v267
    %v1817 = vadd.f32 %v1729, %v269
    %v1818 = vadd.f32 %v1736, %v271
    %v1819 = vadd.f32 %v1743, %v273
    %v1820 = vadd.f32 %v1750, %v275
    %v1821 = vadd.f32 %v1757, %v277
    %v1822 = vadd.f32 %v1764, %v279
    %v1823 = vadd.f32 %v1771, %v281
    %v1824 = vadd.f32 %v1778, %v283
    %v1825 = vadd.f32 %v1785, %v285
    %v1826 = vadd.f32 %v1792, %v287
    %v1827 = vadd.f32 %v1799, %v289
    %v1828 = vadd.f32 %v1806, %v291
    %v1829 = vadd.f32 %v1813, %v293
    %v1830 = vmul.f32 %v936, 14.285714
    %v1831 = vmul.f32 %v939, 14.285714
    %v1832 = vmul.f32 %v942, 14.285714
    %v1833 = vmul.f32 %v945, 14.285714
    %v1834 = vmul.f32 %v948, 14.285714
    %v1835 = vmul.f32 %v951, 14.285714
    %v1836 = vmul.f32 %v954, 14.285714
    %v1837 = vmul.f32 %v957, 14.285714
    %v1838 = vmul.f32 %v960, 14.285714
    %v1839 = vmul.f32 %v963, 14.285714
    %v1840 = vmul.f32 %v966, 14.285714
    %v1841 = vmul.f32 %v969, 14.285714
    %v1842 = vmul.f32 %v972, 14.285714
    %v1843 = vmul.f32 %v975, 14.285714
    %v1844 = vmul.f32 %v978, 14.285714
    %v1845 = vmul.f32 %v981, 14.285714
    %v1846 = vmul.f32 %v984, 14.285714
    %v1847 = vmul.f32 %v987, 14.285714
    %v1848 = vmul.f32 %v990, 14.285714
    %v1849 = vmul.f32 %v993, 14.285714
    %v1850 = vmul.f32 %v996, 14.285714
    %v1851 = vmul.f32 %v999, 14.285714
    %v1852 = vmul.f32 %v1002, 14.285714
    %v1853 = vmul.f32 %v1005, 14.285714
    %v1854 = vmul.f32 %v1008, 14.285714
    %v1855 = vmul.f32 %v1011, 14.285714
    %v1856 = vmul.f32 %v1014, 14.285714
    %v1857 = vmul.f32 %v1017, 14.285714
    %v1858 = vmul.f32 %v1020, 14.285714
    %v1859 = vmul.f32 %v1023, 14.285714
    %v1860 = vmul.f32 %v1026, 14.285714
    %v1861 = vmul.f32 %v1029, 14.285714
    %v1862 = vmul.f32 %v1032, 14.285714
    %v1863 = vmul.f32 %v1035, 14.285714
    %v1864 = vmul.f32 %v1038, 14.285714
    %v1865 = vmul.f32 %v1041, 14.285714
    %v1866 = vmul.f32 %v1044, 14.285714
    %v1867 = vmul.f32 %v1047, 14.285714
    %v1868 = vmul.f32 %v1050, 14.285714
    %v1869 = vmul.f32 %v1053, 14.285714
    %v1870 = vmul.f32 %v1056, 14.285714
    %v1871 = vmul.f32 %v1059, 14.285714
    %v1872 = vmul.f32 %v1062, 14.285714
    %v1873 = vmul.f32 %v1065, 14.285714
    %v1874 = vmul.f32 %v1068, 14.285714
    %v1875 = vmul.f32 %v1071, 14.285714
    %v1876 = vmul.f32 %v1074, 14.285714
    %v1877 = vmul.f32 %v1077, 14.285714
    %v1878 = vmul.f32 %v1080, 14.285714
    %v1879 = vmul.f32 %v1083, 14.285714
    %v1880 = vmul.f32 %v1086, 14.285714
    %v1881 = vmul.f32 %v1089, 14.285714
    %v1882 = vmul.f32 %v1092, 14.285714
    %v1883 = vmul.f32 %v1095, 14.285714
    %v1884 = vmul.f32 %v1098, 14.285714
    %v1885 = vmul.f32 %v1101, 14.285714
    %v1886 = vmul.f32 %v1104, 14.285714
    %v1887 = vmul.f32 %v1107, 14.285714
    %v1888 = vmul.f32 %v1110, 14.285714
    %v1889 = vmul.f32 %v1113, 14.285714
    %v1890 = vmul.f32 %v1116, 14.285714
    %v1891 = vmul.f32 %v1119, 14.285714
    %v1892 = vmul.f32 %v1122, 14.285714
    %v1893 = vmul.f32 %v1125, 14.285714
    %v1894 = vmul.f32 %v1128, 14.285714
    %v1895 = vmul.f32 %v1131, 14.285714
    %v1896 = vmul.f32 %v1134, 14.285714
    %v1897 = vmul.f32 %v1137, 14.285714
    %v1898 = vmul.f32 %v1140, 14.285714
    %v1899 = vmul.f32 %v1143, 14.285714
    %v1900 = vmul.f32 %v1146, 14.285714
    %v1901 = vmul.f32 %v1149, 14.285714
    %v1902 = vmul.f32 %v1152, 14.285714
    %v1903 = vmul.f32 %v1155, 14.285714
    %v1904 = vmul.f32 %v1158, 14.285714
    %v1905 = vmul.f32 %v1161, 14.285714
    %v1906 = vmul.f32 %v1164, 14.285714
    %v1907 = vmul.f32 %v1167, 14.285714
    %v1908 = vmul.f32 %v1170, 14.285714
    %v1909 = vmul.f32 %v1173, 14.285714
    %v1910 = vmul.f32 %v1176, 14.285714
    %v1911 = vmul.f32 %v1179, 14.285714
    %v1912 = vmul.f32 %v1182, 14.285714
    %v1913 = vmul.f32 %v1185, 14.285714
    %v1914 = vmul.f32 %v1188, 14.285714
    %v1915 = vmul.f32 %v1191, 14.285714
    %v1916 = vmul.f32 %v1194, 14.285714
    %v1917 = vmul.f32 %v1197, 14.285714
    %v1918 = vmul.f32 %v1200, 14.285714
    %v1919 = vmul.f32 %v1203, 14.285714
    %v1920 = vmul.f32 %v1206, 14.285714
    %v1921 = vmul.f32 %v1209, 14.285714
    %v1922 = vmul.f32 %v1212, 14.285714
    %v1923 = vmul.f32 %v1215, 14.285714
    %v1924 = vmul.f32 %v1218, 14.285714
    %v1925 = vmul.f32 %v1221, 14.285714
    %v1926 = vmul.f32 %v1224, 14.285714
    %v1927 = vmul.f32 %v1227, 14.285714
    %v1928 = vmul.f32 %v1230, 14.285714
    %v1929 = vmul.f32 %v1233, 14.285714
    %v1930 = vmul.f32 %v1236, 14.285714
    %v1931 = vmul.f32 %v1239, 14.285714
    %v1932 = vmul.f32 %v1242, 14.285714
    %v1933 = vmul.f32 %v1245, 14.285714
    %v1934 = vmul.f32 %v1248, 14.285714
    %v1935 = vmul.f32 %v1251, 14.285714
    %v1936 = vmul.f32 %v1254, 14.285714
    %v1937 = vmul.f32 %v1257, 14.285714
    %v1938 = vmul.f32 %v1260, 14.285714
    %v1939 = vmul.f32 %v1263, 14.285714
    %v1940 = vmul.f32 %v1266, 14.285714
    %v1941 = vmul.f32 %v1269, 14.285714
    %v1942 = vmul.f32 %v1272, 14.285714
    %v1943 = vmul.f32 %v1275, 14.285714
    %v1944 = vmul.f32 %v1278, 14.285714
    %v1945 = vmul.f32 %v1281, 14.285714
    %v1946 = vmul.f32 %v1284, 14.285714
    %v1947 = vmul.f32 %v1287, 14.285714
    %v1948 = vmul.f32 %v1290, 14.285714
    %v1949 = vmul.f32 %v1293, 14.285714
    %v1950 = vmul.f32 %v1296, 14.285714
    %v1951 = vmul.f32 %v1299, 14.285714
    %v1952 = vmul.f32 %v1302, 14.285714
    %v1953 = vmul.f32 %v1305, 14.285714
    %v1954 = vmul.f32 %v1308, 14.285714
    %v1955 = vmul.f32 %v1311, 14.285714
    %v1956 = vmul.f32 %v1314, 14.285714
    %v1957 = vmul.f32 %v1317, 14.285714
    %v1958 = vmul.f32 %v1830, 1.442695
    %v1959 = vpow.pop %v1958
    %v1960 = vmul.f32 %v1831, 1.442695
    %v1961 = vpow.pop %v1960
    %v1962 = vmul.f32 %v1832, 1.442695
    %v1963 = vpow.pop %v1962
    %v1964 = vmul.f32 %v1833, 1.442695
    %v1965 = vpow.pop %v1964
    %v1966 = vmul.f32 %v1834, 1.442695
    %v1967 = vpow.pop %v1966
    %v1968 = vmul.f32 %v1835, 1.442695
    %v1969 = vpow.pop %v1968
    %v1970 = vmul.f32 %v1836, 1.442695
    %v1971 = vpow.pop %v1970
    %v1972 = vmul.f32 %v1837, 1.442695
    %v1973 = vpow.pop %v1972
    %v1974 = vmul.f32 %v1838, 1.442695
    %v1975 = vpow.pop %v1974
    %v1976 = vmul.f32 %v1839, 1.442695
    %v1977 = vpow.pop %v1976
    %v1978 = vmul.f32 %v1840, 1.442695
    %v1979 = vpow.pop %v1978
    %v1980 = vmul.f32 %v1841, 1.442695
    %v1981 = vpow.pop %v1980
    %v1982 = vmul.f32 %v1842, 1.442695
    %v1983 = vpow.pop %v1982
    %v1984 = vmul.f32 %v1843, 1.442695
    %v1985 = vpow.pop %v1984
    %v1986 = vmul.f32 %v1844, 1.442695
    %v1987 = vpow.pop %v1986
    %v1988 = vmul.f32 %v1845, 1.442695
    %v1989 = vpow.pop %v1988
    %v1990 = vmul.f32 %v1846, 1.442695
    %v1991 = vpow.pop %v1990
    %v1992 = vmul.f32 %v1847, 1.442695
    %v1993 = vpow.pop %v1992
    %v1994 = vmul.f32 %v1848, 1.442695
    %v1995 = vpow.pop %v1994
    %v1996 = vmul.f32 %v1849, 1.442695
    %v1997 = vpow.pop %v1996
    %v1998 = vmul.f32 %v1850, 1.442695
    %v1999 = vpow.pop %v1998
    %v2000 = vmul.f32 %v1851, 1.442695
    %v2001 = vpow.pop %v2000
    %v2002 = vmul.f32 %v1852, 1.442695
    %v2003 = vpow.pop %v2002
    %v2004 = vmul.f32 %v1853, 1.442695
    %v2005 = vpow.pop %v2004
    %v2006 = vmul.f32 %v1854, 1.442695
    %v2007 = vpow.pop %v2006
    %v2008 = vmul.f32 %v1855, 1.442695
    %v2009 = vpow.pop %v2008
    %v2010 = vmul.f32 %v1856, 1.442695
    %v2011 = vpow.pop %v2010
    %v2012 = vmul.f32 %v1857, 1.442695
    %v2013 = vpow.pop %v2012
    %v2014 = vmul.f32 %v1858, 1.442695
    %v2015 = vpow.pop %v2014
    %v2016 = vmul.f32 %v1859, 1.442695
    %v2017 = vpow.pop %v2016
    %v2018 = vmul.f32 %v1860, 1.442695
    %v2019 = vpow.pop %v2018
    %v2020 = vmul.f32 %v1861, 1.442695
    %v2021 = vpow.pop %v2020
    %v2022 = vmul.f32 %v1862, 1.442695
    %v2023 = vpow.pop %v2022
    %v2024 = vmul.f32 %v1863, 1.442695
    %v2025 = vpow.pop %v2024
    %v2026 = vmul.f32 %v1864, 1.442695
    %v2027 = vpow.pop %v2026
    %v2028 = vmul.f32 %v1865, 1.442695
    %v2029 = vpow.pop %v2028
    %v2030 = vmul.f32 %v1866, 1.442695
    %v2031 = vpow.pop %v2030
    %v2032 = vmul.f32 %v1867, 1.442695
    %v2033 = vpow.pop %v2032
    %v2034 = vmul.f32 %v1868, 1.442695
    %v2035 = vpow.pop %v2034
    %v2036 = vmul.f32 %v1869, 1.442695
    %v2037 = vpow.pop %v2036
    %v2038 = vmul.f32 %v1870, 1.442695
    %v2039 = vpow.pop %v2038
    %v2040 = vmul.f32 %v1871, 1.442695
    %v2041 = vpow.pop %v2040
    %v2042 = vmul.f32 %v1872, 1.442695
    %v2043 = vpow.pop %v2042
    %v2044 = vmul.f32 %v1873, 1.442695
    %v2045 = vpow.pop %v2044
    %v2046 = vmul.f32 %v1874, 1.442695
    %v2047 = vpow.pop %v2046
    %v2048 = vmul.f32 %v1875, 1.442695
    %v2049 = vpow.pop %v2048
    %v2050 = vmul.f32 %v1876, 1.442695
    %v2051 = vpow.pop %v2050
    %v2052 = vmul.f32 %v1877, 1.442695
    %v2053 = vpow.pop %v2052
    %v2054 = vmul.f32 %v1878, 1.442695
    %v2055 = vpow.pop %v2054
    %v2056 = vmul.f32 %v1879, 1.442695
    %v2057 = vpow.pop %v2056
    %v2058 = vmul.f32 %v1880, 1.442695
    %v2059 = vpow.pop %v2058
    %v2060 = vmul.f32 %v1881, 1.442695
    %v2061 = vpow.pop %v2060
    %v2062 = vmul.f32 %v1882, 1.442695
    %v2063 = vpow.pop %v2062
    %v2064 = vmul.f32 %v1883, 1.442695
    %v2065 = vpow.pop %v2064
    %v2066 = vmul.f32 %v1884, 1.442695
    %v2067 = vpow.pop %v2066
    %v2068 = vmul.f32 %v1885, 1.442695
    %v2069 = vpow.pop %v2068
    %v2070 = vmul.f32 %v1886, 1.442695
    %v2071 = vpow.pop %v2070
    %v2072 = vmul.f32 %v1887, 1.442695
    %v2073 = vpow.pop %v2072
    %v2074 = vmul.f32 %v1888, 1.442695
    %v2075 = vpow.pop %v2074
    %v2076 = vmul.f32 %v1889, 1.442695
    %v2077 = vpow.pop %v2076
    %v2078 = vmul.f32 %v1890, 1.442695
    %v2079 = vpow.pop %v2078
    %v2080 = vmul.f32 %v1891, 1.442695
    %v2081 = vpow.pop %v2080
    %v2082 = vmul.f32 %v1892, 1.442695
    %v2083 = vpow.pop %v2082
    %v2084 = vmul.f32 %v1893, 1.442695
    %v2085 = vpow.pop %v2084
    %v2086 = vmul.f32 %v1894, 1.442695
    %v2087 = vpow.pop %v2086
    %v2088 = vmul.f32 %v1895, 1.442695
    %v2089 = vpow.pop %v2088
    %v2090 = vmul.f32 %v1896, 1.442695
    %v2091 = vpow.pop %v2090
    %v2092 = vmul.f32 %v1897, 1.442695
    %v2093 = vpow.pop %v2092
    %v2094 = vmul.f32 %v1898, 1.442695
    %v2095 = vpow.pop %v2094
    %v2096 = vmul.f32 %v1899, 1.442695
    %v2097 = vpow.pop %v2096
    %v2098 = vmul.f32 %v1900, 1.442695
    %v2099 = vpow.pop %v2098
    %v2100 = vmul.f32 %v1901, 1.442695
    %v2101 = vpow.pop %v2100
    %v2102 = vmul.f32 %v1902, 1.442695
    %v2103 = vpow.pop %v2102
    %v2104 = vmul.f32 %v1903, 1.442695
    %v2105 = vpow.pop %v2104
    %v2106 = vmul.f32 %v1904, 1.442695
    %v2107 = vpow.pop %v2106
    %v2108 = vmul.f32 %v1905, 1.442695
    %v2109 = vpow.pop %v2108
    %v2110 = vmul.f32 %v1906, 1.442695
    %v2111 = vpow.pop %v2110
    %v2112 = vmul.f32 %v1907, 1.442695
    %v2113 = vpow.pop %v2112
    %v2114 = vmul.f32 %v1908, 1.442695
    %v2115 = vpow.pop %v2114
    %v2116 = vmul.f32 %v1909, 1.442695
    %v2117 = vpow.pop %v2116
    %v2118 = vmul.f32 %v1910, 1.442695
    %v2119 = vpow.pop %v2118
    %v2120 = vmul.f32 %v1911, 1.442695
    %v2121 = vpow.pop %v2120
    %v2122 = vmul.f32 %v1912, 1.442695
    %v2123 = vpow.pop %v2122
    %v2124 = vmul.f32 %v1913, 1.442695
    %v2125 = vpow.pop %v2124
    %v2126 = vmul.f32 %v1914, 1.442695
    %v2127 = vpow.pop %v2126
    %v2128 = vmul.f32 %v1915, 1.442695
    %v2129 = vpow.pop %v2128
    %v2130 = vmul.f32 %v1916, 1.442695
    %v2131 = vpow.pop %v2130
    %v2132 = vmul.f32 %v1917, 1.442695
    %v2133 = vpow.pop %v2132
    %v2134 = vmul.f32 %v1918, 1.442695
    %v2135 = vpow.pop %v2134
    %v2136 = vmul.f32 %v1919, 1.442695
    %v2137 = vpow.pop %v2136
    %v2138 = vmul.f32 %v1920, 1.442695
    %v2139 = vpow.pop %v2138
    %v2140 = vmul.f32 %v1921, 1.442695
    %v2141 = vpow.pop %v2140
    %v2142 = vmul.f32 %v1922, 1.442695
    %v2143 = vpow.pop %v2142
    %v2144 = vmul.f32 %v1923, 1.442695
    %v2145 = vpow.pop %v2144
    %v2146 = vmul.f32 %v1924, 1.442695
    %v2147 = vpow.pop %v2146
    %v2148 = vmul.f32 %v1925, 1.442695
    %v2149 = vpow.pop %v2148
    %v2150 = vmul.f32 %v1926, 1.442695
    %v2151 = vpow.pop %v2150
    %v2152 = vmul.f32 %v1927, 1.442695
    %v2153 = vpow.pop %v2152
    %v2154 = vmul.f32 %v1928, 1.442695
    %v2155 = vpow.pop %v2154
    %v2156 = vmul.f32 %v1929, 1.442695
    %v2157 = vpow.pop %v2156
    %v2158 = vmul.f32 %v1930, 1.442695
    %v2159 = vpow.pop %v2158
    %v2160 = vmul.f32 %v1931, 1.442695
    %v2161 = vpow.pop %v2160
    %v2162 = vmul.f32 %v1932, 1.442695
    %v2163 = vpow.pop %v2162
    %v2164 = vmul.f32 %v1933, 1.442695
    %v2165 = vpow.pop %v2164
    %v2166 = vmul.f32 %v1934, 1.442695
    %v2167 = vpow.pop %v2166
    %v2168 = vmul.f32 %v1935, 1.442695
    %v2169 = vpow.pop %v2168
    %v2170 = vmul.f32 %v1936, 1.442695
    %v2171 = vpow.pop %v2170
    %v2172 = vmul.f32 %v1937, 1.442695
    %v2173 = vpow.pop %v2172
    %v2174 = vmul.f32 %v1938, 1.442695
    %v2175 = vpow.pop %v2174
    %v2176 = vmul.f32 %v1939, 1.442695
    %v2177 = vpow.pop %v2176
    %v2178 = vmul.f32 %v1940, 1.442695
    %v2179 = vpow.pop %v2178
    %v2180 = vmul.f32 %v1941, 1.442695
    %v2181 = vpow.pop %v2180
    %v2182 = vmul.f32 %v1942, 1.442695
    %v2183 = vpow.pop %v2182
    %v2184 = vmul.f32 %v1943, 1.442695
    %v2185 = vpow.pop %v2184
    %v2186 = vmul.f32 %v1944, 1.442695
    %v2187 = vpow.pop %v2186
    %v2188 = vmul.f32 %v1945, 1.442695
    %v2189 = vpow.pop %v2188
    %v2190 = vmul.f32 %v1946, 1.442695
    %v2191 = vpow.pop %v2190
    %v2192 = vmul.f32 %v1947, 1.442695
    %v2193 = vpow.pop %v2192
    %v2194 = vmul.f32 %v1948, 1.442695
    %v2195 = vpow.pop %v2194
    %v2196 = vmul.f32 %v1949, 1.442695
    %v2197 = vpow.pop %v2196
    %v2198 = vmul.f32 %v1950, 1.442695
    %v2199 = vpow.pop %v2198
    %v2200 = vmul.f32 %v1951, 1.442695
    %v2201 = vpow.pop %v2200
    %v2202 = vmul.f32 %v1952, 1.442695
    %v2203 = vpow.pop %v2202
    %v2204 = vmul.f32 %v1953, 1.442695
    %v2205 = vpow.pop %v2204
    %v2206 = vmul.f32 %v1954, 1.442695
    %v2207 = vpow.pop %v2206
    %v2208 = vmul.f32 %v1955, 1.442695
    %v2209 = vpow.pop %v2208
    %v2210 = vmul.f32 %v1956, 1.442695
    %v2211 = vpow.pop %v2210
    %v2212 = vmul.f32 %v1957, 1.442695
    %v2213 = vpow.pop %v2212
    %v2214 = vadd.f32 %v1959, %v1991
    %v2215 = vadd.f32 %v2214, %v2023
    %v2216 = vadd.f32 %v2215, %v2055
    %v2217 = vadd.f32 %v2216, %v2087
    %v2218 = vadd.f32 %v2217, %v2119
    %v2219 = vadd.f32 %v2218, %v2151
    %v2220 = vadd.f32 %v2219, %v2183
    %v2221 = vadd.f32 %v1961, %v1993
    %v2222 = vadd.f32 %v2221, %v2025
    %v2223 = vadd.f32 %v2222, %v2057
    %v2224 = vadd.f32 %v2223, %v2089
    %v2225 = vadd.f32 %v2224, %v2121
    %v2226 = vadd.f32 %v2225, %v2153
    %v2227 = vadd.f32 %v2226, %v2185
    %v2228 = vadd.f32 %v1963, %v1995
    %v2229 = vadd.f32 %v2228, %v2027
    %v2230 = vadd.f32 %v2229, %v2059
    %v2231 = vadd.f32 %v2230, %v2091
    %v2232 = vadd.f32 %v2231, %v2123
    %v2233 = vadd.f32 %v2232, %v2155
    %v2234 = vadd.f32 %v2233, %v2187
    %v2235 = vadd.f32 %v1965, %v1997
    %v2236 = vadd.f32 %v2235, %v2029
    %v2237 = vadd.f32 %v2236, %v2061
    %v2238 = vadd.f32 %v2237, %v2093
    %v2239 = vadd.f32 %v2238, %v2125
    %v2240 = vadd.f32 %v2239, %v2157
    %v2241 = vadd.f32 %v2240, %v2189
    %v2242 = vadd.f32 %v1967, %v1999
    %v2243 = vadd.f32 %v2242, %v2031
    %v2244 = vadd.f32 %v2243, %v2063
    %v2245 = vadd.f32 %v2244, %v2095
    %v2246 = vadd.f32 %v2245, %v2127
    %v2247 = vadd.f32 %v2246, %v2159
    %v2248 = vadd.f32 %v2247, %v2191
    %v2249 = vadd.f32 %v1969, %v2001
    %v2250 = vadd.f32 %v2249, %v2033
    %v2251 = vadd.f32 %v2250, %v2065
    %v2252 = vadd.f32 %v2251, %v2097
    %v2253 = vadd.f32 %v2252, %v2129
    %v2254 = vadd.f32 %v2253, %v2161
    %v2255 = vadd.f32 %v2254, %v2193
    %v2256 = vadd.f32 %v1971, %v2003
    %v2257 = vadd.f32 %v2256, %v2035
    %v2258 = vadd.f32 %v2257, %v2067
    %v2259 = vadd.f32 %v2258, %v2099
    %v2260 = vadd.f32 %v2259, %v2131
    %v2261 = vadd.f32 %v2260, %v2163
    %v2262 = vadd.f32 %v2261, %v2195
    %v2263 = vadd.f32 %v1973, %v2005
    %v2264 = vadd.f32 %v2263, %v2037
    %v2265 = vadd.f32 %v2264, %v2069
    %v2266 = vadd.f32 %v2265, %v2101
    %v2267 = vadd.f32 %v2266, %v2133
    %v2268 = vadd.f32 %v2267, %v2165
    %v2269 = vadd.f32 %v2268, %v2197
    %v2270 = vadd.f32 %v1975, %v2007
    %v2271 = vadd.f32 %v2270, %v2039
    %v2272 = vadd.f32 %v2271, %v2071
    %v2273 = vadd.f32 %v2272, %v2103
    %v2274 = vadd.f32 %v2273, %v2135
    %v2275 = vadd.f32 %v2274, %v2167
    %v2276 = vadd.f32 %v2275, %v2199
    %v2277 = vadd.f32 %v1977, %v2009
    %v2278 = vadd.f32 %v2277, %v2041
    %v2279 = vadd.f32 %v2278, %v2073
    %v2280 = vadd.f32 %v2279, %v2105
    %v2281 = vadd.f32 %v2280, %v2137
    %v2282 = vadd.f32 %v2281, %v2169
    %v2283 = vadd.f32 %v2282, %v2201
    %v2284 = vadd.f32 %v1979, %v2011
    %v2285 = vadd.f32 %v2284, %v2043
    %v2286 = vadd.f32 %v2285, %v2075
    %v2287 = vadd.f32 %v2286, %v2107
    %v2288 = vadd.f32 %v2287, %v2139
    %v2289 = vadd.f32 %v2288, %v2171
    %v2290 = vadd.f32 %v2289, %v2203
    %v2291 = vadd.f32 %v1981, %v2013
    %v2292 = vadd.f32 %v2291, %v2045
    %v2293 = vadd.f32 %v2292, %v2077
    %v2294 = vadd.f32 %v2293, %v2109
    %v2295 = vadd.f32 %v2294, %v2141
    %v2296 = vadd.f32 %v2295, %v2173
    %v2297 = vadd.f32 %v2296, %v2205
    %v2298 = vadd.f32 %v1983, %v2015
    %v2299 = vadd.f32 %v2298, %v2047
    %v2300 = vadd.f32 %v2299, %v2079
    %v2301 = vadd.f32 %v2300, %v2111
    %v2302 = vadd.f32 %v2301, %v2143
    %v2303 = vadd.f32 %v2302, %v2175
    %v2304 = vadd.f32 %v2303, %v2207
    %v2305 = vadd.f32 %v1985, %v2017
    %v2306 = vadd.f32 %v2305, %v2049
    %v2307 = vadd.f32 %v2306, %v2081
    %v2308 = vadd.f32 %v2307, %v2113
    %v2309 = vadd.f32 %v2308, %v2145
    %v2310 = vadd.f32 %v2309, %v2177
    %v2311 = vadd.f32 %v2310, %v2209
    %v2312 = vadd.f32 %v1987, %v2019
    %v2313 = vadd.f32 %v2312, %v2051
    %v2314 = vadd.f32 %v2313, %v2083
    %v2315 = vadd.f32 %v2314, %v2115
    %v2316 = vadd.f32 %v2315, %v2147
    %v2317 = vadd.f32 %v2316, %v2179
    %v2318 = vadd.f32 %v2317, %v2211
    %v2319 = vadd.f32 %v1989, %v2021
    %v2320 = vadd.f32 %v2319, %v2053
    %v2321 = vadd.f32 %v2320, %v2085
    %v2322 = vadd.f32 %v2321, %v2117
    %v2323 = vadd.f32 %v2322, %v2149
    %v2324 = vadd.f32 %v2323, %v2181
    %v2325 = vadd.f32 %v2324, %v2213
    %v2326 = vadd.f32 %v2220, %v263
    %v2327 = vadd.f32 %v2227, %v265
    %v2328 = vadd.f32 %v2234, %v267
    %v2329 = vadd.f32 %v2241, %v269
    %v2330 = vadd.f32 %v2248, %v271
    %v2331 = vadd.f32 %v2255, %v273
    %v2332 = vadd.f32 %v2262, %v275
    %v2333 = vadd.f32 %v2269, %v277
    %v2334 = vadd.f32 %v2276, %v279
    %v2335 = vadd.f32 %v2283, %v281
    %v2336 = vadd.f32 %v2290, %v283
    %v2337 = vadd.f32 %v2297, %v285
    %v2338 = vadd.f32 %v2304, %v287
    %v2339 = vadd.f32 %v2311, %v289
    %v2340 = vadd.f32 %v2318, %v291
    %v2341 = vadd.f32 %v2325, %v293
    %v2342 = vadd.f32 %v1814, 1e-08
    %v2343 = vadd.f32 %v1815, 1e-08
    %v2344 = vadd.f32 %v1816, 1e-08
    %v2345 = vadd.f32 %v1817, 1e-08
    %v2346 = vadd.f32 %v1818, 1e-08
    %v2347 = vadd.f32 %v1819, 1e-08
    %v2348 = vadd.f32 %v1820, 1e-08
    %v2349 = vadd.f32 %v1821, 1e-08
    %v2350 = vadd.f32 %v1822, 1e-08
    %v2351 = vadd.f32 %v1823, 1e-08
    %v2352 = vadd.f32 %v1824, 1e-08
    %v2353 = vadd.f32 %v1825, 1e-08
    %v2354 = vadd.f32 %v1826, 1e-08
    %v2355 = vadd.f32 %v1827, 1e-08
    %v2356 = vadd.f32 %v1828, 1e-08
    %v2357 = vadd.f32 %v1829, 1e-08
    %v2358 = vrcp.pop %v2342
    %v2359 = vmul.f32 %v263, %v2358
    %v2360 = vrcp.pop %v2343
    %v2361 = vmul.f32 %v265, %v2360
    %v2362 = vrcp.pop %v2344
    %v2363 = vmul.f32 %v267, %v2362
    %v2364 = vrcp.pop %v2345
    %v2365 = vmul.f32 %v269, %v2364
    %v2366 = vrcp.pop %v2346
    %v2367 = vmul.f32 %v271, %v2366
    %v2368 = vrcp.pop %v2347
    %v2369 = vmul.f32 %v273, %v2368
    %v2370 = vrcp.pop %v2348
    %v2371 = vmul.f32 %v275, %v2370
    %v2372 = vrcp.pop %v2349
    %v2373 = vmul.f32 %v277, %v2372
    %v2374 = vrcp.pop %v2350
    %v2375 = vmul.f32 %v279, %v2374
    %v2376 = vrcp.pop %v2351
    %v2377 = vmul.f32 %v281, %v2376
    %v2378 = vrcp.pop %v2352
    %v2379 = vmul.f32 %v283, %v2378
    %v2380 = vrcp.pop %v2353
    %v2381 = vmul.f32 %v285, %v2380
    %v2382 = vrcp.pop %v2354
    %v2383 = vmul.f32 %v287, %v2382
    %v2384 = vrcp.pop %v2355
    %v2385 = vmul.f32 %v289, %v2384
    %v2386 = vrcp.pop %v2356
    %v2387 = vmul.f32 %v291, %v2386
    %v2388 = vrcp.pop %v2357
    %v2389 = vmul.f32 %v293, %v2388
    %v2390 = vlog2.pop %v2359
    %v2391 = vmul.f32 %v2390, 0.6931472
    %v2392 = vlog2.pop %v2361
    %v2393 = vmul.f32 %v2392, 0.6931472
    %v2394 = vlog2.pop %v2363
    %v2395 = vmul.f32 %v2394, 0.6931472
    %v2396 = vlog2.pop %v2365
    %v2397 = vmul.f32 %v2396, 0.6931472
    %v2398 = vlog2.pop %v2367
    %v2399 = vmul.f32 %v2398, 0.6931472
    %v2400 = vlog2.pop %v2369
    %v2401 = vmul.f32 %v2400, 0.6931472
    %v2402 = vlog2.pop %v2371
    %v2403 = vmul.f32 %v2402, 0.6931472
    %v2404 = vlog2.pop %v2373
    %v2405 = vmul.f32 %v2404, 0.6931472
    %v2406 = vlog2.pop %v2375
    %v2407 = vmul.f32 %v2406, 0.6931472
    %v2408 = vlog2.pop %v2377
    %v2409 = vmul.f32 %v2408, 0.6931472
    %v2410 = vlog2.pop %v2379
    %v2411 = vmul.f32 %v2410, 0.6931472
    %v2412 = vlog2.pop %v2381
    %v2413 = vmul.f32 %v2412, 0.6931472
    %v2414 = vlog2.pop %v2383
    %v2415 = vmul.f32 %v2414, 0.6931472
    %v2416 = vlog2.pop %v2385
    %v2417 = vmul.f32 %v2416, 0.6931472
    %v2418 = vlog2.pop %v2387
    %v2419 = vmul.f32 %v2418, 0.6931472
    %v2420 = vlog2.pop %v2389
    %v2421 = vmul.f32 %v2420, 0.6931472
    %v2422 = vsub.f32 0.0, %v2391
    %v2423 = vsub.f32 0.0, %v2393
    %v2424 = vsub.f32 0.0, %v2395
    %v2425 = vsub.f32 0.0, %v2397
    %v2426 = vsub.f32 0.0, %v2399
    %v2427 = vsub.f32 0.0, %v2401
    %v2428 = vsub.f32 0.0, %v2403
    %v2429 = vsub.f32 0.0, %v2405
    %v2430 = vsub.f32 0.0, %v2407
    %v2431 = vsub.f32 0.0, %v2409
    %v2432 = vsub.f32 0.0, %v2411
    %v2433 = vsub.f32 0.0, %v2413
    %v2434 = vsub.f32 0.0, %v2415
    %v2435 = vsub.f32 0.0, %v2417
    %v2436 = vsub.f32 0.0, %v2419
    %v2437 = vsub.f32 0.0, %v2421
    %v2438 = vadd.f32 %v2326, 1e-08
    %v2439 = vadd.f32 %v2327, 1e-08
    %v2440 = vadd.f32 %v2328, 1e-08
    %v2441 = vadd.f32 %v2329, 1e-08
    %v2442 = vadd.f32 %v2330, 1e-08
    %v2443 = vadd.f32 %v2331, 1e-08
    %v2444 = vadd.f32 %v2332, 1e-08
    %v2445 = vadd.f32 %v2333, 1e-08
    %v2446 = vadd.f32 %v2334, 1e-08
    %v2447 = vadd.f32 %v2335, 1e-08
    %v2448 = vadd.f32 %v2336, 1e-08
    %v2449 = vadd.f32 %v2337, 1e-08
    %v2450 = vadd.f32 %v2338, 1e-08
    %v2451 = vadd.f32 %v2339, 1e-08
    %v2452 = vadd.f32 %v2340, 1e-08
    %v2453 = vadd.f32 %v2341, 1e-08
    %v2454 = vrcp.pop %v2438
    %v2455 = vmul.f32 %v263, %v2454
    %v2456 = vrcp.pop %v2439
    %v2457 = vmul.f32 %v265, %v2456
    %v2458 = vrcp.pop %v2440
    %v2459 = vmul.f32 %v267, %v2458
    %v2460 = vrcp.pop %v2441
    %v2461 = vmul.f32 %v269, %v2460
    %v2462 = vrcp.pop %v2442
    %v2463 = vmul.f32 %v271, %v2462
    %v2464 = vrcp.pop %v2443
    %v2465 = vmul.f32 %v273, %v2464
    %v2466 = vrcp.pop %v2444
    %v2467 = vmul.f32 %v275, %v2466
    %v2468 = vrcp.pop %v2445
    %v2469 = vmul.f32 %v277, %v2468
    %v2470 = vrcp.pop %v2446
    %v2471 = vmul.f32 %v279, %v2470
    %v2472 = vrcp.pop %v2447
    %v2473 = vmul.f32 %v281, %v2472
    %v2474 = vrcp.pop %v2448
    %v2475 = vmul.f32 %v283, %v2474
    %v2476 = vrcp.pop %v2449
    %v2477 = vmul.f32 %v285, %v2476
    %v2478 = vrcp.pop %v2450
    %v2479 = vmul.f32 %v287, %v2478
    %v2480 = vrcp.pop %v2451
    %v2481 = vmul.f32 %v289, %v2480
    %v2482 = vrcp.pop %v2452
    %v2483 = vmul.f32 %v291, %v2482
    %v2484 = vrcp.pop %v2453
    %v2485 = vmul.f32 %v293, %v2484
    %v2486 = vlog2.pop %v2455
    %v2487 = vmul.f32 %v2486, 0.6931472
    %v2488 = vlog2.pop %v2457
    %v2489 = vmul.f32 %v2488, 0.6931472
    %v2490 = vlog2.pop %v2459
    %v2491 = vmul.f32 %v2490, 0.6931472
    %v2492 = vlog2.pop %v2461
    %v2493 = vmul.f32 %v2492, 0.6931472
    %v2494 = vlog2.pop %v2463
    %v2495 = vmul.f32 %v2494, 0.6931472
    %v2496 = vlog2.pop %v2465
    %v2497 = vmul.f32 %v2496, 0.6931472
    %v2498 = vlog2.pop %v2467
    %v2499 = vmul.f32 %v2498, 0.6931472
    %v2500 = vlog2.pop %v2469
    %v2501 = vmul.f32 %v2500, 0.6931472
    %v2502 = vlog2.pop %v2471
    %v2503 = vmul.f32 %v2502, 0.6931472
    %v2504 = vlog2.pop %v2473
    %v2505 = vmul.f32 %v2504, 0.6931472
    %v2506 = vlog2.pop %v2475
    %v2507 = vmul.f32 %v2506, 0.6931472
    %v2508 = vlog2.pop %v2477
    %v2509 = vmul.f32 %v2508, 0.6931472
    %v2510 = vlog2.pop %v2479
    %v2511 = vmul.f32 %v2510, 0.6931472
    %v2512 = vlog2.pop %v2481
    %v2513 = vmul.f32 %v2512, 0.6931472
    %v2514 = vlog2.pop %v2483
    %v2515 = vmul.f32 %v2514, 0.6931472
    %v2516 = vlog2.pop %v2485
    %v2517 = vmul.f32 %v2516, 0.6931472
    %v2518 = vsub.f32 0.0, %v2487
    %v2519 = vsub.f32 0.0, %v2489
    %v2520 = vsub.f32 0.0, %v2491
    %v2521 = vsub.f32 0.0, %v2493
    %v2522 = vsub.f32 0.0, %v2495
    %v2523 = vsub.f32 0.0, %v2497
    %v2524 = vsub.f32 0.0, %v2499
    %v2525 = vsub.f32 0.0, %v2501
    %v2526 = vsub.f32 0.0, %v2503
    %v2527 = vsub.f32 0.0, %v2505
    %v2528 = vsub.f32 0.0, %v2507
    %v2529 = vsub.f32 0.0, %v2509
    %v2530 = vsub.f32 0.0, %v2511
    %v2531 = vsub.f32 0.0, %v2513
    %v2532 = vsub.f32 0.0, %v2515
    %v2533 = vsub.f32 0.0, %v2517
    %v2534 = vld [vmem:[#allocation2] sm:$0x1]
    %v2535 = vadd.f32 %v2422, %v2518
    %v2536 = vadd.f32 %v2423, %v2519
    %v2537 = vadd.f32 %v2424, %v2520
    %v2538 = vadd.f32 %v2425, %v2521
    %v2539 = vadd.f32 %v2426, %v2522
    %v2540 = vadd.f32 %v2427, %v2523
    %v2541 = vadd.f32 %v2428, %v2524
    %v2542 = vadd.f32 %v2429, %v2525
    %v2543 = vadd.f32 %v2430, %v2526
    %v2544 = vadd.f32 %v2431, %v2527
    %v2545 = vadd.f32 %v2432, %v2528
    %v2546 = vadd.f32 %v2433, %v2529
    %v2547 = vadd.f32 %v2434, %v2530
    %v2548 = vadd.f32 %v2435, %v2531
    %v2549 = vadd.f32 %v2436, %v2532
    %v2550 = vadd.f32 %v2437, %v2533
    %vm2551 = vcmask 7168
    %v2552 = vsel %vm2551, %v2535, 0.0
    %v2553 = vsel %vm2551, %v2536, 0.0
    %v2554 = vadd.f32 %v2552, %v2553
    %v2555 = vsel %vm2551, %v2537, 0.0
    %v2556 = vadd.f32 %v2554, %v2555
    %v2557 = vsel %vm2551, %v2538, 0.0
    %v2558 = vadd.f32 %v2556, %v2557
    %v2559 = vsel %vm2551, %v2539, 0.0
    %v2560 = vadd.f32 %v2558, %v2559
    %v2561 = vsel %vm2551, %v2540, 0.0
    %v2562 = vadd.f32 %v2560, %v2561
    %v2563 = vsel %vm2551, %v2541, 0.0
    %v2564 = vadd.f32 %v2562, %v2563
    %v2565 = vsel %vm2551, %v2542, 0.0
    %v2566 = vadd.f32 %v2564, %v2565
    %v2567 = vsel %vm2551, %v2543, 0.0
    %v2568 = vadd.f32 %v2566, %v2567
    %v2569 = vsel %vm2551, %v2544, 0.0
    %v2570 = vadd.f32 %v2568, %v2569
    %v2571 = vsel %vm2551, %v2545, 0.0
    %v2572 = vadd.f32 %v2570, %v2571
    %v2573 = vsel %vm2551, %v2546, 0.0
    %v2574 = vadd.f32 %v2572, %v2573
    %v2575 = vsel %vm2551, %v2547, 0.0
    %v2576 = vadd.f32 %v2574, %v2575
    %v2577 = vsel %vm2551, %v2548, 0.0
    %v2578 = vadd.f32 %v2576, %v2577
    %v2579 = vsel %vm2551, %v2549, 0.0
    %v2580 = vadd.f32 %v2578, %v2579
    %v2581 = vsel %vm2551, %v2550, 0.0
    %v2582 = vadd.f32 %v2580, %v2581
    %2583 = vadd.xlane.f32.xlu0 %v2582
    %v2584 = vpop.xlane.xlu0 %2583
    %v2585 = vrot.slane %v2584, 4
    %v2586 = vadd.f32 %v2584, %v2585
    %v2587 = vrot.slane %v2586, 2
    %v2588 = vadd.f32 %v2586, %v2587
    %v2589 = vrot.slane %v2588, 1
    %v2590 = vadd.f32 %v2588, %v2589
    %s2591 = vtos %v2590
    %v2592 = vstv %s2591
    %v2593 = vadd.f32 %v2534, %v2592
    %vm2594 = vcmask 0
    %2595 = vst.msk [vmem:[#allocation2] sm:$0x1] %vm2594, %v2593
    // Predicated region
    $region18: #{rnsf_contrastive_loss.5} parent=1 // pred_check
      %p2596 = pneg %p15
    $region19: #{rnsf_contrastive_loss.5} parent=1 // pred_check_branch
      %2598 = sbr.rel (%p2596) target = $region21
    $region20: #{rnsf_contrastive_loss.5} parent=1 // pred_region
      %v2599 = vld [vmem:[#allocation2] sm:$0x1]
      %v2600 = vmul.f32 %v2599, 0.0078125
      %2601 = vst.msk [vmem:[#allocation2] sm:$0x1] %vm2594, %v2600
    $region21: #{rnsf_contrastive_loss.5} parent=1 // pred_fallthru
      _
    // Predicated region
    $region22: #{rnsf_contrastive_loss.5} parent=1 // pred_check
      _
    $region23: #{rnsf_contrastive_loss.5} parent=1 // pred_check_branch
      %2603 = sbr.rel (0) target = $region25
    $region24: #{rnsf_contrastive_loss.5} parent=1 // pred_region
      %s2605 = ssub.s32 16, 16
      %2606 = vsyncadd [#allocation3], %s2605
      %s2608 = sshll.u32 [#allocation2], 4
      %s2609 = int_to_ptr.vmem [resolvable:$true] %s2608
      %2611 = dma.vmem_to_hbm [thread:$0]  %s2609, 16, %s3, [#allocation3]
    $region25: #{rnsf_contrastive_loss.5} parent=1 // pred_fallthru
      _
    // Predicated region
    $region26: #{rnsf_contrastive_loss.5} parent=1 // pred_check
      _
    $region27: #{rnsf_contrastive_loss.5} parent=1 // pred_check_branch
      %2613 = sbr.rel (0) target = $region29
    $region28: #{rnsf_contrastive_loss.5} parent=1 // pred_region
      %2614 = dma.done [#allocation3], 16
    $region29: #{rnsf_contrastive_loss.5} parent=1 // pred_fallthru
      _
    %2615 = vsyncpa [#allocation3], 1

</llo_original>
